<compile_context>
chip_gen: v7x
topology: tpu7x:2x2x1
jax: 0.10.0
libtpu: 0.0.40
codegen_flags: <defaults>
</compile_context>

<pallas_src>
import functools

import jax
import jax.numpy as jnp
from jax import lax
from jax.experimental import pallas as pl
from jax.experimental.pallas import tpu as pltpu


def _round_up(x, m):
    return (x + m - 1) // m * m


# ----------------------------- fused Pallas kernel -------------------------- #

def _encoder_kernel(x_ref, mask_ref, w1_ref, a1_ref, g1_ref, b1_ref,
                    w2_ref, a2_ref, g2_ref, b2_ref, o_ref,
                    hext_ref, col_ref, *, pd, ph, pw, lane_pad, cin_p, c_mid):
    s2 = pd * ph * pw

    # Zero the persistent halo'd activation scratch once (scratch persists across grid steps).
    # Only the pad columns rely on this (masks zero every tap that reads a pad), but they must
    # not hold stale NaN/Inf from a previous kernel.
    @pl.when(pl.program_id(0) == 0)
    def _():
        hext_ref[...] = jnp.zeros_like(hext_ref)

    # Static flat-index offsets of the 27 conv taps (zero padding handled by the masks).
    offsets = [dz * ph * pw + dy * pw + dx
               for dz in (-1, 0, 1) for dy in (-1, 0, 1) for dx in (-1, 0, 1)]

    def conv_relu_gn(cin, w_ref, a_ref, g_ref, b_ref):
        # Activation (cin, s2) bf16 already sits in hext_ref[:cin, lane_pad:lane_pad+s2].
        # im2col: 27 lane-shifted, masked bf16 copies folded into the matmul K dim.
        for t in range(27):
            off = offsets[t]
            tap = hext_ref[0:cin, lane_pad + off:lane_pad + off + s2]   # bf16 static slice
            col_ref[t * cin:(t + 1) * cin, :] = tap * mask_ref[t]       # packed bf16 stores
        # Single K = 27*cin MXU matmul, bf16 inputs / f32 accumulation.
        y = jnp.dot(w_ref[...], col_ref[0:27 * cin, :],
                    preferred_element_type=jnp.float32)                 # (cout, s2)
        y = jnp.maximum(y, 0.0)                                         # ReLU

        # GroupNorm: reduce first (cross-lane row sums), then group-average the tiny (cout,1)
        # vectors with the host-built A matrix; fold the epilogue into per-channel scale/shift.
        rs = jnp.sum(y, axis=1, keepdims=True)                          # (cout, 1)
        rq = jnp.sum(y * y, axis=1, keepdims=True)                      # (cout, 1)
        mean = jnp.dot(a_ref[...], rs, preferred_element_type=jnp.float32)
        ey2 = jnp.dot(a_ref[...], rq, preferred_element_type=jnp.float32)
        var = jnp.maximum(ey2 - mean * mean, 0.0)                       # f32 single-pass var
        s = lax.rsqrt(var + 1e-5) * g_ref[...]                          # per-channel scale
        t0 = b_ref[...] - mean * s                                      # per-channel shift
        return y * s + t0                                               # (cout, s2) f32

    # conv1: input = pre-pooled activation block.
    hext_ref[0:cin_p, lane_pad:lane_pad + s2] = x_ref[0]
    y1 = conv_relu_gn(cin_p, w1_ref, a1_ref, g1_ref, b1_ref)            # (c_mid, s2), stays in VMEM
    # conv2 reuses the same halo'd scratch.
    hext_ref[0:c_mid, lane_pad:lane_pad + s2] = y1.astype(jnp.bfloat16)
    y2 = conv_relu_gn(c_mid, w2_ref, a2_ref, g2_ref, b2_ref)            # (c_out, s2)
    o_ref[0] = y2.astype(o_ref.dtype)                                   # lane-dense store


# ----------------------------- host-side helpers ---------------------------- #

def _fold_weights(w, cin_pad):
    """(3,3,3,cin,cout) DHWIO -> (cout, 27*cin_pad) bf16, taps folded into K (dz,dy,dx order)."""
    _, _, _, cin, cout = w.shape
    w = w.reshape(27, cin, cout)
    if cin_pad != cin:
        w = jnp.pad(w, ((0, 0), (0, cin_pad - cin), (0, 0)))
    w = jnp.transpose(w, (2, 0, 1)).reshape(cout, 27 * cin_pad)
    return w.astype(jnp.bfloat16)


def _tap_masks(pd, ph, pw):
    """(27, 1, s2) bf16 {0,1}: validity of each 3x3x3 tap at each output voxel (pad=1)."""
    z = jnp.arange(pd)[:, None, None]
    y = jnp.arange(ph)[None, :, None]
    x = jnp.arange(pw)[None, None, :]
    rows = []
    for dz in (-1, 0, 1):
        for dy in (-1, 0, 1):
            for dx in (-1, 0, 1):
                ok = ((z + dz >= 0) & (z + dz < pd) &
                      (y + dy >= 0) & (y + dy < ph) &
                      (x + dx >= 0) & (x + dx < pw))
                rows.append(ok.reshape(1, pd * ph * pw))
    return jnp.stack(rows, axis=0).astype(jnp.bfloat16)


def _group_avg_matrix(channels, groups, s2):
    """(c, c) matrix A with A[i,j] = 1/(cg*s2) if channels i,j share a group, else 0."""
    cg = channels // groups
    idx = jnp.arange(channels)
    same = (idx[:, None] // cg) == (idx[None, :] // cg)
    return jnp.where(same, 1.0 / (cg * s2), 0.0).astype(jnp.float32)


def init_params(key, in_ch, out_ch, num_groups=8):
    # DoubleConv(encoder=True): conv1: in -> max(out//2, in); conv2: -> out. order='crg' => no conv bias.
    c1_out = max(out_ch // 2, in_ch)
    k1, k2 = jax.random.split(key)
    w1 = jax.random.normal(k1, (3, 3, 3, in_ch, c1_out), jnp.float32) * 0.1   # DHWIO
    w2 = jax.random.normal(k2, (3, 3, 3, c1_out, out_ch), jnp.float32) * 0.1  # DHWIO
    g1 = jnp.ones((1, c1_out), jnp.float32)   # GroupNorm affine defaults (weight=1, bias=0)
    b1 = jnp.zeros((1, c1_out), jnp.float32)
    g2 = jnp.ones((1, out_ch), jnp.float32)
    b2 = jnp.zeros((1, out_ch), jnp.float32)
    return dict(w1=w1, g1=g1, b1=b1, groups1=min(num_groups, c1_out),
                w2=w2, g2=g2, b2=b2, groups2=min(num_groups, out_ch))


# ----------------------------- public wrapper ------------------------------- #

def encoder_forward(x, params):
    """x: (N, C, D, H, W) float32 NCDHW -> (N, C_out, D/2, H/2, W/2) float32."""
    n, c, d, h, w = x.shape
    pd, ph, pw = d // 2, h // 2, w // 2
    s2 = pd * ph * pw
    cin_p = _round_up(c, 8)                       # pad channels so im2col rows are sublane-aligned
    c_mid = params["w1"].shape[-1]
    c_out = params["w2"].shape[-1]
    assert s2 % 128 == 0 and c_mid % 8 == 0 and c_out % 8 == 0
    lane_pad = _round_up(ph * pw + pw + 1, 128)
    assert lane_pad >= ph * pw + pw + 1           # halo must cover max |flat tap offset|
    c_max = max(cin_p, c_mid)

    # MaxPool3d(2,2,2) as a single XLA reduce_window feeding the kernel: avoids materializing
    # an 8-tap transposed copy of x in HBM; the reshape to (N, C, S2) is free/contiguous.
    pooled = lax.reduce_window(x, -jnp.inf, lax.max,
                               (1, 1, 2, 2, 2), (1, 1, 2, 2, 2), "VALID")
    pooled = pooled.reshape(n, c, s2)
    if cin_p != c:
        pooled = jnp.pad(pooled, ((0, 0), (0, cin_p - c), (0, 0)))
    pooled = pooled.astype(jnp.bfloat16)          # bf16 activation feed (MXU consumes bf16)

    w1c = _fold_weights(params["w1"], cin_p)      # (c_mid, 27*cin_p) bf16
    w2c = _fold_weights(params["w2"], c_mid)      # (c_out, 27*c_mid) bf16
    mask = _tap_masks(pd, ph, pw)                 # (27, 1, s2) bf16
    a1 = _group_avg_matrix(c_mid, params["groups1"], s2)
    a2 = _group_avg_matrix(c_out, params["groups2"], s2)
    g1 = params["g1"].reshape(c_mid, 1)
    b1 = params["b1"].reshape(c_mid, 1)
    g2 = params["g2"].reshape(c_out, 1)
    b2 = params["b2"].reshape(c_out, 1)

    # Advisory cost: conv matmuls + the tiny GN group-average matvecs.
    flops = (2 * n * s2 * 27 * (cin_p * c_mid + c_mid * c_out)
             + 4 * n * (c_mid * c_mid + c_out * c_out))
    bytes_accessed = (2 * (pooled.size + mask.size + w1c.size + w2c.size)
                      + 4 * (a1.size + a2.size + 2 * (c_mid + c_out) + n * c_out * s2))

    # Explicit VMEM budget: double-buffered blocks + persistent scratch + live f32 intermediates.
    est_vmem = (2 * (cin_p * s2 * 2) + 2 * (c_out * s2 * 4)
                + 2 * 2 * (mask.size + w1c.size + w2c.size)
                + 4 * 2 * (a1.size + a2.size)
                + c_max * (s2 + 2 * lane_pad) * 2 + 27 * c_max * s2 * 2
                + 6 * max(c_mid, c_out) * s2 * 4)
    vmem_limit = int(min(128 * 1024 * 1024, max(32 * 1024 * 1024, est_vmem * 3 // 2)))

    out = pl.pallas_call(
        functools.partial(_encoder_kernel, pd=pd, ph=ph, pw=pw, lane_pad=lane_pad,
                          cin_p=cin_p, c_mid=c_mid),
        out_shape=jax.ShapeDtypeStruct((n, c_out, s2), jnp.float32),
        grid=(n,),
        in_specs=[
            pl.BlockSpec((1, cin_p, s2), lambda i: (i, 0, 0)),
            pl.BlockSpec((27, 1, s2), lambda i: (0, 0, 0)),
            pl.BlockSpec((c_mid, 27 * cin_p), lambda i: (0, 0)),
            pl.BlockSpec((c_mid, c_mid), lambda i: (0, 0)),
            pl.BlockSpec((c_mid, 1), lambda i: (0, 0)),
            pl.BlockSpec((c_mid, 1), lambda i: (0, 0)),
            pl.BlockSpec((c_out, 27 * c_mid), lambda i: (0, 0)),
            pl.BlockSpec((c_out, c_out), lambda i: (0, 0)),
            pl.BlockSpec((c_out, 1), lambda i: (0, 0)),
            pl.BlockSpec((c_out, 1), lambda i: (0, 0)),
        ],
        out_specs=pl.BlockSpec((1, c_out, s2), lambda i: (i, 0, 0)),
        scratch_shapes=[
            pltpu.VMEM((c_max, s2 + 2 * lane_pad), jnp.bfloat16),   # persistent halo'd activation
            pltpu.VMEM((27 * c_max, s2), jnp.bfloat16),             # bf16 im2col buffer
        ],
        compiler_params=pltpu.CompilerParams(
            dimension_semantics=("parallel",),      # batch axis shards across v7x's 2 TensorCores
            vmem_limit_bytes=vmem_limit),
        cost_estimate=pl.CostEstimate(
            flops=flops, transcendentals=n * (c_mid + c_out),
            bytes_accessed=bytes_accessed),
    )(pooled, mask, w1c, a1, g1, b1, w2c, a2, g2, b2)

    # TODO(synk): for volumes whose per-sample col/activation working set exceeds v7x's 64 MiB VMEM,
    # add a halo'd spatial S2 tile grid axis with two-pass (partial-sum) GroupNorm, and
    # single-buffer the grid-invariant operands (pipeline_mode=pl.Buffered(1)).
    return out.reshape(n, c_out, pd, ph, pw)      # already NCDHW-ordered, no final transpose


# ----------------------------- pure-JAX reference --------------------------- #

def reference_encoder(x, params):
    xt = jnp.transpose(x, (0, 2, 3, 4, 1))
    pooled = lax.reduce_window(xt, -jnp.inf, lax.max,
                               (1, 2, 2, 2, 1), (1, 2, 2, 2, 1), "VALID")

    def conv_relu_gn(inp, wk, gamma, beta, groups):
        y = lax.conv_general_dilated(inp, wk, window_strides=(1, 1, 1),
                                     padding=[(1, 1)] * 3,
                                     dimension_numbers=("NDHWC", "DHWIO", "NDHWC"),
                                     precision=lax.Precision.HIGHEST)
        y = jnp.maximum(y, 0.0)
        nb, dd, hh, ww, cc = y.shape
        cg = cc // groups
        yr = y.reshape(nb, dd * hh * ww, groups, cg)
        mean = yr.mean(axis=(1, 3), keepdims=True)
        var = ((yr - mean) ** 2).mean(axis=(1, 3), keepdims=True)
        yn = ((yr - mean) * lax.rsqrt(var + 1e-5)).reshape(nb, dd, hh, ww, cc)
        return yn * gamma[0] + beta[0]

    y1 = conv_relu_gn(pooled, params["w1"], params["g1"], params["b1"], params["groups1"])
    y2 = conv_relu_gn(y1, params["w2"], params["g2"], params["b2"], params["groups2"])
    return jnp.transpose(y2, (0, 4, 1, 2, 3))


# ----------------------------- main ----------------------------------------- #

if __name__ == "__main__":
    key = jax.random.PRNGKey(0)
    kx, kp = jax.random.split(key)

    N, C_IN, C_OUT = 2, 4, 16
    D, H, W = 8, 16, 16

    x = jax.random.normal(kx, (N, C_IN, D, H, W), jnp.float32)
    params = init_params(kp, C_IN, C_OUT, num_groups=8)

    out = jax.block_until_ready(encoder_forward(x, params))
    ref = jax.block_until_ready(reference_encoder(x, params))

    assert out.shape == (N, C_OUT, D // 2, H // 2, W // 2), out.shape
    assert bool(jnp.all(jnp.isfinite(out)))
    max_err = float(jnp.max(jnp.abs(out - ref)))
    # bf16 MXU inputs / bf16 activation feed with f32 accumulation vs an f32-HIGHEST reference.
    assert max_err < 5e-2, f"max abs err {max_err}"
    print("KERNEL_OK")
</pallas_src>

<mosaic_0001>
module attributes {stable_mosaic.version = 11 : i64} {
  func.func @_encoder_kernel(%arg0: i32, %arg1: memref<1x8x256xbf16, #tpu.memory_space<vmem>>, %arg2: memref<27x1x256xbf16, #tpu.memory_space<vmem>>, %arg3: memref<8x216xbf16, #tpu.memory_space<vmem>>, %arg4: memref<8x8xf32, #tpu.memory_space<vmem>>, %arg5: memref<8x1xf32, #tpu.memory_space<vmem>>, %arg6: memref<8x1xf32, #tpu.memory_space<vmem>>, %arg7: memref<16x216xbf16, #tpu.memory_space<vmem>>, %arg8: memref<16x16xf32, #tpu.memory_space<vmem>>, %arg9: memref<16x1xf32, #tpu.memory_space<vmem>>, %arg10: memref<16x1xf32, #tpu.memory_space<vmem>>, %arg11: memref<1x16x256xf32, #tpu.memory_space<vmem>>, %arg12: memref<8x512xbf16, #tpu.memory_space<vmem>>, %arg13: memref<216x256xbf16, #tpu.memory_space<vmem>>) attributes {dimension_semantics = [#tpu.dimension_semantics<parallel>], iteration_bounds = array<i64: 2>, scalar_prefetch = 0 : i64, scratch_operands = 2 : i64, tpu.core_type = #tpu.core_type<tc>, window_params = [{transform_indices = @transform_0, window_bounds = array<i64: 1, 8, 256>}, {pipeline_mode = #tpu.pipeline_mode<synchronous>, transform_indices = @transform_1, window_bounds = array<i64: 27, 1, 256>}, {pipeline_mode = #tpu.pipeline_mode<synchronous>, transform_indices = @transform_2, window_bounds = array<i64: 8, 216>}, {pipeline_mode = #tpu.pipeline_mode<synchronous>, transform_indices = @transform_3, window_bounds = array<i64: 8, 8>}, {pipeline_mode = #tpu.pipeline_mode<synchronous>, transform_indices = @transform_4, window_bounds = array<i64: 8, 1>}, {pipeline_mode = #tpu.pipeline_mode<synchronous>, transform_indices = @transform_5, window_bounds = array<i64: 8, 1>}, {pipeline_mode = #tpu.pipeline_mode<synchronous>, transform_indices = @transform_6, window_bounds = array<i64: 16, 216>}, {pipeline_mode = #tpu.pipeline_mode<synchronous>, transform_indices = @transform_7, window_bounds = array<i64: 16, 16>}, {pipeline_mode = #tpu.pipeline_mode<synchronous>, transform_indices = @transform_8, window_bounds = array<i64: 16, 1>}, {pipeline_mode = #tpu.pipeline_mode<synchronous>, transform_indices = @transform_9, window_bounds = array<i64: 16, 1>}, {transform_indices = @transform_10, window_bounds = array<i64: 1, 16, 256>}]} {
    %c0_i32 = arith.constant 0 : i32
    %0 = arith.cmpi eq, %arg0, %c0_i32 : i32
    %1 = arith.extui %0 : i1 to i32
    %c0_i32_0 = arith.constant 0 : i32
    %2 = arith.cmpi ne, %1, %c0_i32_0 : i32
    scf.if %2 {
      %cst_360 = arith.constant 0.000000e+00 : bf16
      %395 = vector.broadcast %cst_360 : bf16 to vector<8x512xbf16>
      %c0_361 = arith.constant 0 : index
      %c0_362 = arith.constant 0 : index
      %396 = vector.load %arg12[%c0_361, %c0_362] : memref<8x512xbf16, #tpu.memory_space<vmem>>, vector<8x512xbf16>
      tpu.vector_store %arg12[%c0_361, %c0_362], %395 {strides = array<i32>} : memref<8x512xbf16, #tpu.memory_space<vmem>>, vector<8x512xbf16>,
    } else {
    }
    %c0 = arith.constant 0 : index
    %c0_1 = arith.constant 0 : index
    %c0_2 = arith.constant 0 : index
    %3 = vector.load %arg1[%c0, %c0_1, %c0_2] : memref<1x8x256xbf16, #tpu.memory_space<vmem>>, vector<1x8x256xbf16>
    %4 = vector.shape_cast %3 : vector<1x8x256xbf16> to vector<8x256xbf16>
    %c0_3 = arith.constant 0 : index
    %c128 = arith.constant 128 : index
    %5 = vector.load %arg12[%c0_3, %c128] : memref<8x512xbf16, #tpu.memory_space<vmem>>, vector<8x256xbf16>
    tpu.vector_store %arg12[%c0_3, %c128], %4 {strides = array<i32>} : memref<8x512xbf16, #tpu.memory_space<vmem>>, vector<8x256xbf16>,
    %c0_4 = arith.constant 0 : index
    %c55 = arith.constant 55 : index
    %6 = vector.load %arg12[%c0_4, %c55] : memref<8x512xbf16, #tpu.memory_space<vmem>>, vector<8x256xbf16>
    %c0_5 = arith.constant 0 : index
    %c0_6 = arith.constant 0 : index
    %c0_7 = arith.constant 0 : index
    %7 = vector.load %arg2[%c0_5, %c0_6, %c0_7] : memref<27x1x256xbf16, #tpu.memory_space<vmem>>, vector<1x1x256xbf16>
    %8 = vector.shape_cast %7 : vector<1x1x256xbf16> to vector<1x256xbf16>
    %9 = vector.broadcast %8 : vector<1x256xbf16> to vector<8x256xbf16>
    %10 = arith.mulf %6, %9 : vector<8x256xbf16>
    %c0_8 = arith.constant 0 : index
    %c0_9 = arith.constant 0 : index
    %11 = vector.load %arg13[%c0_8, %c0_9] : memref<216x256xbf16, #tpu.memory_space<vmem>>, vector<8x256xbf16>
    tpu.vector_store %arg13[%c0_8, %c0_9], %10 {strides = array<i32>} : memref<216x256xbf16, #tpu.memory_space<vmem>>, vector<8x256xbf16>,
    %c0_10 = arith.constant 0 : index
    %c56 = arith.constant 56 : index
    %12 = vector.load %arg12[%c0_10, %c56] : memref<8x512xbf16, #tpu.memory_space<vmem>>, vector<8x256xbf16>
    %c1 = arith.constant 1 : index
    %c0_11 = arith.constant 0 : index
    %c0_12 = arith.constant 0 : index
    %13 = vector.load %arg2[%c1, %c0_11, %c0_12] : memref<27x1x256xbf16, #tpu.memory_space<vmem>>, vector<1x1x256xbf16>
    %14 = vector.shape_cast %13 : vector<1x1x256xbf16> to vector<1x256xbf16>
    %15 = vector.broadcast %14 : vector<1x256xbf16> to vector<8x256xbf16>
    %16 = arith.mulf %12, %15 : vector<8x256xbf16>
    %c8 = arith.constant 8 : index
    %c0_13 = arith.constant 0 : index
    %17 = vector.load %arg13[%c8, %c0_13] : memref<216x256xbf16, #tpu.memory_space<vmem>>, vector<8x256xbf16>
    tpu.vector_store %arg13[%c8, %c0_13], %16 {strides = array<i32>} : memref<216x256xbf16, #tpu.memory_space<vmem>>, vector<8x256xbf16>,
    %c0_14 = arith.constant 0 : index
    %c57 = arith.constant 57 : index
    %18 = vector.load %arg12[%c0_14, %c57] : memref<8x512xbf16, #tpu.memory_space<vmem>>, vector<8x256xbf16>
    %c2 = arith.constant 2 : index
    %c0_15 = arith.constant 0 : index
    %c0_16 = arith.constant 0 : index
    %19 = vector.load %arg2[%c2, %c0_15, %c0_16] : memref<27x1x256xbf16, #tpu.memory_space<vmem>>, vector<1x1x256xbf16>
    %20 = vector.shape_cast %19 : vector<1x1x256xbf16> to vector<1x256xbf16>
    %21 = vector.broadcast %20 : vector<1x256xbf16> to vector<8x256xbf16>
    %22 = arith.mulf %18, %21 : vector<8x256xbf16>
    %c16 = arith.constant 16 : index
    %c0_17 = arith.constant 0 : index
    %23 = vector.load %arg13[%c16, %c0_17] : memref<216x256xbf16, #tpu.memory_space<vmem>>, vector<8x256xbf16>
    tpu.vector_store %arg13[%c16, %c0_17], %22 {strides = array<i32>} : memref<216x256xbf16, #tpu.memory_space<vmem>>, vector<8x256xbf16>,
    %c0_18 = arith.constant 0 : index
    %c63 = arith.constant 63 : index
    %24 = vector.load %arg12[%c0_18, %c63] : memref<8x512xbf16, #tpu.memory_space<vmem>>, vector<8x256xbf16>
    %c3 = arith.constant 3 : index
    %c0_19 = arith.constant 0 : index
    %c0_20 = arith.constant 0 : index
    %25 = vector.load %arg2[%c3, %c0_19, %c0_20] : memref<27x1x256xbf16, #tpu.memory_space<vmem>>, vector<1x1x256xbf16>
    %26 = vector.shape_cast %25 : vector<1x1x256xbf16> to vector<1x256xbf16>
    %27 = vector.broadcast %26 : vector<1x256xbf16> to vector<8x256xbf16>
    %28 = arith.mulf %24, %27 : vector<8x256xbf16>
    %c24 = arith.constant 24 : index
    %c0_21 = arith.constant 0 : index
    %29 = vector.load %arg13[%c24, %c0_21] : memref<216x256xbf16, #tpu.memory_space<vmem>>, vector<8x256xbf16>
    tpu.vector_store %arg13[%c24, %c0_21], %28 {strides = array<i32>} : memref<216x256xbf16, #tpu.memory_space<vmem>>, vector<8x256xbf16>,
    %c0_22 = arith.constant 0 : index
    %c64 = arith.constant 64 : index
    %30 = vector.load %arg12[%c0_22, %c64] : memref<8x512xbf16, #tpu.memory_space<vmem>>, vector<8x256xbf16>
    %c4 = arith.constant 4 : index
    %c0_23 = arith.constant 0 : index
    %c0_24 = arith.constant 0 : index
    %31 = vector.load %arg2[%c4, %c0_23, %c0_24] : memref<27x1x256xbf16, #tpu.memory_space<vmem>>, vector<1x1x256xbf16>
    %32 = vector.shape_cast %31 : vector<1x1x256xbf16> to vector<1x256xbf16>
    %33 = vector.broadcast %32 : vector<1x256xbf16> to vector<8x256xbf16>
    %34 = arith.mulf %30, %33 : vector<8x256xbf16>
    %c32 = arith.constant 32 : index
    %c0_25 = arith.constant 0 : index
    %35 = vector.load %arg13[%c32, %c0_25] : memref<216x256xbf16, #tpu.memory_space<vmem>>, vector<8x256xbf16>
    tpu.vector_store %arg13[%c32, %c0_25], %34 {strides = array<i32>} : memref<216x256xbf16, #tpu.memory_space<vmem>>, vector<8x256xbf16>,
    %c0_26 = arith.constant 0 : index
    %c65 = arith.constant 65 : index
    %36 = vector.load %arg12[%c0_26, %c65] : memref<8x512xbf16, #tpu.memory_space<vmem>>, vector<8x256xbf16>
    %c5 = arith.constant 5 : index
    %c0_27 = arith.constant 0 : index
    %c0_28 = arith.constant 0 : index
    %37 = vector.load %arg2[%c5, %c0_27, %c0_28] : memref<27x1x256xbf16, #tpu.memory_space<vmem>>, vector<1x1x256xbf16>
    %38 = vector.shape_cast %37 : vector<1x1x256xbf16> to vector<1x256xbf16>
    %39 = vector.broadcast %38 : vector<1x256xbf16> to vector<8x256xbf16>
    %40 = arith.mulf %36, %39 : vector<8x256xbf16>
    %c40 = arith.constant 40 : index
    %c0_29 = arith.constant 0 : index
    %41 = vector.load %arg13[%c40, %c0_29] : memref<216x256xbf16, #tpu.memory_space<vmem>>, vector<8x256xbf16>
    tpu.vector_store %arg13[%c40, %c0_29], %40 {strides = array<i32>} : memref<216x256xbf16, #tpu.memory_space<vmem>>, vector<8x256xbf16>,
    %c0_30 = arith.constant 0 : index
    %c71 = arith.constant 71 : index
    %42 = vector.load %arg12[%c0_30, %c71] : memref<8x512xbf16, #tpu.memory_space<vmem>>, vector<8x256xbf16>
    %c6 = arith.constant 6 : index
    %c0_31 = arith.constant 0 : index
    %c0_32 = arith.constant 0 : index
    %43 = vector.load %arg2[%c6, %c0_31, %c0_32] : memref<27x1x256xbf16, #tpu.memory_space<vmem>>, vector<1x1x256xbf16>
    %44 = vector.shape_cast %43 : vector<1x1x256xbf16> to vector<1x256xbf16>
    %45 = vector.broadcast %44 : vector<1x256xbf16> to vector<8x256xbf16>
    %46 = arith.mulf %42, %45 : vector<8x256xbf16>
    %c48 = arith.constant 48 : index
    %c0_33 = arith.constant 0 : index
    %47 = vector.load %arg13[%c48, %c0_33] : memref<216x256xbf16, #tpu.memory_space<vmem>>, vector<8x256xbf16>
    tpu.vector_store %arg13[%c48, %c0_33], %46 {strides = array<i32>} : memref<216x256xbf16, #tpu.memory_space<vmem>>, vector<8x256xbf16>,
    %c0_34 = arith.constant 0 : index
    %c72 = arith.constant 72 : index
    %48 = vector.load %arg12[%c0_34, %c72] : memref<8x512xbf16, #tpu.memory_space<vmem>>, vector<8x256xbf16>
    %c7 = arith.constant 7 : index
    %c0_35 = arith.constant 0 : index
    %c0_36 = arith.constant 0 : index
    %49 = vector.load %arg2[%c7, %c0_35, %c0_36] : memref<27x1x256xbf16, #tpu.memory_space<vmem>>, vector<1x1x256xbf16>
    %50 = vector.shape_cast %49 : vector<1x1x256xbf16> to vector<1x256xbf16>
    %51 = vector.broadcast %50 : vector<1x256xbf16> to vector<8x256xbf16>
    %52 = arith.mulf %48, %51 : vector<8x256xbf16>
    %c56_37 = arith.constant 56 : index
    %c0_38 = arith.constant 0 : index
    %53 = vector.load %arg13[%c56_37, %c0_38] : memref<216x256xbf16, #tpu.memory_space<vmem>>, vector<8x256xbf16>
    tpu.vector_store %arg13[%c56_37, %c0_38], %52 {strides = array<i32>} : memref<216x256xbf16, #tpu.memory_space<vmem>>, vector<8x256xbf16>,
    %c0_39 = arith.constant 0 : index
    %c73 = arith.constant 73 : index
    %54 = vector.load %arg12[%c0_39, %c73] : memref<8x512xbf16, #tpu.memory_space<vmem>>, vector<8x256xbf16>
    %c8_40 = arith.constant 8 : index
    %c0_41 = arith.constant 0 : index
    %c0_42 = arith.constant 0 : index
    %55 = vector.load %arg2[%c8_40, %c0_41, %c0_42] : memref<27x1x256xbf16, #tpu.memory_space<vmem>>, vector<1x1x256xbf16>
    %56 = vector.shape_cast %55 : vector<1x1x256xbf16> to vector<1x256xbf16>
    %57 = vector.broadcast %56 : vector<1x256xbf16> to vector<8x256xbf16>
    %58 = arith.mulf %54, %57 : vector<8x256xbf16>
    %c64_43 = arith.constant 64 : index
    %c0_44 = arith.constant 0 : index
    %59 = vector.load %arg13[%c64_43, %c0_44] : memref<216x256xbf16, #tpu.memory_space<vmem>>, vector<8x256xbf16>
    tpu.vector_store %arg13[%c64_43, %c0_44], %58 {strides = array<i32>} : memref<216x256xbf16, #tpu.memory_space<vmem>>, vector<8x256xbf16>,
    %c0_45 = arith.constant 0 : index
    %c119 = arith.constant 119 : index
    %60 = vector.load %arg12[%c0_45, %c119] : memref<8x512xbf16, #tpu.memory_space<vmem>>, vector<8x256xbf16>
    %c9 = arith.constant 9 : index
    %c0_46 = arith.constant 0 : index
    %c0_47 = arith.constant 0 : index
    %61 = vector.load %arg2[%c9, %c0_46, %c0_47] : memref<27x1x256xbf16, #tpu.memory_space<vmem>>, vector<1x1x256xbf16>
    %62 = vector.shape_cast %61 : vector<1x1x256xbf16> to vector<1x256xbf16>
    %63 = vector.broadcast %62 : vector<1x256xbf16> to vector<8x256xbf16>
    %64 = arith.mulf %60, %63 : vector<8x256xbf16>
    %c72_48 = arith.constant 72 : index
    %c0_49 = arith.constant 0 : index
    %65 = vector.load %arg13[%c72_48, %c0_49] : memref<216x256xbf16, #tpu.memory_space<vmem>>, vector<8x256xbf16>
    tpu.vector_store %arg13[%c72_48, %c0_49], %64 {strides = array<i32>} : memref<216x256xbf16, #tpu.memory_space<vmem>>, vector<8x256xbf16>,
    %c0_50 = arith.constant 0 : index
    %c120 = arith.constant 120 : index
    %66 = vector.load %arg12[%c0_50, %c120] : memref<8x512xbf16, #tpu.memory_space<vmem>>, vector<8x256xbf16>
    %c10 = arith.constant 10 : index
    %c0_51 = arith.constant 0 : index
    %c0_52 = arith.constant 0 : index
    %67 = vector.load %arg2[%c10, %c0_51, %c0_52] : memref<27x1x256xbf16, #tpu.memory_space<vmem>>, vector<1x1x256xbf16>
    %68 = vector.shape_cast %67 : vector<1x1x256xbf16> to vector<1x256xbf16>
    %69 = vector.broadcast %68 : vector<1x256xbf16> to vector<8x256xbf16>
    %70 = arith.mulf %66, %69 : vector<8x256xbf16>
    %c80 = arith.constant 80 : index
    %c0_53 = arith.constant 0 : index
    %71 = vector.load %arg13[%c80, %c0_53] : memref<216x256xbf16, #tpu.memory_space<vmem>>, vector<8x256xbf16>
    tpu.vector_store %arg13[%c80, %c0_53], %70 {strides = array<i32>} : memref<216x256xbf16, #tpu.memory_space<vmem>>, vector<8x256xbf16>,
    %c0_54 = arith.constant 0 : index
    %c121 = arith.constant 121 : index
    %72 = vector.load %arg12[%c0_54, %c121] : memref<8x512xbf16, #tpu.memory_space<vmem>>, vector<8x256xbf16>
    %c11 = arith.constant 11 : index
    %c0_55 = arith.constant 0 : index
    %c0_56 = arith.constant 0 : index
    %73 = vector.load %arg2[%c11, %c0_55, %c0_56] : memref<27x1x256xbf16, #tpu.memory_space<vmem>>, vector<1x1x256xbf16>
    %74 = vector.shape_cast %73 : vector<1x1x256xbf16> to vector<1x256xbf16>
    %75 = vector.broadcast %74 : vector<1x256xbf16> to vector<8x256xbf16>
    %76 = arith.mulf %72, %75 : vector<8x256xbf16>
    %c88 = arith.constant 88 : index
    %c0_57 = arith.constant 0 : index
    %77 = vector.load %arg13[%c88, %c0_57] : memref<216x256xbf16, #tpu.memory_space<vmem>>, vector<8x256xbf16>
    tpu.vector_store %arg13[%c88, %c0_57], %76 {strides = array<i32>} : memref<216x256xbf16, #tpu.memory_space<vmem>>, vector<8x256xbf16>,
    %c0_58 = arith.constant 0 : index
    %c127 = arith.constant 127 : index
    %78 = vector.load %arg12[%c0_58, %c127] : memref<8x512xbf16, #tpu.memory_space<vmem>>, vector<8x256xbf16>
    %c12 = arith.constant 12 : index
    %c0_59 = arith.constant 0 : index
    %c0_60 = arith.constant 0 : index
    %79 = vector.load %arg2[%c12, %c0_59, %c0_60] : memref<27x1x256xbf16, #tpu.memory_space<vmem>>, vector<1x1x256xbf16>
    %80 = vector.shape_cast %79 : vector<1x1x256xbf16> to vector<1x256xbf16>
    %81 = vector.broadcast %80 : vector<1x256xbf16> to vector<8x256xbf16>
    %82 = arith.mulf %78, %81 : vector<8x256xbf16>
    %c96 = arith.constant 96 : index
    %c0_61 = arith.constant 0 : index
    %83 = vector.load %arg13[%c96, %c0_61] : memref<216x256xbf16, #tpu.memory_space<vmem>>, vector<8x256xbf16>
    tpu.vector_store %arg13[%c96, %c0_61], %82 {strides = array<i32>} : memref<216x256xbf16, #tpu.memory_space<vmem>>, vector<8x256xbf16>,
    %c0_62 = arith.constant 0 : index
    %c128_63 = arith.constant 128 : index
    %84 = vector.load %arg12[%c0_62, %c128_63] : memref<8x512xbf16, #tpu.memory_space<vmem>>, vector<8x256xbf16>
    %c13 = arith.constant 13 : index
    %c0_64 = arith.constant 0 : index
    %c0_65 = arith.constant 0 : index
    %85 = vector.load %arg2[%c13, %c0_64, %c0_65] : memref<27x1x256xbf16, #tpu.memory_space<vmem>>, vector<1x1x256xbf16>
    %86 = vector.shape_cast %85 : vector<1x1x256xbf16> to vector<1x256xbf16>
    %87 = vector.broadcast %86 : vector<1x256xbf16> to vector<8x256xbf16>
    %88 = arith.mulf %84, %87 : vector<8x256xbf16>
    %c104 = arith.constant 104 : index
    %c0_66 = arith.constant 0 : index
    %89 = vector.load %arg13[%c104, %c0_66] : memref<216x256xbf16, #tpu.memory_space<vmem>>, vector<8x256xbf16>
    tpu.vector_store %arg13[%c104, %c0_66], %88 {strides = array<i32>} : memref<216x256xbf16, #tpu.memory_space<vmem>>, vector<8x256xbf16>,
    %c0_67 = arith.constant 0 : index
    %c129 = arith.constant 129 : index
    %90 = vector.load %arg12[%c0_67, %c129] : memref<8x512xbf16, #tpu.memory_space<vmem>>, vector<8x256xbf16>
    %c14 = arith.constant 14 : index
    %c0_68 = arith.constant 0 : index
    %c0_69 = arith.constant 0 : index
    %91 = vector.load %arg2[%c14, %c0_68, %c0_69] : memref<27x1x256xbf16, #tpu.memory_space<vmem>>, vector<1x1x256xbf16>
    %92 = vector.shape_cast %91 : vector<1x1x256xbf16> to vector<1x256xbf16>
    %93 = vector.broadcast %92 : vector<1x256xbf16> to vector<8x256xbf16>
    %94 = arith.mulf %90, %93 : vector<8x256xbf16>
    %c112 = arith.constant 112 : index
    %c0_70 = arith.constant 0 : index
    %95 = vector.load %arg13[%c112, %c0_70] : memref<216x256xbf16, #tpu.memory_space<vmem>>, vector<8x256xbf16>
    tpu.vector_store %arg13[%c112, %c0_70], %94 {strides = array<i32>} : memref<216x256xbf16, #tpu.memory_space<vmem>>, vector<8x256xbf16>,
    %c0_71 = arith.constant 0 : index
    %c135 = arith.constant 135 : index
    %96 = vector.load %arg12[%c0_71, %c135] : memref<8x512xbf16, #tpu.memory_space<vmem>>, vector<8x256xbf16>
    %c15 = arith.constant 15 : index
    %c0_72 = arith.constant 0 : index
    %c0_73 = arith.constant 0 : index
    %97 = vector.load %arg2[%c15, %c0_72, %c0_73] : memref<27x1x256xbf16, #tpu.memory_space<vmem>>, vector<1x1x256xbf16>
    %98 = vector.shape_cast %97 : vector<1x1x256xbf16> to vector<1x256xbf16>
    %99 = vector.broadcast %98 : vector<1x256xbf16> to vector<8x256xbf16>
    %100 = arith.mulf %96, %99 : vector<8x256xbf16>
    %c120_74 = arith.constant 120 : index
    %c0_75 = arith.constant 0 : index
    %101 = vector.load %arg13[%c120_74, %c0_75] : memref<216x256xbf16, #tpu.memory_space<vmem>>, vector<8x256xbf16>
    tpu.vector_store %arg13[%c120_74, %c0_75], %100 {strides = array<i32>} : memref<216x256xbf16, #tpu.memory_space<vmem>>, vector<8x256xbf16>,
    %c0_76 = arith.constant 0 : index
    %c136 = arith.constant 136 : index
    %102 = vector.load %arg12[%c0_76, %c136] : memref<8x512xbf16, #tpu.memory_space<vmem>>, vector<8x256xbf16>
    %c16_77 = arith.constant 16 : index
    %c0_78 = arith.constant 0 : index
    %c0_79 = arith.constant 0 : index
    %103 = vector.load %arg2[%c16_77, %c0_78, %c0_79] : memref<27x1x256xbf16, #tpu.memory_space<vmem>>, vector<1x1x256xbf16>
    %104 = vector.shape_cast %103 : vector<1x1x256xbf16> to vector<1x256xbf16>
    %105 = vector.broadcast %104 : vector<1x256xbf16> to vector<8x256xbf16>
    %106 = arith.mulf %102, %105 : vector<8x256xbf16>
    %c128_80 = arith.constant 128 : index
    %c0_81 = arith.constant 0 : index
    %107 = vector.load %arg13[%c128_80, %c0_81] : memref<216x256xbf16, #tpu.memory_space<vmem>>, vector<8x256xbf16>
    tpu.vector_store %arg13[%c128_80, %c0_81], %106 {strides = array<i32>} : memref<216x256xbf16, #tpu.memory_space<vmem>>, vector<8x256xbf16>,
    %c0_82 = arith.constant 0 : index
    %c137 = arith.constant 137 : index
    %108 = vector.load %arg12[%c0_82, %c137] : memref<8x512xbf16, #tpu.memory_space<vmem>>, vector<8x256xbf16>
    %c17 = arith.constant 17 : index
    %c0_83 = arith.constant 0 : index
    %c0_84 = arith.constant 0 : index
    %109 = vector.load %arg2[%c17, %c0_83, %c0_84] : memref<27x1x256xbf16, #tpu.memory_space<vmem>>, vector<1x1x256xbf16>
    %110 = vector.shape_cast %109 : vector<1x1x256xbf16> to vector<1x256xbf16>
    %111 = vector.broadcast %110 : vector<1x256xbf16> to vector<8x256xbf16>
    %112 = arith.mulf %108, %111 : vector<8x256xbf16>
    %c136_85 = arith.constant 136 : index
    %c0_86 = arith.constant 0 : index
    %113 = vector.load %arg13[%c136_85, %c0_86] : memref<216x256xbf16, #tpu.memory_space<vmem>>, vector<8x256xbf16>
    tpu.vector_store %arg13[%c136_85, %c0_86], %112 {strides = array<i32>} : memref<216x256xbf16, #tpu.memory_space<vmem>>, vector<8x256xbf16>,
    %c0_87 = arith.constant 0 : index
    %c183 = arith.constant 183 : index
    %114 = vector.load %arg12[%c0_87, %c183] : memref<8x512xbf16, #tpu.memory_space<vmem>>, vector<8x256xbf16>
    %c18 = arith.constant 18 : index
    %c0_88 = arith.constant 0 : index
    %c0_89 = arith.constant 0 : index
    %115 = vector.load %arg2[%c18, %c0_88, %c0_89] : memref<27x1x256xbf16, #tpu.memory_space<vmem>>, vector<1x1x256xbf16>
    %116 = vector.shape_cast %115 : vector<1x1x256xbf16> to vector<1x256xbf16>
    %117 = vector.broadcast %116 : vector<1x256xbf16> to vector<8x256xbf16>
    %118 = arith.mulf %114, %117 : vector<8x256xbf16>
    %c144 = arith.constant 144 : index
    %c0_90 = arith.constant 0 : index
    %119 = vector.load %arg13[%c144, %c0_90] : memref<216x256xbf16, #tpu.memory_space<vmem>>, vector<8x256xbf16>
    tpu.vector_store %arg13[%c144, %c0_90], %118 {strides = array<i32>} : memref<216x256xbf16, #tpu.memory_space<vmem>>, vector<8x256xbf16>,
    %c0_91 = arith.constant 0 : index
    %c184 = arith.constant 184 : index
    %120 = vector.load %arg12[%c0_91, %c184] : memref<8x512xbf16, #tpu.memory_space<vmem>>, vector<8x256xbf16>
    %c19 = arith.constant 19 : index
    %c0_92 = arith.constant 0 : index
    %c0_93 = arith.constant 0 : index
    %121 = vector.load %arg2[%c19, %c0_92, %c0_93] : memref<27x1x256xbf16, #tpu.memory_space<vmem>>, vector<1x1x256xbf16>
    %122 = vector.shape_cast %121 : vector<1x1x256xbf16> to vector<1x256xbf16>
    %123 = vector.broadcast %122 : vector<1x256xbf16> to vector<8x256xbf16>
    %124 = arith.mulf %120, %123 : vector<8x256xbf16>
    %c152 = arith.constant 152 : index
    %c0_94 = arith.constant 0 : index
    %125 = vector.load %arg13[%c152, %c0_94] : memref<216x256xbf16, #tpu.memory_space<vmem>>, vector<8x256xbf16>
    tpu.vector_store %arg13[%c152, %c0_94], %124 {strides = array<i32>} : memref<216x256xbf16, #tpu.memory_space<vmem>>, vector<8x256xbf16>,
    %c0_95 = arith.constant 0 : index
    %c185 = arith.constant 185 : index
    %126 = vector.load %arg12[%c0_95, %c185] : memref<8x512xbf16, #tpu.memory_space<vmem>>, vector<8x256xbf16>
    %c20 = arith.constant 20 : index
    %c0_96 = arith.constant 0 : index
    %c0_97 = arith.constant 0 : index
    %127 = vector.load %arg2[%c20, %c0_96, %c0_97] : memref<27x1x256xbf16, #tpu.memory_space<vmem>>, vector<1x1x256xbf16>
    %128 = vector.shape_cast %127 : vector<1x1x256xbf16> to vector<1x256xbf16>
    %129 = vector.broadcast %128 : vector<1x256xbf16> to vector<8x256xbf16>
    %130 = arith.mulf %126, %129 : vector<8x256xbf16>
    %c160 = arith.constant 160 : index
    %c0_98 = arith.constant 0 : index
    %131 = vector.load %arg13[%c160, %c0_98] : memref<216x256xbf16, #tpu.memory_space<vmem>>, vector<8x256xbf16>
    tpu.vector_store %arg13[%c160, %c0_98], %130 {strides = array<i32>} : memref<216x256xbf16, #tpu.memory_space<vmem>>, vector<8x256xbf16>,
    %c0_99 = arith.constant 0 : index
    %c191 = arith.constant 191 : index
    %132 = vector.load %arg12[%c0_99, %c191] : memref<8x512xbf16, #tpu.memory_space<vmem>>, vector<8x256xbf16>
    %c21 = arith.constant 21 : index
    %c0_100 = arith.constant 0 : index
    %c0_101 = arith.constant 0 : index
    %133 = vector.load %arg2[%c21, %c0_100, %c0_101] : memref<27x1x256xbf16, #tpu.memory_space<vmem>>, vector<1x1x256xbf16>
    %134 = vector.shape_cast %133 : vector<1x1x256xbf16> to vector<1x256xbf16>
    %135 = vector.broadcast %134 : vector<1x256xbf16> to vector<8x256xbf16>
    %136 = arith.mulf %132, %135 : vector<8x256xbf16>
    %c168 = arith.constant 168 : index
    %c0_102 = arith.constant 0 : index
    %137 = vector.load %arg13[%c168, %c0_102] : memref<216x256xbf16, #tpu.memory_space<vmem>>, vector<8x256xbf16>
    tpu.vector_store %arg13[%c168, %c0_102], %136 {strides = array<i32>} : memref<216x256xbf16, #tpu.memory_space<vmem>>, vector<8x256xbf16>,
    %c0_103 = arith.constant 0 : index
    %c192 = arith.constant 192 : index
    %138 = vector.load %arg12[%c0_103, %c192] : memref<8x512xbf16, #tpu.memory_space<vmem>>, vector<8x256xbf16>
    %c22 = arith.constant 22 : index
    %c0_104 = arith.constant 0 : index
    %c0_105 = arith.constant 0 : index
    %139 = vector.load %arg2[%c22, %c0_104, %c0_105] : memref<27x1x256xbf16, #tpu.memory_space<vmem>>, vector<1x1x256xbf16>
    %140 = vector.shape_cast %139 : vector<1x1x256xbf16> to vector<1x256xbf16>
    %141 = vector.broadcast %140 : vector<1x256xbf16> to vector<8x256xbf16>
    %142 = arith.mulf %138, %141 : vector<8x256xbf16>
    %c176 = arith.constant 176 : index
    %c0_106 = arith.constant 0 : index
    %143 = vector.load %arg13[%c176, %c0_106] : memref<216x256xbf16, #tpu.memory_space<vmem>>, vector<8x256xbf16>
    tpu.vector_store %arg13[%c176, %c0_106], %142 {strides = array<i32>} : memref<216x256xbf16, #tpu.memory_space<vmem>>, vector<8x256xbf16>,
    %c0_107 = arith.constant 0 : index
    %c193 = arith.constant 193 : index
    %144 = vector.load %arg12[%c0_107, %c193] : memref<8x512xbf16, #tpu.memory_space<vmem>>, vector<8x256xbf16>
    %c23 = arith.constant 23 : index
    %c0_108 = arith.constant 0 : index
    %c0_109 = arith.constant 0 : index
    %145 = vector.load %arg2[%c23, %c0_108, %c0_109] : memref<27x1x256xbf16, #tpu.memory_space<vmem>>, vector<1x1x256xbf16>
    %146 = vector.shape_cast %145 : vector<1x1x256xbf16> to vector<1x256xbf16>
    %147 = vector.broadcast %146 : vector<1x256xbf16> to vector<8x256xbf16>
    %148 = arith.mulf %144, %147 : vector<8x256xbf16>
    %c184_110 = arith.constant 184 : index
    %c0_111 = arith.constant 0 : index
    %149 = vector.load %arg13[%c184_110, %c0_111] : memref<216x256xbf16, #tpu.memory_space<vmem>>, vector<8x256xbf16>
    tpu.vector_store %arg13[%c184_110, %c0_111], %148 {strides = array<i32>} : memref<216x256xbf16, #tpu.memory_space<vmem>>, vector<8x256xbf16>,
    %c0_112 = arith.constant 0 : index
    %c199 = arith.constant 199 : index
    %150 = vector.load %arg12[%c0_112, %c199] : memref<8x512xbf16, #tpu.memory_space<vmem>>, vector<8x256xbf16>
    %c24_113 = arith.constant 24 : index
    %c0_114 = arith.constant 0 : index
    %c0_115 = arith.constant 0 : index
    %151 = vector.load %arg2[%c24_113, %c0_114, %c0_115] : memref<27x1x256xbf16, #tpu.memory_space<vmem>>, vector<1x1x256xbf16>
    %152 = vector.shape_cast %151 : vector<1x1x256xbf16> to vector<1x256xbf16>
    %153 = vector.broadcast %152 : vector<1x256xbf16> to vector<8x256xbf16>
    %154 = arith.mulf %150, %153 : vector<8x256xbf16>
    %c192_116 = arith.constant 192 : index
    %c0_117 = arith.constant 0 : index
    %155 = vector.load %arg13[%c192_116, %c0_117] : memref<216x256xbf16, #tpu.memory_space<vmem>>, vector<8x256xbf16>
    tpu.vector_store %arg13[%c192_116, %c0_117], %154 {strides = array<i32>} : memref<216x256xbf16, #tpu.memory_space<vmem>>, vector<8x256xbf16>,
    %c0_118 = arith.constant 0 : index
    %c200 = arith.constant 200 : index
    %156 = vector.load %arg12[%c0_118, %c200] : memref<8x512xbf16, #tpu.memory_space<vmem>>, vector<8x256xbf16>
    %c25 = arith.constant 25 : index
    %c0_119 = arith.constant 0 : index
    %c0_120 = arith.constant 0 : index
    %157 = vector.load %arg2[%c25, %c0_119, %c0_120] : memref<27x1x256xbf16, #tpu.memory_space<vmem>>, vector<1x1x256xbf16>
    %158 = vector.shape_cast %157 : vector<1x1x256xbf16> to vector<1x256xbf16>
    %159 = vector.broadcast %158 : vector<1x256xbf16> to vector<8x256xbf16>
    %160 = arith.mulf %156, %159 : vector<8x256xbf16>
    %c200_121 = arith.constant 200 : index
    %c0_122 = arith.constant 0 : index
    %161 = vector.load %arg13[%c200_121, %c0_122] : memref<216x256xbf16, #tpu.memory_space<vmem>>, vector<8x256xbf16>
    tpu.vector_store %arg13[%c200_121, %c0_122], %160 {strides = array<i32>} : memref<216x256xbf16, #tpu.memory_space<vmem>>, vector<8x256xbf16>,
    %c0_123 = arith.constant 0 : index
    %c201 = arith.constant 201 : index
    %162 = vector.load %arg12[%c0_123, %c201] : memref<8x512xbf16, #tpu.memory_space<vmem>>, vector<8x256xbf16>
    %c26 = arith.constant 26 : index
    %c0_124 = arith.constant 0 : index
    %c0_125 = arith.constant 0 : index
    %163 = vector.load %arg2[%c26, %c0_124, %c0_125] : memref<27x1x256xbf16, #tpu.memory_space<vmem>>, vector<1x1x256xbf16>
    %164 = vector.shape_cast %163 : vector<1x1x256xbf16> to vector<1x256xbf16>
    %165 = vector.broadcast %164 : vector<1x256xbf16> to vector<8x256xbf16>
    %166 = arith.mulf %162, %165 : vector<8x256xbf16>
    %c208 = arith.constant 208 : index
    %c0_126 = arith.constant 0 : index
    %167 = vector.load %arg13[%c208, %c0_126] : memref<216x256xbf16, #tpu.memory_space<vmem>>, vector<8x256xbf16>
    tpu.vector_store %arg13[%c208, %c0_126], %166 {strides = array<i32>} : memref<216x256xbf16, #tpu.memory_space<vmem>>, vector<8x256xbf16>,
    %c0_127 = arith.constant 0 : index
    %c0_128 = arith.constant 0 : index
    %168 = vector.load %arg3[%c0_127, %c0_128] : memref<8x216xbf16, #tpu.memory_space<vmem>>, vector<8x216xbf16>
    %c0_129 = arith.constant 0 : index
    %c0_130 = arith.constant 0 : index
    %169 = vector.load %arg13[%c0_129, %c0_130] : memref<216x256xbf16, #tpu.memory_space<vmem>>, vector<216x256xbf16>
    %cst = arith.constant dense<0.000000e+00> : vector<8x256xf32>
    %170 = tpu.matmul %168, %169, %cst {dimension_numbers = #tpu.dot_dimension_numbers<[1], [0], [0], [1], [0, 0, 1, 1], [], []>} : vector<8x216xbf16>, vector<216x256xbf16>, vector<8x256xf32> -> vector<8x256xf32>
    %cst_131 = arith.constant 0.000000e+00 : f32
    %171 = vector.broadcast %cst_131 : f32 to vector<8x256xf32>
    %172 = arith.maximumf %170, %171 : vector<8x256xf32>
    %cst_132 = arith.constant dense<0.000000e+00> : vector<8xf32>
    %173 = vector.multi_reduction <add>, %172, %cst_132 [1] : vector<8x256xf32> to vector<8xf32>
    %174 = vector.shape_cast %173 : vector<8xf32> to vector<8x1xf32>
    %175 = arith.mulf %172, %172 : vector<8x256xf32>
    %cst_133 = arith.constant dense<0.000000e+00> : vector<8xf32>
    %176 = vector.multi_reduction <add>, %175, %cst_133 [1] : vector<8x256xf32> to vector<8xf32>
    %177 = vector.shape_cast %176 : vector<8xf32> to vector<8x1xf32>
    %c0_134 = arith.constant 0 : index
    %c0_135 = arith.constant 0 : index
    %178 = vector.load %arg4[%c0_134, %c0_135] : memref<8x8xf32, #tpu.memory_space<vmem>>, vector<8x8xf32>
    %cst_136 = arith.constant dense<0.000000e+00> : vector<8x1xf32>
    %179 = tpu.matmul %178, %174, %cst_136 {dimension_numbers = #tpu.dot_dimension_numbers<[1], [0], [0], [1], [0, 0, 1, 1], [], []>} : vector<8x8xf32>, vector<8x1xf32>, vector<8x1xf32> -> vector<8x1xf32>
    %c0_137 = arith.constant 0 : index
    %c0_138 = arith.constant 0 : index
    %180 = vector.load %arg4[%c0_137, %c0_138] : memref<8x8xf32, #tpu.memory_space<vmem>>, vector<8x8xf32>
    %cst_139 = arith.constant dense<0.000000e+00> : vector<8x1xf32>
    %181 = tpu.matmul %180, %177, %cst_139 {dimension_numbers = #tpu.dot_dimension_numbers<[1], [0], [0], [1], [0, 0, 1, 1], [], []>} : vector<8x8xf32>, vector<8x1xf32>, vector<8x1xf32> -> vector<8x1xf32>
    %182 = arith.mulf %179, %179 : vector<8x1xf32>
    %183 = arith.subf %181, %182 : vector<8x1xf32>
    %cst_140 = arith.constant 0.000000e+00 : f32
    %184 = vector.broadcast %cst_140 : f32 to vector<8x1xf32>
    %185 = arith.maximumf %183, %184 : vector<8x1xf32>
    %cst_141 = arith.constant 9.99999974E-6 : f32
    %186 = vector.broadcast %cst_141 : f32 to vector<8x1xf32>
    %187 = arith.addf %185, %186 : vector<8x1xf32>
    %188 = math.rsqrt %187 : vector<8x1xf32>
    %c0_142 = arith.constant 0 : index
    %c0_143 = arith.constant 0 : index
    %189 = vector.load %arg5[%c0_142, %c0_143] : memref<8x1xf32, #tpu.memory_space<vmem>>, vector<8x1xf32>
    %190 = arith.mulf %188, %189 : vector<8x1xf32>
    %c0_144 = arith.constant 0 : index
    %c0_145 = arith.constant 0 : index
    %191 = vector.load %arg6[%c0_144, %c0_145] : memref<8x1xf32, #tpu.memory_space<vmem>>, vector<8x1xf32>
    %192 = arith.mulf %179, %190 : vector<8x1xf32>
    %193 = arith.subf %191, %192 : vector<8x1xf32>
    %194 = vector.broadcast %190 : vector<8x1xf32> to vector<8x256xf32>
    %195 = arith.mulf %172, %194 : vector<8x256xf32>
    %196 = vector.broadcast %193 : vector<8x1xf32> to vector<8x256xf32>
    %197 = arith.addf %195, %196 : vector<8x256xf32>
    %198 = arith.truncf %197 : vector<8x256xf32> to vector<8x256xbf16>
    %c0_146 = arith.constant 0 : index
    %c128_147 = arith.constant 128 : index
    %199 = vector.load %arg12[%c0_146, %c128_147] : memref<8x512xbf16, #tpu.memory_space<vmem>>, vector<8x256xbf16>
    tpu.vector_store %arg12[%c0_146, %c128_147], %198 {strides = array<i32>} : memref<8x512xbf16, #tpu.memory_space<vmem>>, vector<8x256xbf16>,
    %c0_148 = arith.constant 0 : index
    %c55_149 = arith.constant 55 : index
    %200 = vector.load %arg12[%c0_148, %c55_149] : memref<8x512xbf16, #tpu.memory_space<vmem>>, vector<8x256xbf16>
    %c0_150 = arith.constant 0 : index
    %c0_151 = arith.constant 0 : index
    %c0_152 = arith.constant 0 : index
    %201 = vector.load %arg2[%c0_150, %c0_151, %c0_152] : memref<27x1x256xbf16, #tpu.memory_space<vmem>>, vector<1x1x256xbf16>
    %202 = vector.shape_cast %201 : vector<1x1x256xbf16> to vector<1x256xbf16>
    %203 = vector.broadcast %202 : vector<1x256xbf16> to vector<8x256xbf16>
    %204 = arith.mulf %200, %203 : vector<8x256xbf16>
    %c0_153 = arith.constant 0 : index
    %c0_154 = arith.constant 0 : index
    %205 = vector.load %arg13[%c0_153, %c0_154] : memref<216x256xbf16, #tpu.memory_space<vmem>>, vector<8x256xbf16>
    tpu.vector_store %arg13[%c0_153, %c0_154], %204 {strides = array<i32>} : memref<216x256xbf16, #tpu.memory_space<vmem>>, vector<8x256xbf16>,
    %c0_155 = arith.constant 0 : index
    %c56_156 = arith.constant 56 : index
    %206 = vector.load %arg12[%c0_155, %c56_156] : memref<8x512xbf16, #tpu.memory_space<vmem>>, vector<8x256xbf16>
    %c1_157 = arith.constant 1 : index
    %c0_158 = arith.constant 0 : index
    %c0_159 = arith.constant 0 : index
    %207 = vector.load %arg2[%c1_157, %c0_158, %c0_159] : memref<27x1x256xbf16, #tpu.memory_space<vmem>>, vector<1x1x256xbf16>
    %208 = vector.shape_cast %207 : vector<1x1x256xbf16> to vector<1x256xbf16>
    %209 = vector.broadcast %208 : vector<1x256xbf16> to vector<8x256xbf16>
    %210 = arith.mulf %206, %209 : vector<8x256xbf16>
    %c8_160 = arith.constant 8 : index
    %c0_161 = arith.constant 0 : index
    %211 = vector.load %arg13[%c8_160, %c0_161] : memref<216x256xbf16, #tpu.memory_space<vmem>>, vector<8x256xbf16>
    tpu.vector_store %arg13[%c8_160, %c0_161], %210 {strides = array<i32>} : memref<216x256xbf16, #tpu.memory_space<vmem>>, vector<8x256xbf16>,
    %c0_162 = arith.constant 0 : index
    %c57_163 = arith.constant 57 : index
    %212 = vector.load %arg12[%c0_162, %c57_163] : memref<8x512xbf16, #tpu.memory_space<vmem>>, vector<8x256xbf16>
    %c2_164 = arith.constant 2 : index
    %c0_165 = arith.constant 0 : index
    %c0_166 = arith.constant 0 : index
    %213 = vector.load %arg2[%c2_164, %c0_165, %c0_166] : memref<27x1x256xbf16, #tpu.memory_space<vmem>>, vector<1x1x256xbf16>
    %214 = vector.shape_cast %213 : vector<1x1x256xbf16> to vector<1x256xbf16>
    %215 = vector.broadcast %214 : vector<1x256xbf16> to vector<8x256xbf16>
    %216 = arith.mulf %212, %215 : vector<8x256xbf16>
    %c16_167 = arith.constant 16 : index
    %c0_168 = arith.constant 0 : index
    %217 = vector.load %arg13[%c16_167, %c0_168] : memref<216x256xbf16, #tpu.memory_space<vmem>>, vector<8x256xbf16>
    tpu.vector_store %arg13[%c16_167, %c0_168], %216 {strides = array<i32>} : memref<216x256xbf16, #tpu.memory_space<vmem>>, vector<8x256xbf16>,
    %c0_169 = arith.constant 0 : index
    %c63_170 = arith.constant 63 : index
    %218 = vector.load %arg12[%c0_169, %c63_170] : memref<8x512xbf16, #tpu.memory_space<vmem>>, vector<8x256xbf16>
    %c3_171 = arith.constant 3 : index
    %c0_172 = arith.constant 0 : index
    %c0_173 = arith.constant 0 : index
    %219 = vector.load %arg2[%c3_171, %c0_172, %c0_173] : memref<27x1x256xbf16, #tpu.memory_space<vmem>>, vector<1x1x256xbf16>
    %220 = vector.shape_cast %219 : vector<1x1x256xbf16> to vector<1x256xbf16>
    %221 = vector.broadcast %220 : vector<1x256xbf16> to vector<8x256xbf16>
    %222 = arith.mulf %218, %221 : vector<8x256xbf16>
    %c24_174 = arith.constant 24 : index
    %c0_175 = arith.constant 0 : index
    %223 = vector.load %arg13[%c24_174, %c0_175] : memref<216x256xbf16, #tpu.memory_space<vmem>>, vector<8x256xbf16>
    tpu.vector_store %arg13[%c24_174, %c0_175], %222 {strides = array<i32>} : memref<216x256xbf16, #tpu.memory_space<vmem>>, vector<8x256xbf16>,
    %c0_176 = arith.constant 0 : index
    %c64_177 = arith.constant 64 : index
    %224 = vector.load %arg12[%c0_176, %c64_177] : memref<8x512xbf16, #tpu.memory_space<vmem>>, vector<8x256xbf16>
    %c4_178 = arith.constant 4 : index
    %c0_179 = arith.constant 0 : index
    %c0_180 = arith.constant 0 : index
    %225 = vector.load %arg2[%c4_178, %c0_179, %c0_180] : memref<27x1x256xbf16, #tpu.memory_space<vmem>>, vector<1x1x256xbf16>
    %226 = vector.shape_cast %225 : vector<1x1x256xbf16> to vector<1x256xbf16>
    %227 = vector.broadcast %226 : vector<1x256xbf16> to vector<8x256xbf16>
    %228 = arith.mulf %224, %227 : vector<8x256xbf16>
    %c32_181 = arith.constant 32 : index
    %c0_182 = arith.constant 0 : index
    %229 = vector.load %arg13[%c32_181, %c0_182] : memref<216x256xbf16, #tpu.memory_space<vmem>>, vector<8x256xbf16>
    tpu.vector_store %arg13[%c32_181, %c0_182], %228 {strides = array<i32>} : memref<216x256xbf16, #tpu.memory_space<vmem>>, vector<8x256xbf16>,
    %c0_183 = arith.constant 0 : index
    %c65_184 = arith.constant 65 : index
    %230 = vector.load %arg12[%c0_183, %c65_184] : memref<8x512xbf16, #tpu.memory_space<vmem>>, vector<8x256xbf16>
    %c5_185 = arith.constant 5 : index
    %c0_186 = arith.constant 0 : index
    %c0_187 = arith.constant 0 : index
    %231 = vector.load %arg2[%c5_185, %c0_186, %c0_187] : memref<27x1x256xbf16, #tpu.memory_space<vmem>>, vector<1x1x256xbf16>
    %232 = vector.shape_cast %231 : vector<1x1x256xbf16> to vector<1x256xbf16>
    %233 = vector.broadcast %232 : vector<1x256xbf16> to vector<8x256xbf16>
    %234 = arith.mulf %230, %233 : vector<8x256xbf16>
    %c40_188 = arith.constant 40 : index
    %c0_189 = arith.constant 0 : index
    %235 = vector.load %arg13[%c40_188, %c0_189] : memref<216x256xbf16, #tpu.memory_space<vmem>>, vector<8x256xbf16>
    tpu.vector_store %arg13[%c40_188, %c0_189], %234 {strides = array<i32>} : memref<216x256xbf16, #tpu.memory_space<vmem>>, vector<8x256xbf16>,
    %c0_190 = arith.constant 0 : index
    %c71_191 = arith.constant 71 : index
    %236 = vector.load %arg12[%c0_190, %c71_191] : memref<8x512xbf16, #tpu.memory_space<vmem>>, vector<8x256xbf16>
    %c6_192 = arith.constant 6 : index
    %c0_193 = arith.constant 0 : index
    %c0_194 = arith.constant 0 : index
    %237 = vector.load %arg2[%c6_192, %c0_193, %c0_194] : memref<27x1x256xbf16, #tpu.memory_space<vmem>>, vector<1x1x256xbf16>
    %238 = vector.shape_cast %237 : vector<1x1x256xbf16> to vector<1x256xbf16>
    %239 = vector.broadcast %238 : vector<1x256xbf16> to vector<8x256xbf16>
    %240 = arith.mulf %236, %239 : vector<8x256xbf16>
    %c48_195 = arith.constant 48 : index
    %c0_196 = arith.constant 0 : index
    %241 = vector.load %arg13[%c48_195, %c0_196] : memref<216x256xbf16, #tpu.memory_space<vmem>>, vector<8x256xbf16>
    tpu.vector_store %arg13[%c48_195, %c0_196], %240 {strides = array<i32>} : memref<216x256xbf16, #tpu.memory_space<vmem>>, vector<8x256xbf16>,
    %c0_197 = arith.constant 0 : index
    %c72_198 = arith.constant 72 : index
    %242 = vector.load %arg12[%c0_197, %c72_198] : memref<8x512xbf16, #tpu.memory_space<vmem>>, vector<8x256xbf16>
    %c7_199 = arith.constant 7 : index
    %c0_200 = arith.constant 0 : index
    %c0_201 = arith.constant 0 : index
    %243 = vector.load %arg2[%c7_199, %c0_200, %c0_201] : memref<27x1x256xbf16, #tpu.memory_space<vmem>>, vector<1x1x256xbf16>
    %244 = vector.shape_cast %243 : vector<1x1x256xbf16> to vector<1x256xbf16>
    %245 = vector.broadcast %244 : vector<1x256xbf16> to vector<8x256xbf16>
    %246 = arith.mulf %242, %245 : vector<8x256xbf16>
    %c56_202 = arith.constant 56 : index
    %c0_203 = arith.constant 0 : index
    %247 = vector.load %arg13[%c56_202, %c0_203] : memref<216x256xbf16, #tpu.memory_space<vmem>>, vector<8x256xbf16>
    tpu.vector_store %arg13[%c56_202, %c0_203], %246 {strides = array<i32>} : memref<216x256xbf16, #tpu.memory_space<vmem>>, vector<8x256xbf16>,
    %c0_204 = arith.constant 0 : index
    %c73_205 = arith.constant 73 : index
    %248 = vector.load %arg12[%c0_204, %c73_205] : memref<8x512xbf16, #tpu.memory_space<vmem>>, vector<8x256xbf16>
    %c8_206 = arith.constant 8 : index
    %c0_207 = arith.constant 0 : index
    %c0_208 = arith.constant 0 : index
    %249 = vector.load %arg2[%c8_206, %c0_207, %c0_208] : memref<27x1x256xbf16, #tpu.memory_space<vmem>>, vector<1x1x256xbf16>
    %250 = vector.shape_cast %249 : vector<1x1x256xbf16> to vector<1x256xbf16>
    %251 = vector.broadcast %250 : vector<1x256xbf16> to vector<8x256xbf16>
    %252 = arith.mulf %248, %251 : vector<8x256xbf16>
    %c64_209 = arith.constant 64 : index
    %c0_210 = arith.constant 0 : index
    %253 = vector.load %arg13[%c64_209, %c0_210] : memref<216x256xbf16, #tpu.memory_space<vmem>>, vector<8x256xbf16>
    tpu.vector_store %arg13[%c64_209, %c0_210], %252 {strides = array<i32>} : memref<216x256xbf16, #tpu.memory_space<vmem>>, vector<8x256xbf16>,
    %c0_211 = arith.constant 0 : index
    %c119_212 = arith.constant 119 : index
    %254 = vector.load %arg12[%c0_211, %c119_212] : memref<8x512xbf16, #tpu.memory_space<vmem>>, vector<8x256xbf16>
    %c9_213 = arith.constant 9 : index
    %c0_214 = arith.constant 0 : index
    %c0_215 = arith.constant 0 : index
    %255 = vector.load %arg2[%c9_213, %c0_214, %c0_215] : memref<27x1x256xbf16, #tpu.memory_space<vmem>>, vector<1x1x256xbf16>
    %256 = vector.shape_cast %255 : vector<1x1x256xbf16> to vector<1x256xbf16>
    %257 = vector.broadcast %256 : vector<1x256xbf16> to vector<8x256xbf16>
    %258 = arith.mulf %254, %257 : vector<8x256xbf16>
    %c72_216 = arith.constant 72 : index
    %c0_217 = arith.constant 0 : index
    %259 = vector.load %arg13[%c72_216, %c0_217] : memref<216x256xbf16, #tpu.memory_space<vmem>>, vector<8x256xbf16>
    tpu.vector_store %arg13[%c72_216, %c0_217], %258 {strides = array<i32>} : memref<216x256xbf16, #tpu.memory_space<vmem>>, vector<8x256xbf16>,
    %c0_218 = arith.constant 0 : index
    %c120_219 = arith.constant 120 : index
    %260 = vector.load %arg12[%c0_218, %c120_219] : memref<8x512xbf16, #tpu.memory_space<vmem>>, vector<8x256xbf16>
    %c10_220 = arith.constant 10 : index
    %c0_221 = arith.constant 0 : index
    %c0_222 = arith.constant 0 : index
    %261 = vector.load %arg2[%c10_220, %c0_221, %c0_222] : memref<27x1x256xbf16, #tpu.memory_space<vmem>>, vector<1x1x256xbf16>
    %262 = vector.shape_cast %261 : vector<1x1x256xbf16> to vector<1x256xbf16>
    %263 = vector.broadcast %262 : vector<1x256xbf16> to vector<8x256xbf16>
    %264 = arith.mulf %260, %263 : vector<8x256xbf16>
    %c80_223 = arith.constant 80 : index
    %c0_224 = arith.constant 0 : index
    %265 = vector.load %arg13[%c80_223, %c0_224] : memref<216x256xbf16, #tpu.memory_space<vmem>>, vector<8x256xbf16>
    tpu.vector_store %arg13[%c80_223, %c0_224], %264 {strides = array<i32>} : memref<216x256xbf16, #tpu.memory_space<vmem>>, vector<8x256xbf16>,
    %c0_225 = arith.constant 0 : index
    %c121_226 = arith.constant 121 : index
    %266 = vector.load %arg12[%c0_225, %c121_226] : memref<8x512xbf16, #tpu.memory_space<vmem>>, vector<8x256xbf16>
    %c11_227 = arith.constant 11 : index
    %c0_228 = arith.constant 0 : index
    %c0_229 = arith.constant 0 : index
    %267 = vector.load %arg2[%c11_227, %c0_228, %c0_229] : memref<27x1x256xbf16, #tpu.memory_space<vmem>>, vector<1x1x256xbf16>
    %268 = vector.shape_cast %267 : vector<1x1x256xbf16> to vector<1x256xbf16>
    %269 = vector.broadcast %268 : vector<1x256xbf16> to vector<8x256xbf16>
    %270 = arith.mulf %266, %269 : vector<8x256xbf16>
    %c88_230 = arith.constant 88 : index
    %c0_231 = arith.constant 0 : index
    %271 = vector.load %arg13[%c88_230, %c0_231] : memref<216x256xbf16, #tpu.memory_space<vmem>>, vector<8x256xbf16>
    tpu.vector_store %arg13[%c88_230, %c0_231], %270 {strides = array<i32>} : memref<216x256xbf16, #tpu.memory_space<vmem>>, vector<8x256xbf16>,
    %c0_232 = arith.constant 0 : index
    %c127_233 = arith.constant 127 : index
    %272 = vector.load %arg12[%c0_232, %c127_233] : memref<8x512xbf16, #tpu.memory_space<vmem>>, vector<8x256xbf16>
    %c12_234 = arith.constant 12 : index
    %c0_235 = arith.constant 0 : index
    %c0_236 = arith.constant 0 : index
    %273 = vector.load %arg2[%c12_234, %c0_235, %c0_236] : memref<27x1x256xbf16, #tpu.memory_space<vmem>>, vector<1x1x256xbf16>
    %274 = vector.shape_cast %273 : vector<1x1x256xbf16> to vector<1x256xbf16>
    %275 = vector.broadcast %274 : vector<1x256xbf16> to vector<8x256xbf16>
    %276 = arith.mulf %272, %275 : vector<8x256xbf16>
    %c96_237 = arith.constant 96 : index
    %c0_238 = arith.constant 0 : index
    %277 = vector.load %arg13[%c96_237, %c0_238] : memref<216x256xbf16, #tpu.memory_space<vmem>>, vector<8x256xbf16>
    tpu.vector_store %arg13[%c96_237, %c0_238], %276 {strides = array<i32>} : memref<216x256xbf16, #tpu.memory_space<vmem>>, vector<8x256xbf16>,
    %c0_239 = arith.constant 0 : index
    %c128_240 = arith.constant 128 : index
    %278 = vector.load %arg12[%c0_239, %c128_240] : memref<8x512xbf16, #tpu.memory_space<vmem>>, vector<8x256xbf16>
    %c13_241 = arith.constant 13 : index
    %c0_242 = arith.constant 0 : index
    %c0_243 = arith.constant 0 : index
    %279 = vector.load %arg2[%c13_241, %c0_242, %c0_243] : memref<27x1x256xbf16, #tpu.memory_space<vmem>>, vector<1x1x256xbf16>
    %280 = vector.shape_cast %279 : vector<1x1x256xbf16> to vector<1x256xbf16>
    %281 = vector.broadcast %280 : vector<1x256xbf16> to vector<8x256xbf16>
    %282 = arith.mulf %278, %281 : vector<8x256xbf16>
    %c104_244 = arith.constant 104 : index
    %c0_245 = arith.constant 0 : index
    %283 = vector.load %arg13[%c104_244, %c0_245] : memref<216x256xbf16, #tpu.memory_space<vmem>>, vector<8x256xbf16>
    tpu.vector_store %arg13[%c104_244, %c0_245], %282 {strides = array<i32>} : memref<216x256xbf16, #tpu.memory_space<vmem>>, vector<8x256xbf16>,
    %c0_246 = arith.constant 0 : index
    %c129_247 = arith.constant 129 : index
    %284 = vector.load %arg12[%c0_246, %c129_247] : memref<8x512xbf16, #tpu.memory_space<vmem>>, vector<8x256xbf16>
    %c14_248 = arith.constant 14 : index
    %c0_249 = arith.constant 0 : index
    %c0_250 = arith.constant 0 : index
    %285 = vector.load %arg2[%c14_248, %c0_249, %c0_250] : memref<27x1x256xbf16, #tpu.memory_space<vmem>>, vector<1x1x256xbf16>
    %286 = vector.shape_cast %285 : vector<1x1x256xbf16> to vector<1x256xbf16>
    %287 = vector.broadcast %286 : vector<1x256xbf16> to vector<8x256xbf16>
    %288 = arith.mulf %284, %287 : vector<8x256xbf16>
    %c112_251 = arith.constant 112 : index
    %c0_252 = arith.constant 0 : index
    %289 = vector.load %arg13[%c112_251, %c0_252] : memref<216x256xbf16, #tpu.memory_space<vmem>>, vector<8x256xbf16>
    tpu.vector_store %arg13[%c112_251, %c0_252], %288 {strides = array<i32>} : memref<216x256xbf16, #tpu.memory_space<vmem>>, vector<8x256xbf16>,
    %c0_253 = arith.constant 0 : index
    %c135_254 = arith.constant 135 : index
    %290 = vector.load %arg12[%c0_253, %c135_254] : memref<8x512xbf16, #tpu.memory_space<vmem>>, vector<8x256xbf16>
    %c15_255 = arith.constant 15 : index
    %c0_256 = arith.constant 0 : index
    %c0_257 = arith.constant 0 : index
    %291 = vector.load %arg2[%c15_255, %c0_256, %c0_257] : memref<27x1x256xbf16, #tpu.memory_space<vmem>>, vector<1x1x256xbf16>
    %292 = vector.shape_cast %291 : vector<1x1x256xbf16> to vector<1x256xbf16>
    %293 = vector.broadcast %292 : vector<1x256xbf16> to vector<8x256xbf16>
    %294 = arith.mulf %290, %293 : vector<8x256xbf16>
    %c120_258 = arith.constant 120 : index
    %c0_259 = arith.constant 0 : index
    %295 = vector.load %arg13[%c120_258, %c0_259] : memref<216x256xbf16, #tpu.memory_space<vmem>>, vector<8x256xbf16>
    tpu.vector_store %arg13[%c120_258, %c0_259], %294 {strides = array<i32>} : memref<216x256xbf16, #tpu.memory_space<vmem>>, vector<8x256xbf16>,
    %c0_260 = arith.constant 0 : index
    %c136_261 = arith.constant 136 : index
    %296 = vector.load %arg12[%c0_260, %c136_261] : memref<8x512xbf16, #tpu.memory_space<vmem>>, vector<8x256xbf16>
    %c16_262 = arith.constant 16 : index
    %c0_263 = arith.constant 0 : index
    %c0_264 = arith.constant 0 : index
    %297 = vector.load %arg2[%c16_262, %c0_263, %c0_264] : memref<27x1x256xbf16, #tpu.memory_space<vmem>>, vector<1x1x256xbf16>
    %298 = vector.shape_cast %297 : vector<1x1x256xbf16> to vector<1x256xbf16>
    %299 = vector.broadcast %298 : vector<1x256xbf16> to vector<8x256xbf16>
    %300 = arith.mulf %296, %299 : vector<8x256xbf16>
    %c128_265 = arith.constant 128 : index
    %c0_266 = arith.constant 0 : index
    %301 = vector.load %arg13[%c128_265, %c0_266] : memref<216x256xbf16, #tpu.memory_space<vmem>>, vector<8x256xbf16>
    tpu.vector_store %arg13[%c128_265, %c0_266], %300 {strides = array<i32>} : memref<216x256xbf16, #tpu.memory_space<vmem>>, vector<8x256xbf16>,
    %c0_267 = arith.constant 0 : index
    %c137_268 = arith.constant 137 : index
    %302 = vector.load %arg12[%c0_267, %c137_268] : memref<8x512xbf16, #tpu.memory_space<vmem>>, vector<8x256xbf16>
    %c17_269 = arith.constant 17 : index
    %c0_270 = arith.constant 0 : index
    %c0_271 = arith.constant 0 : index
    %303 = vector.load %arg2[%c17_269, %c0_270, %c0_271] : memref<27x1x256xbf16, #tpu.memory_space<vmem>>, vector<1x1x256xbf16>
    %304 = vector.shape_cast %303 : vector<1x1x256xbf16> to vector<1x256xbf16>
    %305 = vector.broadcast %304 : vector<1x256xbf16> to vector<8x256xbf16>
    %306 = arith.mulf %302, %305 : vector<8x256xbf16>
    %c136_272 = arith.constant 136 : index
    %c0_273 = arith.constant 0 : index
    %307 = vector.load %arg13[%c136_272, %c0_273] : memref<216x256xbf16, #tpu.memory_space<vmem>>, vector<8x256xbf16>
    tpu.vector_store %arg13[%c136_272, %c0_273], %306 {strides = array<i32>} : memref<216x256xbf16, #tpu.memory_space<vmem>>, vector<8x256xbf16>,
    %c0_274 = arith.constant 0 : index
    %c183_275 = arith.constant 183 : index
    %308 = vector.load %arg12[%c0_274, %c183_275] : memref<8x512xbf16, #tpu.memory_space<vmem>>, vector<8x256xbf16>
    %c18_276 = arith.constant 18 : index
    %c0_277 = arith.constant 0 : index
    %c0_278 = arith.constant 0 : index
    %309 = vector.load %arg2[%c18_276, %c0_277, %c0_278] : memref<27x1x256xbf16, #tpu.memory_space<vmem>>, vector<1x1x256xbf16>
    %310 = vector.shape_cast %309 : vector<1x1x256xbf16> to vector<1x256xbf16>
    %311 = vector.broadcast %310 : vector<1x256xbf16> to vector<8x256xbf16>
    %312 = arith.mulf %308, %311 : vector<8x256xbf16>
    %c144_279 = arith.constant 144 : index
    %c0_280 = arith.constant 0 : index
    %313 = vector.load %arg13[%c144_279, %c0_280] : memref<216x256xbf16, #tpu.memory_space<vmem>>, vector<8x256xbf16>
    tpu.vector_store %arg13[%c144_279, %c0_280], %312 {strides = array<i32>} : memref<216x256xbf16, #tpu.memory_space<vmem>>, vector<8x256xbf16>,
    %c0_281 = arith.constant 0 : index
    %c184_282 = arith.constant 184 : index
    %314 = vector.load %arg12[%c0_281, %c184_282] : memref<8x512xbf16, #tpu.memory_space<vmem>>, vector<8x256xbf16>
    %c19_283 = arith.constant 19 : index
    %c0_284 = arith.constant 0 : index
    %c0_285 = arith.constant 0 : index
    %315 = vector.load %arg2[%c19_283, %c0_284, %c0_285] : memref<27x1x256xbf16, #tpu.memory_space<vmem>>, vector<1x1x256xbf16>
    %316 = vector.shape_cast %315 : vector<1x1x256xbf16> to vector<1x256xbf16>
    %317 = vector.broadcast %316 : vector<1x256xbf16> to vector<8x256xbf16>
    %318 = arith.mulf %314, %317 : vector<8x256xbf16>
    %c152_286 = arith.constant 152 : index
    %c0_287 = arith.constant 0 : index
    %319 = vector.load %arg13[%c152_286, %c0_287] : memref<216x256xbf16, #tpu.memory_space<vmem>>, vector<8x256xbf16>
    tpu.vector_store %arg13[%c152_286, %c0_287], %318 {strides = array<i32>} : memref<216x256xbf16, #tpu.memory_space<vmem>>, vector<8x256xbf16>,
    %c0_288 = arith.constant 0 : index
    %c185_289 = arith.constant 185 : index
    %320 = vector.load %arg12[%c0_288, %c185_289] : memref<8x512xbf16, #tpu.memory_space<vmem>>, vector<8x256xbf16>
    %c20_290 = arith.constant 20 : index
    %c0_291 = arith.constant 0 : index
    %c0_292 = arith.constant 0 : index
    %321 = vector.load %arg2[%c20_290, %c0_291, %c0_292] : memref<27x1x256xbf16, #tpu.memory_space<vmem>>, vector<1x1x256xbf16>
    %322 = vector.shape_cast %321 : vector<1x1x256xbf16> to vector<1x256xbf16>
    %323 = vector.broadcast %322 : vector<1x256xbf16> to vector<8x256xbf16>
    %324 = arith.mulf %320, %323 : vector<8x256xbf16>
    %c160_293 = arith.constant 160 : index
    %c0_294 = arith.constant 0 : index
    %325 = vector.load %arg13[%c160_293, %c0_294] : memref<216x256xbf16, #tpu.memory_space<vmem>>, vector<8x256xbf16>
    tpu.vector_store %arg13[%c160_293, %c0_294], %324 {strides = array<i32>} : memref<216x256xbf16, #tpu.memory_space<vmem>>, vector<8x256xbf16>,
    %c0_295 = arith.constant 0 : index
    %c191_296 = arith.constant 191 : index
    %326 = vector.load %arg12[%c0_295, %c191_296] : memref<8x512xbf16, #tpu.memory_space<vmem>>, vector<8x256xbf16>
    %c21_297 = arith.constant 21 : index
    %c0_298 = arith.constant 0 : index
    %c0_299 = arith.constant 0 : index
    %327 = vector.load %arg2[%c21_297, %c0_298, %c0_299] : memref<27x1x256xbf16, #tpu.memory_space<vmem>>, vector<1x1x256xbf16>
    %328 = vector.shape_cast %327 : vector<1x1x256xbf16> to vector<1x256xbf16>
    %329 = vector.broadcast %328 : vector<1x256xbf16> to vector<8x256xbf16>
    %330 = arith.mulf %326, %329 : vector<8x256xbf16>
    %c168_300 = arith.constant 168 : index
    %c0_301 = arith.constant 0 : index
    %331 = vector.load %arg13[%c168_300, %c0_301] : memref<216x256xbf16, #tpu.memory_space<vmem>>, vector<8x256xbf16>
    tpu.vector_store %arg13[%c168_300, %c0_301], %330 {strides = array<i32>} : memref<216x256xbf16, #tpu.memory_space<vmem>>, vector<8x256xbf16>,
    %c0_302 = arith.constant 0 : index
    %c192_303 = arith.constant 192 : index
    %332 = vector.load %arg12[%c0_302, %c192_303] : memref<8x512xbf16, #tpu.memory_space<vmem>>, vector<8x256xbf16>
    %c22_304 = arith.constant 22 : index
    %c0_305 = arith.constant 0 : index
    %c0_306 = arith.constant 0 : index
    %333 = vector.load %arg2[%c22_304, %c0_305, %c0_306] : memref<27x1x256xbf16, #tpu.memory_space<vmem>>, vector<1x1x256xbf16>
    %334 = vector.shape_cast %333 : vector<1x1x256xbf16> to vector<1x256xbf16>
    %335 = vector.broadcast %334 : vector<1x256xbf16> to vector<8x256xbf16>
    %336 = arith.mulf %332, %335 : vector<8x256xbf16>
    %c176_307 = arith.constant 176 : index
    %c0_308 = arith.constant 0 : index
    %337 = vector.load %arg13[%c176_307, %c0_308] : memref<216x256xbf16, #tpu.memory_space<vmem>>, vector<8x256xbf16>
    tpu.vector_store %arg13[%c176_307, %c0_308], %336 {strides = array<i32>} : memref<216x256xbf16, #tpu.memory_space<vmem>>, vector<8x256xbf16>,
    %c0_309 = arith.constant 0 : index
    %c193_310 = arith.constant 193 : index
    %338 = vector.load %arg12[%c0_309, %c193_310] : memref<8x512xbf16, #tpu.memory_space<vmem>>, vector<8x256xbf16>
    %c23_311 = arith.constant 23 : index
    %c0_312 = arith.constant 0 : index
    %c0_313 = arith.constant 0 : index
    %339 = vector.load %arg2[%c23_311, %c0_312, %c0_313] : memref<27x1x256xbf16, #tpu.memory_space<vmem>>, vector<1x1x256xbf16>
    %340 = vector.shape_cast %339 : vector<1x1x256xbf16> to vector<1x256xbf16>
    %341 = vector.broadcast %340 : vector<1x256xbf16> to vector<8x256xbf16>
    %342 = arith.mulf %338, %341 : vector<8x256xbf16>
    %c184_314 = arith.constant 184 : index
    %c0_315 = arith.constant 0 : index
    %343 = vector.load %arg13[%c184_314, %c0_315] : memref<216x256xbf16, #tpu.memory_space<vmem>>, vector<8x256xbf16>
    tpu.vector_store %arg13[%c184_314, %c0_315], %342 {strides = array<i32>} : memref<216x256xbf16, #tpu.memory_space<vmem>>, vector<8x256xbf16>,
    %c0_316 = arith.constant 0 : index
    %c199_317 = arith.constant 199 : index
    %344 = vector.load %arg12[%c0_316, %c199_317] : memref<8x512xbf16, #tpu.memory_space<vmem>>, vector<8x256xbf16>
    %c24_318 = arith.constant 24 : index
    %c0_319 = arith.constant 0 : index
    %c0_320 = arith.constant 0 : index
    %345 = vector.load %arg2[%c24_318, %c0_319, %c0_320] : memref<27x1x256xbf16, #tpu.memory_space<vmem>>, vector<1x1x256xbf16>
    %346 = vector.shape_cast %345 : vector<1x1x256xbf16> to vector<1x256xbf16>
    %347 = vector.broadcast %346 : vector<1x256xbf16> to vector<8x256xbf16>
    %348 = arith.mulf %344, %347 : vector<8x256xbf16>
    %c192_321 = arith.constant 192 : index
    %c0_322 = arith.constant 0 : index
    %349 = vector.load %arg13[%c192_321, %c0_322] : memref<216x256xbf16, #tpu.memory_space<vmem>>, vector<8x256xbf16>
    tpu.vector_store %arg13[%c192_321, %c0_322], %348 {strides = array<i32>} : memref<216x256xbf16, #tpu.memory_space<vmem>>, vector<8x256xbf16>,
    %c0_323 = arith.constant 0 : index
    %c200_324 = arith.constant 200 : index
    %350 = vector.load %arg12[%c0_323, %c200_324] : memref<8x512xbf16, #tpu.memory_space<vmem>>, vector<8x256xbf16>
    %c25_325 = arith.constant 25 : index
    %c0_326 = arith.constant 0 : index
    %c0_327 = arith.constant 0 : index
    %351 = vector.load %arg2[%c25_325, %c0_326, %c0_327] : memref<27x1x256xbf16, #tpu.memory_space<vmem>>, vector<1x1x256xbf16>
    %352 = vector.shape_cast %351 : vector<1x1x256xbf16> to vector<1x256xbf16>
    %353 = vector.broadcast %352 : vector<1x256xbf16> to vector<8x256xbf16>
    %354 = arith.mulf %350, %353 : vector<8x256xbf16>
    %c200_328 = arith.constant 200 : index
    %c0_329 = arith.constant 0 : index
    %355 = vector.load %arg13[%c200_328, %c0_329] : memref<216x256xbf16, #tpu.memory_space<vmem>>, vector<8x256xbf16>
    tpu.vector_store %arg13[%c200_328, %c0_329], %354 {strides = array<i32>} : memref<216x256xbf16, #tpu.memory_space<vmem>>, vector<8x256xbf16>,
    %c0_330 = arith.constant 0 : index
    %c201_331 = arith.constant 201 : index
    %356 = vector.load %arg12[%c0_330, %c201_331] : memref<8x512xbf16, #tpu.memory_space<vmem>>, vector<8x256xbf16>
    %c26_332 = arith.constant 26 : index
    %c0_333 = arith.constant 0 : index
    %c0_334 = arith.constant 0 : index
    %357 = vector.load %arg2[%c26_332, %c0_333, %c0_334] : memref<27x1x256xbf16, #tpu.memory_space<vmem>>, vector<1x1x256xbf16>
    %358 = vector.shape_cast %357 : vector<1x1x256xbf16> to vector<1x256xbf16>
    %359 = vector.broadcast %358 : vector<1x256xbf16> to vector<8x256xbf16>
    %360 = arith.mulf %356, %359 : vector<8x256xbf16>
    %c208_335 = arith.constant 208 : index
    %c0_336 = arith.constant 0 : index
    %361 = vector.load %arg13[%c208_335, %c0_336] : memref<216x256xbf16, #tpu.memory_space<vmem>>, vector<8x256xbf16>
    tpu.vector_store %arg13[%c208_335, %c0_336], %360 {strides = array<i32>} : memref<216x256xbf16, #tpu.memory_space<vmem>>, vector<8x256xbf16>,
    %c0_337 = arith.constant 0 : index
    %c0_338 = arith.constant 0 : index
    %362 = vector.load %arg7[%c0_337, %c0_338] : memref<16x216xbf16, #tpu.memory_space<vmem>>, vector<16x216xbf16>
    %c0_339 = arith.constant 0 : index
    %c0_340 = arith.constant 0 : index
    %363 = vector.load %arg13[%c0_339, %c0_340] : memref<216x256xbf16, #tpu.memory_space<vmem>>, vector<216x256xbf16>
    %cst_341 = arith.constant dense<0.000000e+00> : vector<16x256xf32>
    %364 = tpu.matmul %362, %363, %cst_341 {dimension_numbers = #tpu.dot_dimension_numbers<[1], [0], [0], [1], [0, 0, 1, 1], [], []>} : vector<16x216xbf16>, vector<216x256xbf16>, vector<16x256xf32> -> vector<16x256xf32>
    %cst_342 = arith.constant 0.000000e+00 : f32
    %365 = vector.broadcast %cst_342 : f32 to vector<16x256xf32>
    %366 = arith.maximumf %364, %365 : vector<16x256xf32>
    %cst_343 = arith.constant dense<0.000000e+00> : vector<16xf32>
    %367 = vector.multi_reduction <add>, %366, %cst_343 [1] : vector<16x256xf32> to vector<16xf32>
    %368 = vector.shape_cast %367 : vector<16xf32> to vector<16x1xf32>
    %369 = arith.mulf %366, %366 : vector<16x256xf32>
    %cst_344 = arith.constant dense<0.000000e+00> : vector<16xf32>
    %370 = vector.multi_reduction <add>, %369, %cst_344 [1] : vector<16x256xf32> to vector<16xf32>
    %371 = vector.shape_cast %370 : vector<16xf32> to vector<16x1xf32>
    %c0_345 = arith.constant 0 : index
    %c0_346 = arith.constant 0 : index
    %372 = vector.load %arg8[%c0_345, %c0_346] : memref<16x16xf32, #tpu.memory_space<vmem>>, vector<16x16xf32>
    %cst_347 = arith.constant dense<0.000000e+00> : vector<16x1xf32>
    %373 = tpu.matmul %372, %368, %cst_347 {dimension_numbers = #tpu.dot_dimension_numbers<[1], [0], [0], [1], [0, 0, 1, 1], [], []>} : vector<16x16xf32>, vector<16x1xf32>, vector<16x1xf32> -> vector<16x1xf32>
    %c0_348 = arith.constant 0 : index
    %c0_349 = arith.constant 0 : index
    %374 = vector.load %arg8[%c0_348, %c0_349] : memref<16x16xf32, #tpu.memory_space<vmem>>, vector<16x16xf32>
    %cst_350 = arith.constant dense<0.000000e+00> : vector<16x1xf32>
    %375 = tpu.matmul %374, %371, %cst_350 {dimension_numbers = #tpu.dot_dimension_numbers<[1], [0], [0], [1], [0, 0, 1, 1], [], []>} : vector<16x16xf32>, vector<16x1xf32>, vector<16x1xf32> -> vector<16x1xf32>
    %376 = arith.mulf %373, %373 : vector<16x1xf32>
    %377 = arith.subf %375, %376 : vector<16x1xf32>
    %cst_351 = arith.constant 0.000000e+00 : f32
    %378 = vector.broadcast %cst_351 : f32 to vector<16x1xf32>
    %379 = arith.maximumf %377, %378 : vector<16x1xf32>
    %cst_352 = arith.constant 9.99999974E-6 : f32
    %380 = vector.broadcast %cst_352 : f32 to vector<16x1xf32>
    %381 = arith.addf %379, %380 : vector<16x1xf32>
    %382 = math.rsqrt %381 : vector<16x1xf32>
    %c0_353 = arith.constant 0 : index
    %c0_354 = arith.constant 0 : index
    %383 = vector.load %arg9[%c0_353, %c0_354] : memref<16x1xf32, #tpu.memory_space<vmem>>, vector<16x1xf32>
    %384 = arith.mulf %382, %383 : vector<16x1xf32>
    %c0_355 = arith.constant 0 : index
    %c0_356 = arith.constant 0 : index
    %385 = vector.load %arg10[%c0_355, %c0_356] : memref<16x1xf32, #tpu.memory_space<vmem>>, vector<16x1xf32>
    %386 = arith.mulf %373, %384 : vector<16x1xf32>
    %387 = arith.subf %385, %386 : vector<16x1xf32>
    %388 = vector.broadcast %384 : vector<16x1xf32> to vector<16x256xf32>
    %389 = arith.mulf %366, %388 : vector<16x256xf32>
    %390 = vector.broadcast %387 : vector<16x1xf32> to vector<16x256xf32>
    %391 = arith.addf %389, %390 : vector<16x256xf32>
    %c0_357 = arith.constant 0 : index
    %c0_358 = arith.constant 0 : index
    %c0_359 = arith.constant 0 : index
    %392 = vector.load %arg11[%c0_357, %c0_358, %c0_359] : memref<1x16x256xf32, #tpu.memory_space<vmem>>, vector<1x16x256xf32>
    %393 = vector.shape_cast %392 : vector<1x16x256xf32> to vector<16x256xf32>
    %394 = vector.shape_cast %391 : vector<16x256xf32> to vector<1x16x256xf32>
    tpu.vector_store %arg11[%c0_357, %c0_358, %c0_359], %394 {strides = array<i32>} : memref<1x16x256xf32, #tpu.memory_space<vmem>>, vector<1x16x256xf32>,
    return
  }
  func.func @transform_0(%arg0: i32) -> (i32, i32, i32) {
    %c0_i32 = arith.constant 0 : i32
    %c0_i32_0 = arith.constant 0 : i32
    %c0_i32_1 = arith.constant 0 : i32
    return %arg0, %c0_i32, %c0_i32_0 : i32, i32, i32
  }
  func.func @transform_1(%arg0: i32) -> (i32, i32, i32) {
    %c0_i32 = arith.constant 0 : i32
    %c0_i32_0 = arith.constant 0 : i32
    %c0_i32_1 = arith.constant 0 : i32
    %c0_i32_2 = arith.constant 0 : i32
    return %c0_i32, %c0_i32_0, %c0_i32_1 : i32, i32, i32
  }
  func.func @transform_2(%arg0: i32) -> (i32, i32) {
    %c0_i32 = arith.constant 0 : i32
    %c0_i32_0 = arith.constant 0 : i32
    %c0_i32_1 = arith.constant 0 : i32
    return %c0_i32, %c0_i32_0 : i32, i32
  }
  func.func @transform_3(%arg0: i32) -> (i32, i32) {
    %c0_i32 = arith.constant 0 : i32
    %c0_i32_0 = arith.constant 0 : i32
    %c0_i32_1 = arith.constant 0 : i32
    return %c0_i32, %c0_i32_0 : i32, i32
  }
  func.func @transform_4(%arg0: i32) -> (i32, i32) {
    %c0_i32 = arith.constant 0 : i32
    %c0_i32_0 = arith.constant 0 : i32
    %c0_i32_1 = arith.constant 0 : i32
    return %c0_i32, %c0_i32_0 : i32, i32
  }
  func.func @transform_5(%arg0: i32) -> (i32, i32) {
    %c0_i32 = arith.constant 0 : i32
    %c0_i32_0 = arith.constant 0 : i32
    %c0_i32_1 = arith.constant 0 : i32
    return %c0_i32, %c0_i32_0 : i32, i32
  }
  func.func @transform_6(%arg0: i32) -> (i32, i32) {
    %c0_i32 = arith.constant 0 : i32
    %c0_i32_0 = arith.constant 0 : i32
    %c0_i32_1 = arith.constant 0 : i32
    return %c0_i32, %c0_i32_0 : i32, i32
  }
  func.func @transform_7(%arg0: i32) -> (i32, i32) {
    %c0_i32 = arith.constant 0 : i32
    %c0_i32_0 = arith.constant 0 : i32
    %c0_i32_1 = arith.constant 0 : i32
    return %c0_i32, %c0_i32_0 : i32, i32
  }
  func.func @transform_8(%arg0: i32) -> (i32, i32) {
    %c0_i32 = arith.constant 0 : i32
    %c0_i32_0 = arith.constant 0 : i32
    %c0_i32_1 = arith.constant 0 : i32
    return %c0_i32, %c0_i32_0 : i32, i32
  }
  func.func @transform_9(%arg0: i32) -> (i32, i32) {
    %c0_i32 = arith.constant 0 : i32
    %c0_i32_0 = arith.constant 0 : i32
    %c0_i32_1 = arith.constant 0 : i32
    return %c0_i32, %c0_i32_0 : i32, i32
  }
  func.func @transform_10(%arg0: i32) -> (i32, i32, i32) {
    %c0_i32 = arith.constant 0 : i32
    %c0_i32_0 = arith.constant 0 : i32
    %c0_i32_1 = arith.constant 0 : i32
    return %arg0, %c0_i32, %c0_i32_0 : i32, i32, i32
  }
}

</mosaic_0001>

<llo_original>
// kernel: tpu_custom_call.1
$region0: #{tpu_custom_call.1}
  #allocation0 [shape = 'u32[]', space=smem, size = 0x4, offset = 0x4, fixed_abs, tag = 'smem constant byte address 0x4 - core index']
  #allocation1 [shape = 'u32[144,128]{1,0:T(1,128)}', space=vmem, size = 0x12000, scoped, tag = 'internal scratch']
  #allocation2 [shape = 'bf16[8,512]{1,0:T(8,128)(2,1)}', space=vmem, size = 0x2000, scoped, tag = 'scratch operand']
  #allocation3 [shape = 'bf16[216,256]{1,0:T(8,128)(2,1)}', space=vmem, size = 0x1b000, scoped, tag = 'scratch operand']
  %s0 = inlined_call_operand.vmem [shape: bf16[2,8,256], index: 0, kind: input, shape index: {}]
  %s1 = inlined_call_operand.vmem [shape: bf16[27,1,256], index: 1, kind: input, shape index: {}]
  %s2 = inlined_call_operand.vmem [shape: bf16[8,216], index: 2, kind: input, shape index: {}]
  %s3 = inlined_call_operand.vmem [shape: f32[8,8], index: 3, kind: input, shape index: {}]
  %s4 = inlined_call_operand.vmem [shape: f32[8,1], index: 4, kind: input, shape index: {}]
  %s5 = inlined_call_operand.vmem [shape: f32[8,1], index: 5, kind: input, shape index: {}]
  %s6 = inlined_call_operand.vmem [shape: bf16[16,216], index: 6, kind: input, shape index: {}]
  %s7 = inlined_call_operand.vmem [shape: f32[16,16], index: 7, kind: input, shape index: {}]
  %s8 = inlined_call_operand.vmem [shape: f32[16,1], index: 8, kind: input, shape index: {}]
  %s9 = inlined_call_operand.vmem [shape: f32[16,1], index: 9, kind: input, shape index: {}]
  %s10 = inlined_call_operand.hbm [shape: f32[2,16,256], index: 10, kind: output, shape index: {}]
  %s11 = sld [smem:[#allocation0]]
  $region77: #{tpu_custom_call.1} parent=0
    _
  %s13 = ssub.s32 1, %s11
  %s14 = scalar_select 0, %s13, %s11
  $region1: #{tpu_custom_call.1} parent=0
    #allocation4 [shape = 'u8[32768]{0}', space=vmem, size = 0x8000, scoped, tag = 'output window, operand 0']
    #allocation5 [shape = 's32[2]{0}', space=sflag, size = 0x8, scoped, tag = 'scoped memory for tpu_custom_call.1']
    %15 = vsyncpa [#allocation5], 0
    %s16 = scalar_lea.sflag [#allocation5], 1
    %17 = vsyncpa %s16, 0
    loop: start=0, step=1, limit=4
    $region2: #{tpu_custom_call.1} parent=1 // loop_pre_header
      _
    $region3: #{tpu_custom_call.1} parent=1 // loop_header
      %s19 = sphi 0, %s23
      %p20 = scmp.ge.s32.totalorder %s19, 4
      %s29 = sphi 0, %s31
      %s32 = sphi 0, %s29
      %s33 = sphi 0, %s32
      %s49 = sphi 0, %s33
      %s53 = sphi 0, %s53
      %s55 = sphi 0, %s53
      %s56 = sphi 0, %s55
      %s70 = sphi 0, %s56
      %s74 = sphi 0, %s74
      %s76 = sphi 0, %s74
      %s77 = sphi 0, %s76
      %s91 = sphi 0, %s77
      %s95 = sphi 0, %s95
      %s97 = sphi 0, %s95
      %s98 = sphi 0, %s97
      %s112 = sphi 0, %s98
      %s116 = sphi 0, %s116
      %s118 = sphi 0, %s116
      %s119 = sphi 0, %s118
      %s133 = sphi 0, %s119
      %s137 = sphi 0, %s137
      %s139 = sphi 0, %s137
      %s140 = sphi 0, %s139
      %s154 = sphi 0, %s140
      %s158 = sphi 0, %s158
      %s160 = sphi 0, %s158
      %s161 = sphi 0, %s160
      %s175 = sphi 0, %s161
      %s179 = sphi 0, %s179
      %s181 = sphi 0, %s179
      %s182 = sphi 0, %s181
      %s196 = sphi 0, %s182
      %s200 = sphi 0, %s200
      %s202 = sphi 0, %s200
      %s203 = sphi 0, %s202
      %s217 = sphi 0, %s203
      %s221 = sphi 0, %s221
      %s223 = sphi 0, %s221
      %s224 = sphi 0, %s223
      %s238 = sphi 0, %s224
      %s244 = sphi 0, %s246
      %s247 = sphi 0, %s244
      %s248 = sphi 0, %s247
      %s264 = sphi 0, %s248
    $region4: #{tpu_custom_call.1} parent=1 // loop_header_branch
      %22 = sbr.rel (%p20) target = $region8
    $region5: #{tpu_custom_call.1} parent=1 // loop_body
      %s24 = ssub.s32 %s19, 1
      %s25 = ssub.s32 %s19, 2
      %s26 = sadd.s32 %s19, 1
      %s27 = ssub.s32 %s19, %s26
      %p28 = scmp.eq.s32.totalorder %s27, 0
      %s30 = sadd.s32 %s29, 1
      %s31 = scalar_select %p28, %s29, %s30
      %p34 = pneg %p28
      %p35 = scmp.eq.s32.totalorder %s19, 1
      %p36 = por %p34, %p35
      %p37 = scmp.ne.s32.totalorder %s29, %s32
      %p38 = scmp.eq.s32.totalorder %s19, 0
      %p39 = por %p37, %p38
      %p40 = scmp.ne.s32.totalorder %s29, %s32
      %p41 = scmp.eq.s32.totalorder %s24, 1
      %p42 = por %p40, %p41
      %p43 = scmp.ne.s32.totalorder %s32, %s33
      %p44 = scmp.eq.s32.totalorder %s24, 0
      %p45 = por %p43, %p44
      %p46 = scmp.ne.s32.totalorder %s32, %s33
      %p47 = scmp.eq.s32.totalorder %s25, 1
      %p48 = por %p46, %p47
      %p50 = scmp.ne.s32.totalorder %s33, %s49
      %p51 = scmp.eq.s32.totalorder %s25, 0
      %p52 = por %p50, %p51
      %s54 = sadd.s32 %s53, 1
      %p57 = scmp.eq.s32.totalorder %s19, 1
      %p58 = scmp.ne.s32.totalorder %s53, %s55
      %p59 = scmp.eq.s32.totalorder %s19, 0
      %p60 = por %p58, %p59
      %p61 = scmp.ne.s32.totalorder %s53, %s55
      %p62 = scmp.eq.s32.totalorder %s24, 1
      %p63 = por %p61, %p62
      %p64 = scmp.ne.s32.totalorder %s55, %s56
      %p65 = scmp.eq.s32.totalorder %s24, 0
      %p66 = por %p64, %p65
      %p67 = scmp.ne.s32.totalorder %s55, %s56
      %p68 = scmp.eq.s32.totalorder %s25, 1
      %p69 = por %p67, %p68
      %p71 = scmp.ne.s32.totalorder %s56, %s70
      %p72 = scmp.eq.s32.totalorder %s25, 0
      %p73 = por %p71, %p72
      %s75 = sadd.s32 %s74, 1
      %p78 = scmp.eq.s32.totalorder %s19, 1
      %p79 = scmp.ne.s32.totalorder %s74, %s76
      %p80 = scmp.eq.s32.totalorder %s19, 0
      %p81 = por %p79, %p80
      %p82 = scmp.ne.s32.totalorder %s74, %s76
      %p83 = scmp.eq.s32.totalorder %s24, 1
      %p84 = por %p82, %p83
      %p85 = scmp.ne.s32.totalorder %s76, %s77
      %p86 = scmp.eq.s32.totalorder %s24, 0
      %p87 = por %p85, %p86
      %p88 = scmp.ne.s32.totalorder %s76, %s77
      %p89 = scmp.eq.s32.totalorder %s25, 1
      %p90 = por %p88, %p89
      %p92 = scmp.ne.s32.totalorder %s77, %s91
      %p93 = scmp.eq.s32.totalorder %s25, 0
      %p94 = por %p92, %p93
      %s96 = sadd.s32 %s95, 1
      %p99 = scmp.eq.s32.totalorder %s19, 1
      %p100 = scmp.ne.s32.totalorder %s95, %s97
      %p101 = scmp.eq.s32.totalorder %s19, 0
      %p102 = por %p100, %p101
      %p103 = scmp.ne.s32.totalorder %s95, %s97
      %p104 = scmp.eq.s32.totalorder %s24, 1
      %p105 = por %p103, %p104
      %p106 = scmp.ne.s32.totalorder %s97, %s98
      %p107 = scmp.eq.s32.totalorder %s24, 0
      %p108 = por %p106, %p107
      %p109 = scmp.ne.s32.totalorder %s97, %s98
      %p110 = scmp.eq.s32.totalorder %s25, 1
      %p111 = por %p109, %p110
      %p113 = scmp.ne.s32.totalorder %s98, %s112
      %p114 = scmp.eq.s32.totalorder %s25, 0
      %p115 = por %p113, %p114
      %s117 = sadd.s32 %s116, 1
      %p120 = scmp.eq.s32.totalorder %s19, 1
      %p121 = scmp.ne.s32.totalorder %s116, %s118
      %p122 = scmp.eq.s32.totalorder %s19, 0
      %p123 = por %p121, %p122
      %p124 = scmp.ne.s32.totalorder %s116, %s118
      %p125 = scmp.eq.s32.totalorder %s24, 1
      %p126 = por %p124, %p125
      %p127 = scmp.ne.s32.totalorder %s118, %s119
      %p128 = scmp.eq.s32.totalorder %s24, 0
      %p129 = por %p127, %p128
      %p130 = scmp.ne.s32.totalorder %s118, %s119
      %p131 = scmp.eq.s32.totalorder %s25, 1
      %p132 = por %p130, %p131
      %p134 = scmp.ne.s32.totalorder %s119, %s133
      %p135 = scmp.eq.s32.totalorder %s25, 0
      %p136 = por %p134, %p135
      %s138 = sadd.s32 %s137, 1
      %p141 = scmp.eq.s32.totalorder %s19, 1
      %p142 = scmp.ne.s32.totalorder %s137, %s139
      %p143 = scmp.eq.s32.totalorder %s19, 0
      %p144 = por %p142, %p143
      %p145 = scmp.ne.s32.totalorder %s137, %s139
      %p146 = scmp.eq.s32.totalorder %s24, 1
      %p147 = por %p145, %p146
      %p148 = scmp.ne.s32.totalorder %s139, %s140
      %p149 = scmp.eq.s32.totalorder %s24, 0
      %p150 = por %p148, %p149
      %p151 = scmp.ne.s32.totalorder %s139, %s140
      %p152 = scmp.eq.s32.totalorder %s25, 1
      %p153 = por %p151, %p152
      %p155 = scmp.ne.s32.totalorder %s140, %s154
      %p156 = scmp.eq.s32.totalorder %s25, 0
      %p157 = por %p155, %p156
      %s159 = sadd.s32 %s158, 1
      %p162 = scmp.eq.s32.totalorder %s19, 1
      %p163 = scmp.ne.s32.totalorder %s158, %s160
      %p164 = scmp.eq.s32.totalorder %s19, 0
      %p165 = por %p163, %p164
      %p166 = scmp.ne.s32.totalorder %s158, %s160
      %p167 = scmp.eq.s32.totalorder %s24, 1
      %p168 = por %p166, %p167
      %p169 = scmp.ne.s32.totalorder %s160, %s161
      %p170 = scmp.eq.s32.totalorder %s24, 0
      %p171 = por %p169, %p170
      %p172 = scmp.ne.s32.totalorder %s160, %s161
      %p173 = scmp.eq.s32.totalorder %s25, 1
      %p174 = por %p172, %p173
      %p176 = scmp.ne.s32.totalorder %s161, %s175
      %p177 = scmp.eq.s32.totalorder %s25, 0
      %p178 = por %p176, %p177
      %s180 = sadd.s32 %s179, 1
      %p183 = scmp.eq.s32.totalorder %s19, 1
      %p184 = scmp.ne.s32.totalorder %s179, %s181
      %p185 = scmp.eq.s32.totalorder %s19, 0
      %p186 = por %p184, %p185
      %p187 = scmp.ne.s32.totalorder %s179, %s181
      %p188 = scmp.eq.s32.totalorder %s24, 1
      %p189 = por %p187, %p188
      %p190 = scmp.ne.s32.totalorder %s181, %s182
      %p191 = scmp.eq.s32.totalorder %s24, 0
      %p192 = por %p190, %p191
      %p193 = scmp.ne.s32.totalorder %s181, %s182
      %p194 = scmp.eq.s32.totalorder %s25, 1
      %p195 = por %p193, %p194
      %p197 = scmp.ne.s32.totalorder %s182, %s196
      %p198 = scmp.eq.s32.totalorder %s25, 0
      %p199 = por %p197, %p198
      %s201 = sadd.s32 %s200, 1
      %p204 = scmp.eq.s32.totalorder %s19, 1
      %p205 = scmp.ne.s32.totalorder %s200, %s202
      %p206 = scmp.eq.s32.totalorder %s19, 0
      %p207 = por %p205, %p206
      %p208 = scmp.ne.s32.totalorder %s200, %s202
      %p209 = scmp.eq.s32.totalorder %s24, 1
      %p210 = por %p208, %p209
      %p211 = scmp.ne.s32.totalorder %s202, %s203
      %p212 = scmp.eq.s32.totalorder %s24, 0
      %p213 = por %p211, %p212
      %p214 = scmp.ne.s32.totalorder %s202, %s203
      %p215 = scmp.eq.s32.totalorder %s25, 1
      %p216 = por %p214, %p215
      %p218 = scmp.ne.s32.totalorder %s203, %s217
      %p219 = scmp.eq.s32.totalorder %s25, 0
      %p220 = por %p218, %p219
      %s222 = sadd.s32 %s221, 1
      %p225 = scmp.eq.s32.totalorder %s19, 1
      %p226 = scmp.ne.s32.totalorder %s221, %s223
      %p227 = scmp.eq.s32.totalorder %s19, 0
      %p228 = por %p226, %p227
      %p229 = scmp.ne.s32.totalorder %s221, %s223
      %p230 = scmp.eq.s32.totalorder %s24, 1
      %p231 = por %p229, %p230
      %p232 = scmp.ne.s32.totalorder %s223, %s224
      %p233 = scmp.eq.s32.totalorder %s24, 0
      %p234 = por %p232, %p233
      %p235 = scmp.ne.s32.totalorder %s223, %s224
      %p236 = scmp.eq.s32.totalorder %s25, 1
      %p237 = por %p235, %p236
      %p239 = scmp.ne.s32.totalorder %s224, %s238
      %p240 = scmp.eq.s32.totalorder %s25, 0
      %p241 = por %p239, %p240
      %s242 = ssub.s32 %s19, %s26
      %p243 = scmp.eq.s32.totalorder %s242, 0
      %s245 = sadd.s32 %s244, 1
      %s246 = scalar_select %p243, %s244, %s245
      %p249 = pneg %p243
      %p250 = scmp.eq.s32.totalorder %s19, 1
      %p251 = por %p249, %p250
      %p252 = scmp.ne.s32.totalorder %s244, %s247
      %p253 = scmp.eq.s32.totalorder %s19, 0
      %p254 = por %p252, %p253
      %p255 = scmp.ne.s32.totalorder %s244, %s247
      %p256 = scmp.eq.s32.totalorder %s24, 1
      %p257 = por %p255, %p256
      %p258 = scmp.ne.s32.totalorder %s247, %s248
      %p259 = scmp.eq.s32.totalorder %s24, 0
      %p260 = por %p258, %p259
      %p261 = scmp.ne.s32.totalorder %s247, %s248
      %p262 = scmp.eq.s32.totalorder %s25, 1
      %p263 = por %p261, %p262
      %p265 = scmp.ne.s32.totalorder %s248, %s264
      %p266 = scmp.eq.s32.totalorder %s25, 0
      %p267 = por %p265, %p266
      %p268 = scmp.le.s32.totalorder 1, %s19
      %p269 = scmp.lt.s32.totalorder %s19, 3
      %p270 = pnand %p268, %p269
      %p271 = pneg %p270
      // Predicated region
      $region9: #{tpu_custom_call.1} parent=5 // pred_check
        _
      $region10: #{tpu_custom_call.1} parent=5 // pred_check_branch
        %273 = sbr.rel (%p270) target = $region12
      $region11: #{tpu_custom_call.1} parent=5 // pred_region
        %s274 = ssub.s32 %s19, 1
        // Predicated region
        $region13: #{tpu_custom_call.1} parent=11 // pred_check
          %p275 = pneg %p66
        $region14: #{tpu_custom_call.1} parent=11 // pred_check_branch
          %277 = sbr.rel (%p275) target = $region16
        $region15: #{tpu_custom_call.1} parent=11 // pred_region
          _
        $region16: #{tpu_custom_call.1} parent=11 // pred_fallthru
          _
        // Predicated region
        $region17: #{tpu_custom_call.1} parent=11 // pred_check
          %p278 = pneg %p87
        $region18: #{tpu_custom_call.1} parent=11 // pred_check_branch
          %280 = sbr.rel (%p278) target = $region20
        $region19: #{tpu_custom_call.1} parent=11 // pred_region
          _
        $region20: #{tpu_custom_call.1} parent=11 // pred_fallthru
          _
        // Predicated region
        $region21: #{tpu_custom_call.1} parent=11 // pred_check
          %p281 = pneg %p108
        $region22: #{tpu_custom_call.1} parent=11 // pred_check_branch
          %283 = sbr.rel (%p281) target = $region24
        $region23: #{tpu_custom_call.1} parent=11 // pred_region
          _
        $region24: #{tpu_custom_call.1} parent=11 // pred_fallthru
          _
        // Predicated region
        $region25: #{tpu_custom_call.1} parent=11 // pred_check
          %p284 = pneg %p129
        $region26: #{tpu_custom_call.1} parent=11 // pred_check_branch
          %286 = sbr.rel (%p284) target = $region28
        $region27: #{tpu_custom_call.1} parent=11 // pred_region
          _
        $region28: #{tpu_custom_call.1} parent=11 // pred_fallthru
          _
        // Predicated region
        $region29: #{tpu_custom_call.1} parent=11 // pred_check
          %p287 = pneg %p150
        $region30: #{tpu_custom_call.1} parent=11 // pred_check_branch
          %289 = sbr.rel (%p287) target = $region32
        $region31: #{tpu_custom_call.1} parent=11 // pred_region
          _
        $region32: #{tpu_custom_call.1} parent=11 // pred_fallthru
          _
        // Predicated region
        $region33: #{tpu_custom_call.1} parent=11 // pred_check
          %p290 = pneg %p171
        $region34: #{tpu_custom_call.1} parent=11 // pred_check_branch
          %292 = sbr.rel (%p290) target = $region36
        $region35: #{tpu_custom_call.1} parent=11 // pred_region
          _
        $region36: #{tpu_custom_call.1} parent=11 // pred_fallthru
          _
        // Predicated region
        $region37: #{tpu_custom_call.1} parent=11 // pred_check
          %p293 = pneg %p192
        $region38: #{tpu_custom_call.1} parent=11 // pred_check_branch
          %295 = sbr.rel (%p293) target = $region40
        $region39: #{tpu_custom_call.1} parent=11 // pred_region
          _
        $region40: #{tpu_custom_call.1} parent=11 // pred_fallthru
          _
        // Predicated region
        $region41: #{tpu_custom_call.1} parent=11 // pred_check
          %p296 = pneg %p213
        $region42: #{tpu_custom_call.1} parent=11 // pred_check_branch
          %298 = sbr.rel (%p296) target = $region44
        $region43: #{tpu_custom_call.1} parent=11 // pred_region
          _
        $region44: #{tpu_custom_call.1} parent=11 // pred_fallthru
          _
        // Predicated region
        $region45: #{tpu_custom_call.1} parent=11 // pred_check
          %p299 = pneg %p234
        $region46: #{tpu_custom_call.1} parent=11 // pred_check_branch
          %301 = sbr.rel (%p299) target = $region48
        $region47: #{tpu_custom_call.1} parent=11 // pred_region
          _
        $region48: #{tpu_custom_call.1} parent=11 // pred_fallthru
          _
      $region12: #{tpu_custom_call.1} parent=5 // pred_fallthru
        _
      %p302 = scmp.lt.s32.totalorder %s19, 2
      // Predicated region
      $region49: #{tpu_custom_call.1} parent=5 // pred_check
        %p303 = pneg %p302
      $region50: #{tpu_custom_call.1} parent=5 // pred_check_branch
        %305 = sbr.rel (%p303) target = $region52
      $region51: #{tpu_custom_call.1} parent=5 // pred_region
        // Predicated region
        $region53: #{tpu_custom_call.1} parent=51 // pred_check
          %p306 = pneg %p39
        $region54: #{tpu_custom_call.1} parent=51 // pred_check_branch
          %308 = sbr.rel (%p306) target = $region56
        $region55: #{tpu_custom_call.1} parent=51 // pred_region
          %p309 = scmp.lt.s32.totalorder %s19, 1
          %s310 = scalar_select %p309, %s19, 1
          %s311 = smul.addr %s310, 2
          %s312 = smul.addr %s311, 4
          %s313 = scalar_lea.vmem %s0, %s312
        $region56: #{tpu_custom_call.1} parent=51 // pred_fallthru
          _
      $region52: #{tpu_custom_call.1} parent=5 // pred_fallthru
        _
      %p314 = scmp.le.s32.totalorder 1, %s19
      %p315 = scmp.lt.s32.totalorder %s19, 3
      %p316 = pnand %p314, %p315
      %p317 = pneg %p316
      // Predicated region
      $region57: #{tpu_custom_call.1} parent=5 // pred_check
        _
      $region58: #{tpu_custom_call.1} parent=5 // pred_check_branch
        %319 = sbr.rel (%p316) target = $region60
      $region59: #{tpu_custom_call.1} parent=5 // pred_region
        %s320 = ssub.s32 %s19, 1
        %p321 = scmp.lt.s32.totalorder %s24, 1
        %s322 = scalar_select %p321, %s24, 1
        %s323 = smul.addr %s322, 2
        %s324 = smul.addr %s323, 4
        %s325 = scalar_lea.vmem %s0, %s324
        %p326 = pneg %p45
        %p327 = pneg %p42
        %p328 = pneg %p66
        %p329 = pneg %p63
        %p330 = pneg %p87
        %p331 = pneg %p84
        %p332 = pneg %p108
        %p333 = pneg %p105
        %p334 = pneg %p129
        %p335 = pneg %p126
        %p336 = pneg %p150
        %p337 = pneg %p147
        %p338 = pneg %p171
        %p339 = pneg %p168
        %p340 = pneg %p192
        %p341 = pneg %p189
        %p342 = pneg %p213
        %p343 = pneg %p210
        %p344 = pneg %p234
        %p345 = pneg %p231
        %p346 = pneg %p260
        %p347 = pneg %p257
        %s348 = sand.u32 %s247, 1
        %s349 = scalar_lea.sflag [#allocation5], %s348
        %s350 = sand.u32 %s247, 1
        %s351 = smul.addr %s350, 32
        %s352 = scalar_lea.vmem [#allocation4], %s351
        %p353 = scmp.lt.s32.totalorder %s24, 1
        %s354 = scalar_select %p353, %s24, 1
        %s355 = smul.addr %s354, 2
        %s356 = smul.addr %s355, 4
        %s357 = scalar_lea.vmem %s0, %s356
        %p359 = scmp.eq.s32.totalorder %s24, 0
        // Predicated region
        $region61: #{tpu_custom_call.1} parent=59 // pred_check
          %p360 = pneg %p359
        $region62: #{tpu_custom_call.1} parent=59 // pred_check_branch
          %362 = sbr.rel (%p360) target = $region64
        $region63: #{tpu_custom_call.1} parent=59 // pred_region
          %363 = vst [vmem:[#allocation2] sm:$0xff] 0
          %364 = vst [vmem:[#allocation2 + $0x8] sm:$0xff] 0
        $region64: #{tpu_custom_call.1} parent=59 // pred_fallthru
          _
        %v365 = vld [vmem:[%s357] sm:$0xff]
        %366 = vst [vmem:[#allocation2 + $0x4] sm:$0xff] %v365
        %v367 = vld [vmem:[#allocation2] sm:$0xff]
        %v368 = vld [vmem:[#allocation2 + $0x8] sm:$0xf]
        %v369 = vld [vmem:[%s1] sm:$0x3]
        %v372 = vunpack.c.l.s4 1966171168
        %v373 = vunpack.c.0.s8 %v372
        %v374 = vlaneseq
        %v375 = vshrl.u32 %v374, 7
        %v376 = vsub.s32 %v373, %v375
        %v377 = vrot.slane %v369, %v376
        %v378 = vcombine.high %v377, %v377
        %v380 = vunpack.c.l.s4 1966171168
        %v381 = vunpack.c.0.s8 %v380
        %v382 = vlaneseq
        %v383 = vshrl.u32 %v382, 7
        %v384 = vsub.s32 %v381, %v383
        %v385 = vrot.slane %v377, %v384
        %v387 = vunpack.c.l.s4 1966171168
        %v388 = vunpack.c.0.s8 %v387
        %v389 = vlaneseq
        %v390 = vshrl.u32 %v389, 7
        %v391 = vsub.s32 %v388, %v390
        %v392 = vrot.slane %v378, %v391
        %v394 = vpack.i.b16 %v385, %v385
        %v396 = vlaneseq
        %v397 = vshrl.u32 %v396, 7
        %v398 = vsub.s32 0, %v397
        %v399 = vrot.slane %v394, %v398
        %v401 = vpack.i.b16 %v392, %v392
        %v403 = vlaneseq
        %v404 = vshrl.u32 %v403, 7
        %v405 = vsub.s32 0, %v404
        %v406 = vrot.slane %v401, %v405
        %v409 = vunpack.c.l.b16 %v399
        %v410 = vunpack.c.l.b16 %v406
        %v411 = vpack.c.b16 %v410, %v409
        %412 = vrot.lane.b32.xlu0 %v411, 55
        %v413 = vpop.permute.xlu0 %412
        %v414 = vrot.slane %v413, 4
        %vm415 = vcmask 449536
        %v416 = vsel %vm415, %v414, %v413
        %v419 = vmul.bf16 %v367, %v416
        %v420 = vmul.bf16 %v368, %v414
        %423 = vrot.lane.b32.xlu0 %v419, 73
        %v424 = vpop.permute.xlu0 %423
        %425 = vrot.lane.b32.xlu0 %v420, 73
        %v426 = vpop.permute.xlu0 %425
        %v427 = vrot.slane %v424, 4
        %v428 = vrot.slane %v426, 4
        %vm429 = vcmask 1043456
        %v430 = vsel %vm429, %v427, %v428
        %vm431 = vcmask 596992
        %v432 = vsel %vm431, %v424, %v430
        %434 = vst [vmem:[#allocation3] sm:$0xff] %v432
        %v435 = vld [vmem:[#allocation2] sm:$0xff]
        %v436 = vld [vmem:[#allocation2 + $0x8] sm:$0xf]
        %s437 = scalar_lea.vmem %s1, 2
        %v438 = vld [vmem:[%s437] sm:$0x3]
        %v441 = vunpack.c.l.s4 1966171168
        %v442 = vunpack.c.0.s8 %v441
        %v443 = vlaneseq
        %v444 = vshrl.u32 %v443, 7
        %v445 = vsub.s32 %v442, %v444
        %v446 = vrot.slane %v438, %v445
        %v447 = vcombine.high %v446, %v446
        %v449 = vunpack.c.l.s4 1966171168
        %v450 = vunpack.c.0.s8 %v449
        %v451 = vlaneseq
        %v452 = vshrl.u32 %v451, 7
        %v453 = vsub.s32 %v450, %v452
        %v454 = vrot.slane %v446, %v453
        %v456 = vunpack.c.l.s4 1966171168
        %v457 = vunpack.c.0.s8 %v456
        %v458 = vlaneseq
        %v459 = vshrl.u32 %v458, 7
        %v460 = vsub.s32 %v457, %v459
        %v461 = vrot.slane %v447, %v460
        %v463 = vpack.i.b16 %v454, %v454
        %v465 = vlaneseq
        %v466 = vshrl.u32 %v465, 7
        %v467 = vsub.s32 0, %v466
        %v468 = vrot.slane %v463, %v467
        %v470 = vpack.i.b16 %v461, %v461
        %v472 = vlaneseq
        %v473 = vshrl.u32 %v472, 7
        %v474 = vsub.s32 0, %v473
        %v475 = vrot.slane %v470, %v474
        %v478 = vunpack.c.l.b16 %v468
        %v479 = vunpack.c.l.b16 %v475
        %v480 = vpack.c.b16 %v479, %v478
        %481 = vrot.lane.b32.xlu0 %v480, 56
        %v482 = vpop.permute.xlu0 %481
        %v483 = vrot.slane %v482, 4
        %vm484 = vcmask 457728
        %v485 = vsel %vm484, %v483, %v482
        %v488 = vmul.bf16 %v435, %v485
        %v489 = vmul.bf16 %v436, %v483
        %492 = vrot.lane.b32.xlu0 %v488, 72
        %v493 = vpop.permute.xlu0 %492
        %494 = vrot.lane.b32.xlu0 %v489, 72
        %v495 = vpop.permute.xlu0 %494
        %v496 = vrot.slane %v493, 4
        %v497 = vrot.slane %v495, 4
        %v498 = vsel %vm429, %v496, %v497
        %vm499 = vcmask 588800
        %v500 = vsel %vm499, %v493, %v498
        %502 = vst [vmem:[#allocation3 + $0x8] sm:$0xff] %v500
        %v503 = vld [vmem:[#allocation2] sm:$0xff]
        %v504 = vld [vmem:[#allocation2 + $0x8] sm:$0xf]
        %s505 = scalar_lea.vmem %s1, 4
        %v506 = vld [vmem:[%s505] sm:$0x3]
        %v509 = vunpack.c.l.s4 1966171168
        %v510 = vunpack.c.0.s8 %v509
        %v511 = vlaneseq
        %v512 = vshrl.u32 %v511, 7
        %v513 = vsub.s32 %v510, %v512
        %v514 = vrot.slane %v506, %v513
        %v515 = vcombine.high %v514, %v514
        %v517 = vunpack.c.l.s4 1966171168
        %v518 = vunpack.c.0.s8 %v517
        %v519 = vlaneseq
        %v520 = vshrl.u32 %v519, 7
        %v521 = vsub.s32 %v518, %v520
        %v522 = vrot.slane %v514, %v521
        %v524 = vunpack.c.l.s4 1966171168
        %v525 = vunpack.c.0.s8 %v524
        %v526 = vlaneseq
        %v527 = vshrl.u32 %v526, 7
        %v528 = vsub.s32 %v525, %v527
        %v529 = vrot.slane %v515, %v528
        %v531 = vpack.i.b16 %v522, %v522
        %v533 = vlaneseq
        %v534 = vshrl.u32 %v533, 7
        %v535 = vsub.s32 0, %v534
        %v536 = vrot.slane %v531, %v535
        %v538 = vpack.i.b16 %v529, %v529
        %v540 = vlaneseq
        %v541 = vshrl.u32 %v540, 7
        %v542 = vsub.s32 0, %v541
        %v543 = vrot.slane %v538, %v542
        %v546 = vunpack.c.l.b16 %v536
        %v547 = vunpack.c.l.b16 %v543
        %v548 = vpack.c.b16 %v547, %v546
        %549 = vrot.lane.b32.xlu0 %v548, 57
        %v550 = vpop.permute.xlu0 %549
        %v551 = vrot.slane %v550, 4
        %vm552 = vcmask 465920
        %v553 = vsel %vm552, %v551, %v550
        %v556 = vmul.bf16 %v503, %v553
        %v557 = vmul.bf16 %v504, %v551
        %560 = vrot.lane.b32.xlu0 %v556, 71
        %v561 = vpop.permute.xlu0 %560
        %562 = vrot.lane.b32.xlu0 %v557, 71
        %v563 = vpop.permute.xlu0 %562
        %v564 = vrot.slane %v561, 4
        %v565 = vrot.slane %v563, 4
        %v566 = vsel %vm429, %v564, %v565
        %vm567 = vcmask 580608
        %v568 = vsel %vm567, %v561, %v566
        %570 = vst [vmem:[#allocation3 + $0x10] sm:$0xff] %v568
        %v571 = vld [vmem:[#allocation2] sm:$0xff]
        %v572 = vld [vmem:[#allocation2 + $0x8] sm:$0xf]
        %s573 = scalar_lea.vmem %s1, 6
        %v574 = vld [vmem:[%s573] sm:$0x3]
        %v577 = vunpack.c.l.s4 1966171168
        %v578 = vunpack.c.0.s8 %v577
        %v579 = vlaneseq
        %v580 = vshrl.u32 %v579, 7
        %v581 = vsub.s32 %v578, %v580
        %v582 = vrot.slane %v574, %v581
        %v583 = vcombine.high %v582, %v582
        %v585 = vunpack.c.l.s4 1966171168
        %v586 = vunpack.c.0.s8 %v585
        %v587 = vlaneseq
        %v588 = vshrl.u32 %v587, 7
        %v589 = vsub.s32 %v586, %v588
        %v590 = vrot.slane %v582, %v589
        %v592 = vunpack.c.l.s4 1966171168
        %v593 = vunpack.c.0.s8 %v592
        %v594 = vlaneseq
        %v595 = vshrl.u32 %v594, 7
        %v596 = vsub.s32 %v593, %v595
        %v597 = vrot.slane %v583, %v596
        %v599 = vpack.i.b16 %v590, %v590
        %v601 = vlaneseq
        %v602 = vshrl.u32 %v601, 7
        %v603 = vsub.s32 0, %v602
        %v604 = vrot.slane %v599, %v603
        %v606 = vpack.i.b16 %v597, %v597
        %v608 = vlaneseq
        %v609 = vshrl.u32 %v608, 7
        %v610 = vsub.s32 0, %v609
        %v611 = vrot.slane %v606, %v610
        %v614 = vunpack.c.l.b16 %v604
        %v615 = vunpack.c.l.b16 %v611
        %v616 = vpack.c.b16 %v615, %v614
        %617 = vrot.lane.b32.xlu0 %v616, 63
        %v618 = vpop.permute.xlu0 %617
        %v619 = vrot.slane %v618, 4
        %vm620 = vcmask 515072
        %v621 = vsel %vm620, %v619, %v618
        %v624 = vmul.bf16 %v571, %v621
        %v625 = vmul.bf16 %v572, %v619
        %628 = vrot.lane.b32.xlu0 %v624, 65
        %v629 = vpop.permute.xlu0 %628
        %630 = vrot.lane.b32.xlu0 %v625, 65
        %v631 = vpop.permute.xlu0 %630
        %v632 = vrot.slane %v629, 4
        %v633 = vrot.slane %v631, 4
        %v634 = vsel %vm429, %v632, %v633
        %vm635 = vcmask 531456
        %v636 = vsel %vm635, %v629, %v634
        %638 = vst [vmem:[#allocation3 + $0x18] sm:$0xff] %v636
        %v639 = vld [vmem:[#allocation2] sm:$0xff]
        %v640 = vld [vmem:[#allocation2 + $0x8] sm:$0xf]
        %s641 = scalar_lea.vmem %s1, 8
        %v642 = vld [vmem:[%s641] sm:$0x3]
        %v645 = vunpack.c.l.s4 1966171168
        %v646 = vunpack.c.0.s8 %v645
        %v647 = vlaneseq
        %v648 = vshrl.u32 %v647, 7
        %v649 = vsub.s32 %v646, %v648
        %v650 = vrot.slane %v642, %v649
        %v651 = vcombine.high %v650, %v650
        %v653 = vunpack.c.l.s4 1966171168
        %v654 = vunpack.c.0.s8 %v653
        %v655 = vlaneseq
        %v656 = vshrl.u32 %v655, 7
        %v657 = vsub.s32 %v654, %v656
        %v658 = vrot.slane %v650, %v657
        %v660 = vunpack.c.l.s4 1966171168
        %v661 = vunpack.c.0.s8 %v660
        %v662 = vlaneseq
        %v663 = vshrl.u32 %v662, 7
        %v664 = vsub.s32 %v661, %v663
        %v665 = vrot.slane %v651, %v664
        %v667 = vpack.i.b16 %v658, %v658
        %v669 = vlaneseq
        %v670 = vshrl.u32 %v669, 7
        %v671 = vsub.s32 0, %v670
        %v672 = vrot.slane %v667, %v671
        %v674 = vpack.i.b16 %v665, %v665
        %v676 = vlaneseq
        %v677 = vshrl.u32 %v676, 7
        %v678 = vsub.s32 0, %v677
        %v679 = vrot.slane %v674, %v678
        %v682 = vunpack.c.l.b16 %v672
        %v683 = vunpack.c.l.b16 %v679
        %v684 = vpack.c.b16 %v683, %v682
        %685 = vrot.lane.b32.xlu0 %v684, 64
        %v686 = vpop.permute.xlu0 %685
        %v687 = vrot.slane %v686, 4
        %vm688 = vcmask 523264
        %v689 = vsel %vm688, %v687, %v686
        %v692 = vmul.bf16 %v639, %v689
        %v693 = vmul.bf16 %v640, %v687
        %696 = vrot.lane.b32.xlu0 %v692, 64
        %v697 = vpop.permute.xlu0 %696
        %698 = vrot.lane.b32.xlu0 %v693, 64
        %v699 = vpop.permute.xlu0 %698
        %v700 = vrot.slane %v697, 4
        %v701 = vrot.slane %v699, 4
        %v702 = vsel %vm429, %v700, %v701
        %v703 = vsel %vm688, %v697, %v702
        %705 = vst [vmem:[#allocation3 + $0x20] sm:$0xff] %v703
        %v706 = vld [vmem:[#allocation2] sm:$0xff]
        %v707 = vld [vmem:[#allocation2 + $0x8] sm:$0xf]
        %s708 = scalar_lea.vmem %s1, 10
        %v709 = vld [vmem:[%s708] sm:$0x3]
        %v712 = vunpack.c.l.s4 1966171168
        %v713 = vunpack.c.0.s8 %v712
        %v714 = vlaneseq
        %v715 = vshrl.u32 %v714, 7
        %v716 = vsub.s32 %v713, %v715
        %v717 = vrot.slane %v709, %v716
        %v718 = vcombine.high %v717, %v717
        %v720 = vunpack.c.l.s4 1966171168
        %v721 = vunpack.c.0.s8 %v720
        %v722 = vlaneseq
        %v723 = vshrl.u32 %v722, 7
        %v724 = vsub.s32 %v721, %v723
        %v725 = vrot.slane %v717, %v724
        %v727 = vunpack.c.l.s4 1966171168
        %v728 = vunpack.c.0.s8 %v727
        %v729 = vlaneseq
        %v730 = vshrl.u32 %v729, 7
        %v731 = vsub.s32 %v728, %v730
        %v732 = vrot.slane %v718, %v731
        %v734 = vpack.i.b16 %v725, %v725
        %v736 = vlaneseq
        %v737 = vshrl.u32 %v736, 7
        %v738 = vsub.s32 0, %v737
        %v739 = vrot.slane %v734, %v738
        %v741 = vpack.i.b16 %v732, %v732
        %v743 = vlaneseq
        %v744 = vshrl.u32 %v743, 7
        %v745 = vsub.s32 0, %v744
        %v746 = vrot.slane %v741, %v745
        %v749 = vunpack.c.l.b16 %v739
        %v750 = vunpack.c.l.b16 %v746
        %v751 = vpack.c.b16 %v750, %v749
        %752 = vrot.lane.b32.xlu0 %v751, 65
        %v753 = vpop.permute.xlu0 %752
        %v754 = vrot.slane %v753, 4
        %v755 = vsel %vm635, %v754, %v753
        %v758 = vmul.bf16 %v706, %v755
        %v759 = vmul.bf16 %v707, %v754
        %762 = vrot.lane.b32.xlu0 %v758, 63
        %v763 = vpop.permute.xlu0 %762
        %764 = vrot.lane.b32.xlu0 %v759, 63
        %v765 = vpop.permute.xlu0 %764
        %v766 = vrot.slane %v763, 4
        %v767 = vrot.slane %v765, 4
        %v768 = vsel %vm429, %v766, %v767
        %v769 = vsel %vm620, %v763, %v768
        %771 = vst [vmem:[#allocation3 + $0x28] sm:$0xff] %v769
        %v772 = vld [vmem:[#allocation2] sm:$0xff]
        %v773 = vld [vmem:[#allocation2 + $0x8] sm:$0xf]
        %s774 = scalar_lea.vmem %s1, 12
        %v775 = vld [vmem:[%s774] sm:$0x3]
        %v778 = vunpack.c.l.s4 1966171168
        %v779 = vunpack.c.0.s8 %v778
        %v780 = vlaneseq
        %v781 = vshrl.u32 %v780, 7
        %v782 = vsub.s32 %v779, %v781
        %v783 = vrot.slane %v775, %v782
        %v784 = vcombine.high %v783, %v783
        %v786 = vunpack.c.l.s4 1966171168
        %v787 = vunpack.c.0.s8 %v786
        %v788 = vlaneseq
        %v789 = vshrl.u32 %v788, 7
        %v790 = vsub.s32 %v787, %v789
        %v791 = vrot.slane %v783, %v790
        %v793 = vunpack.c.l.s4 1966171168
        %v794 = vunpack.c.0.s8 %v793
        %v795 = vlaneseq
        %v796 = vshrl.u32 %v795, 7
        %v797 = vsub.s32 %v794, %v796
        %v798 = vrot.slane %v784, %v797
        %v800 = vpack.i.b16 %v791, %v791
        %v802 = vlaneseq
        %v803 = vshrl.u32 %v802, 7
        %v804 = vsub.s32 0, %v803
        %v805 = vrot.slane %v800, %v804
        %v807 = vpack.i.b16 %v798, %v798
        %v809 = vlaneseq
        %v810 = vshrl.u32 %v809, 7
        %v811 = vsub.s32 0, %v810
        %v812 = vrot.slane %v807, %v811
        %v815 = vunpack.c.l.b16 %v805
        %v816 = vunpack.c.l.b16 %v812
        %v817 = vpack.c.b16 %v816, %v815
        %818 = vrot.lane.b32.xlu0 %v817, 71
        %v819 = vpop.permute.xlu0 %818
        %v820 = vrot.slane %v819, 4
        %v821 = vsel %vm567, %v820, %v819
        %v824 = vmul.bf16 %v772, %v821
        %v825 = vmul.bf16 %v773, %v820
        %828 = vrot.lane.b32.xlu0 %v824, 57
        %v829 = vpop.permute.xlu0 %828
        %830 = vrot.lane.b32.xlu0 %v825, 57
        %v831 = vpop.permute.xlu0 %830
        %v832 = vrot.slane %v829, 4
        %v833 = vrot.slane %v831, 4
        %v834 = vsel %vm429, %v832, %v833
        %v835 = vsel %vm552, %v829, %v834
        %837 = vst [vmem:[#allocation3 + $0x30] sm:$0xff] %v835
        %v838 = vld [vmem:[#allocation2] sm:$0xff]
        %v839 = vld [vmem:[#allocation2 + $0x8] sm:$0xf]
        %s840 = scalar_lea.vmem %s1, 14
        %v841 = vld [vmem:[%s840] sm:$0x3]
        %v844 = vunpack.c.l.s4 1966171168
        %v845 = vunpack.c.0.s8 %v844
        %v846 = vlaneseq
        %v847 = vshrl.u32 %v846, 7
        %v848 = vsub.s32 %v845, %v847
        %v849 = vrot.slane %v841, %v848
        %v850 = vcombine.high %v849, %v849
        %v852 = vunpack.c.l.s4 1966171168
        %v853 = vunpack.c.0.s8 %v852
        %v854 = vlaneseq
        %v855 = vshrl.u32 %v854, 7
        %v856 = vsub.s32 %v853, %v855
        %v857 = vrot.slane %v849, %v856
        %v859 = vunpack.c.l.s4 1966171168
        %v860 = vunpack.c.0.s8 %v859
        %v861 = vlaneseq
        %v862 = vshrl.u32 %v861, 7
        %v863 = vsub.s32 %v860, %v862
        %v864 = vrot.slane %v850, %v863
        %v866 = vpack.i.b16 %v857, %v857
        %v868 = vlaneseq
        %v869 = vshrl.u32 %v868, 7
        %v870 = vsub.s32 0, %v869
        %v871 = vrot.slane %v866, %v870
        %v873 = vpack.i.b16 %v864, %v864
        %v875 = vlaneseq
        %v876 = vshrl.u32 %v875, 7
        %v877 = vsub.s32 0, %v876
        %v878 = vrot.slane %v873, %v877
        %v881 = vunpack.c.l.b16 %v871
        %v882 = vunpack.c.l.b16 %v878
        %v883 = vpack.c.b16 %v882, %v881
        %884 = vrot.lane.b32.xlu0 %v883, 72
        %v885 = vpop.permute.xlu0 %884
        %v886 = vrot.slane %v885, 4
        %v887 = vsel %vm499, %v886, %v885
        %v890 = vmul.bf16 %v838, %v887
        %v891 = vmul.bf16 %v839, %v886
        %894 = vrot.lane.b32.xlu0 %v890, 56
        %v895 = vpop.permute.xlu0 %894
        %896 = vrot.lane.b32.xlu0 %v891, 56
        %v897 = vpop.permute.xlu0 %896
        %v898 = vrot.slane %v895, 4
        %v899 = vrot.slane %v897, 4
        %v900 = vsel %vm429, %v898, %v899
        %v901 = vsel %vm484, %v895, %v900
        %903 = vst [vmem:[#allocation3 + $0x38] sm:$0xff] %v901
        %v904 = vld [vmem:[#allocation2] sm:$0xff]
        %v905 = vld [vmem:[#allocation2 + $0x8] sm:$0xf]
        %s906 = scalar_lea.vmem %s1, 16
        %v907 = vld [vmem:[%s906] sm:$0x3]
        %v910 = vunpack.c.l.s4 1966171168
        %v911 = vunpack.c.0.s8 %v910
        %v912 = vlaneseq
        %v913 = vshrl.u32 %v912, 7
        %v914 = vsub.s32 %v911, %v913
        %v915 = vrot.slane %v907, %v914
        %v916 = vcombine.high %v915, %v915
        %v918 = vunpack.c.l.s4 1966171168
        %v919 = vunpack.c.0.s8 %v918
        %v920 = vlaneseq
        %v921 = vshrl.u32 %v920, 7
        %v922 = vsub.s32 %v919, %v921
        %v923 = vrot.slane %v915, %v922
        %v925 = vunpack.c.l.s4 1966171168
        %v926 = vunpack.c.0.s8 %v925
        %v927 = vlaneseq
        %v928 = vshrl.u32 %v927, 7
        %v929 = vsub.s32 %v926, %v928
        %v930 = vrot.slane %v916, %v929
        %v932 = vpack.i.b16 %v923, %v923
        %v934 = vlaneseq
        %v935 = vshrl.u32 %v934, 7
        %v936 = vsub.s32 0, %v935
        %v937 = vrot.slane %v932, %v936
        %v939 = vpack.i.b16 %v930, %v930
        %v941 = vlaneseq
        %v942 = vshrl.u32 %v941, 7
        %v943 = vsub.s32 0, %v942
        %v944 = vrot.slane %v939, %v943
        %v947 = vunpack.c.l.b16 %v937
        %v948 = vunpack.c.l.b16 %v944
        %v949 = vpack.c.b16 %v948, %v947
        %950 = vrot.lane.b32.xlu0 %v949, 73
        %v951 = vpop.permute.xlu0 %950
        %v952 = vrot.slane %v951, 4
        %v953 = vsel %vm431, %v952, %v951
        %v956 = vmul.bf16 %v904, %v953
        %v957 = vmul.bf16 %v905, %v952
        %960 = vrot.lane.b32.xlu0 %v956, 55
        %v961 = vpop.permute.xlu0 %960
        %962 = vrot.lane.b32.xlu0 %v957, 55
        %v963 = vpop.permute.xlu0 %962
        %v964 = vrot.slane %v961, 4
        %v965 = vrot.slane %v963, 4
        %v966 = vsel %vm429, %v964, %v965
        %v967 = vsel %vm415, %v961, %v966
        %969 = vst [vmem:[#allocation3 + $0x40] sm:$0xff] %v967
        %v970 = vld [vmem:[#allocation2] sm:$0xff]
        %v971 = vld [vmem:[#allocation2 + $0x8] sm:$0xf]
        %s972 = scalar_lea.vmem %s1, 18
        %v973 = vld [vmem:[%s972] sm:$0x3]
        %v976 = vunpack.c.l.s4 1966171168
        %v977 = vunpack.c.0.s8 %v976
        %v978 = vlaneseq
        %v979 = vshrl.u32 %v978, 7
        %v980 = vsub.s32 %v977, %v979
        %v981 = vrot.slane %v973, %v980
        %v982 = vcombine.high %v981, %v981
        %v984 = vunpack.c.l.s4 1966171168
        %v985 = vunpack.c.0.s8 %v984
        %v986 = vlaneseq
        %v987 = vshrl.u32 %v986, 7
        %v988 = vsub.s32 %v985, %v987
        %v989 = vrot.slane %v981, %v988
        %v991 = vunpack.c.l.s4 1966171168
        %v992 = vunpack.c.0.s8 %v991
        %v993 = vlaneseq
        %v994 = vshrl.u32 %v993, 7
        %v995 = vsub.s32 %v992, %v994
        %v996 = vrot.slane %v982, %v995
        %v998 = vpack.i.b16 %v989, %v989
        %v1000 = vlaneseq
        %v1001 = vshrl.u32 %v1000, 7
        %v1002 = vsub.s32 0, %v1001
        %v1003 = vrot.slane %v998, %v1002
        %v1005 = vpack.i.b16 %v996, %v996
        %v1007 = vlaneseq
        %v1008 = vshrl.u32 %v1007, 7
        %v1009 = vsub.s32 0, %v1008
        %v1010 = vrot.slane %v1005, %v1009
        %v1013 = vunpack.c.l.b16 %v1003
        %v1014 = vunpack.c.l.b16 %v1010
        %v1015 = vpack.c.b16 %v1014, %v1013
        %1016 = vrot.lane.b32.xlu0 %v1015, 119
        %v1017 = vpop.permute.xlu0 %1016
        %v1018 = vrot.slane %v1017, 4
        %vm1019 = vcmask 973824
        %v1020 = vsel %vm1019, %v1018, %v1017
        %v1023 = vmul.bf16 %v970, %v1020
        %v1024 = vmul.bf16 %v971, %v1018
        %1027 = vrot.lane.b32.xlu0 %v1023, 9
        %v1028 = vpop.permute.xlu0 %1027
        %1029 = vrot.lane.b32.xlu0 %v1024, 9
        %v1030 = vpop.permute.xlu0 %1029
        %v1031 = vrot.slane %v1028, 4
        %v1032 = vrot.slane %v1030, 4
        %v1033 = vsel %vm429, %v1031, %v1032
        %vm1034 = vcmask 72704
        %v1035 = vsel %vm1034, %v1028, %v1033
        %1037 = vst [vmem:[#allocation3 + $0x48] sm:$0xff] %v1035
        %v1038 = vld [vmem:[#allocation2] sm:$0xff]
        %v1039 = vld [vmem:[#allocation2 + $0x8] sm:$0xf]
        %s1040 = scalar_lea.vmem %s1, 20
        %v1041 = vld [vmem:[%s1040] sm:$0x3]
        %v1044 = vunpack.c.l.s4 1966171168
        %v1045 = vunpack.c.0.s8 %v1044
        %v1046 = vlaneseq
        %v1047 = vshrl.u32 %v1046, 7
        %v1048 = vsub.s32 %v1045, %v1047
        %v1049 = vrot.slane %v1041, %v1048
        %v1050 = vcombine.high %v1049, %v1049
        %v1052 = vunpack.c.l.s4 1966171168
        %v1053 = vunpack.c.0.s8 %v1052
        %v1054 = vlaneseq
        %v1055 = vshrl.u32 %v1054, 7
        %v1056 = vsub.s32 %v1053, %v1055
        %v1057 = vrot.slane %v1049, %v1056
        %v1059 = vunpack.c.l.s4 1966171168
        %v1060 = vunpack.c.0.s8 %v1059
        %v1061 = vlaneseq
        %v1062 = vshrl.u32 %v1061, 7
        %v1063 = vsub.s32 %v1060, %v1062
        %v1064 = vrot.slane %v1050, %v1063
        %v1066 = vpack.i.b16 %v1057, %v1057
        %v1068 = vlaneseq
        %v1069 = vshrl.u32 %v1068, 7
        %v1070 = vsub.s32 0, %v1069
        %v1071 = vrot.slane %v1066, %v1070
        %v1073 = vpack.i.b16 %v1064, %v1064
        %v1075 = vlaneseq
        %v1076 = vshrl.u32 %v1075, 7
        %v1077 = vsub.s32 0, %v1076
        %v1078 = vrot.slane %v1073, %v1077
        %v1081 = vunpack.c.l.b16 %v1071
        %v1082 = vunpack.c.l.b16 %v1078
        %v1083 = vpack.c.b16 %v1082, %v1081
        %1084 = vrot.lane.b32.xlu0 %v1083, 120
        %v1085 = vpop.permute.xlu0 %1084
        %v1086 = vrot.slane %v1085, 4
        %vm1087 = vcmask 982016
        %v1088 = vsel %vm1087, %v1086, %v1085
        %v1091 = vmul.bf16 %v1038, %v1088
        %v1092 = vmul.bf16 %v1039, %v1086
        %1095 = vrot.lane.b32.xlu0 %v1091, 8
        %v1096 = vpop.permute.xlu0 %1095
        %1097 = vrot.lane.b32.xlu0 %v1092, 8
        %v1098 = vpop.permute.xlu0 %1097
        %v1099 = vrot.slane %v1096, 4
        %v1100 = vrot.slane %v1098, 4
        %v1101 = vsel %vm429, %v1099, %v1100
        %vm1102 = vcmask 64512
        %v1103 = vsel %vm1102, %v1096, %v1101
        %1105 = vst [vmem:[#allocation3 + $0x50] sm:$0xff] %v1103
        %v1106 = vld [vmem:[#allocation2] sm:$0xff]
        %v1107 = vld [vmem:[#allocation2 + $0x8] sm:$0xf]
        %s1108 = scalar_lea.vmem %s1, 22
        %v1109 = vld [vmem:[%s1108] sm:$0x3]
        %v1112 = vunpack.c.l.s4 1966171168
        %v1113 = vunpack.c.0.s8 %v1112
        %v1114 = vlaneseq
        %v1115 = vshrl.u32 %v1114, 7
        %v1116 = vsub.s32 %v1113, %v1115
        %v1117 = vrot.slane %v1109, %v1116
        %v1118 = vcombine.high %v1117, %v1117
        %v1120 = vunpack.c.l.s4 1966171168
        %v1121 = vunpack.c.0.s8 %v1120
        %v1122 = vlaneseq
        %v1123 = vshrl.u32 %v1122, 7
        %v1124 = vsub.s32 %v1121, %v1123
        %v1125 = vrot.slane %v1117, %v1124
        %v1127 = vunpack.c.l.s4 1966171168
        %v1128 = vunpack.c.0.s8 %v1127
        %v1129 = vlaneseq
        %v1130 = vshrl.u32 %v1129, 7
        %v1131 = vsub.s32 %v1128, %v1130
        %v1132 = vrot.slane %v1118, %v1131
        %v1134 = vpack.i.b16 %v1125, %v1125
        %v1136 = vlaneseq
        %v1137 = vshrl.u32 %v1136, 7
        %v1138 = vsub.s32 0, %v1137
        %v1139 = vrot.slane %v1134, %v1138
        %v1141 = vpack.i.b16 %v1132, %v1132
        %v1143 = vlaneseq
        %v1144 = vshrl.u32 %v1143, 7
        %v1145 = vsub.s32 0, %v1144
        %v1146 = vrot.slane %v1141, %v1145
        %v1149 = vunpack.c.l.b16 %v1139
        %v1150 = vunpack.c.l.b16 %v1146
        %v1151 = vpack.c.b16 %v1150, %v1149
        %1152 = vrot.lane.b32.xlu0 %v1151, 121
        %v1153 = vpop.permute.xlu0 %1152
        %v1154 = vrot.slane %v1153, 4
        %vm1155 = vcmask 990208
        %v1156 = vsel %vm1155, %v1154, %v1153
        %v1159 = vmul.bf16 %v1106, %v1156
        %v1160 = vmul.bf16 %v1107, %v1154
        %1163 = vrot.lane.b32.xlu0 %v1159, 7
        %v1164 = vpop.permute.xlu0 %1163
        %1165 = vrot.lane.b32.xlu0 %v1160, 7
        %v1166 = vpop.permute.xlu0 %1165
        %v1167 = vrot.slane %v1164, 4
        %v1168 = vrot.slane %v1166, 4
        %v1169 = vsel %vm429, %v1167, %v1168
        %vm1170 = vcmask 56320
        %v1171 = vsel %vm1170, %v1164, %v1169
        %1173 = vst [vmem:[#allocation3 + $0x58] sm:$0xff] %v1171
        %v1174 = vld [vmem:[#allocation2] sm:$0xff]
        %v1175 = vld [vmem:[#allocation2 + $0x8] sm:$0xf]
        %s1176 = scalar_lea.vmem %s1, 24
        %v1177 = vld [vmem:[%s1176] sm:$0x3]
        %v1180 = vunpack.c.l.s4 1966171168
        %v1181 = vunpack.c.0.s8 %v1180
        %v1182 = vlaneseq
        %v1183 = vshrl.u32 %v1182, 7
        %v1184 = vsub.s32 %v1181, %v1183
        %v1185 = vrot.slane %v1177, %v1184
        %v1186 = vcombine.high %v1185, %v1185
        %v1188 = vunpack.c.l.s4 1966171168
        %v1189 = vunpack.c.0.s8 %v1188
        %v1190 = vlaneseq
        %v1191 = vshrl.u32 %v1190, 7
        %v1192 = vsub.s32 %v1189, %v1191
        %v1193 = vrot.slane %v1185, %v1192
        %v1195 = vunpack.c.l.s4 1966171168
        %v1196 = vunpack.c.0.s8 %v1195
        %v1197 = vlaneseq
        %v1198 = vshrl.u32 %v1197, 7
        %v1199 = vsub.s32 %v1196, %v1198
        %v1200 = vrot.slane %v1186, %v1199
        %v1202 = vpack.i.b16 %v1193, %v1193
        %v1204 = vlaneseq
        %v1205 = vshrl.u32 %v1204, 7
        %v1206 = vsub.s32 0, %v1205
        %v1207 = vrot.slane %v1202, %v1206
        %v1209 = vpack.i.b16 %v1200, %v1200
        %v1211 = vlaneseq
        %v1212 = vshrl.u32 %v1211, 7
        %v1213 = vsub.s32 0, %v1212
        %v1214 = vrot.slane %v1209, %v1213
        %v1217 = vunpack.c.l.b16 %v1207
        %v1218 = vunpack.c.l.b16 %v1214
        %v1219 = vpack.c.b16 %v1218, %v1217
        %1220 = vrot.lane.b32.xlu0 %v1219, 127
        %v1221 = vpop.permute.xlu0 %1220
        %v1222 = vrot.slane %v1221, 4
        %vm1223 = vcmask 1039360
        %v1224 = vsel %vm1223, %v1222, %v1221
        %v1227 = vmul.bf16 %v1174, %v1224
        %v1228 = vmul.bf16 %v1175, %v1222
        %1231 = vrot.lane.b32.xlu0 %v1227, 1
        %v1232 = vpop.permute.xlu0 %1231
        %1233 = vrot.lane.b32.xlu0 %v1228, 1
        %v1234 = vpop.permute.xlu0 %1233
        %v1235 = vrot.slane %v1232, 4
        %v1236 = vrot.slane %v1234, 4
        %v1237 = vsel %vm429, %v1235, %v1236
        %vm1238 = vcmask 7168
        %v1239 = vsel %vm1238, %v1232, %v1237
        %1241 = vst [vmem:[#allocation3 + $0x60] sm:$0xff] %v1239
        %v1242 = vld [vmem:[#allocation2 + $0x4] sm:$0xff]
        %s1243 = scalar_lea.vmem %s1, 26
        %v1244 = vld [vmem:[%s1243] sm:$0x3]
        %v1247 = vunpack.c.l.s4 1966171168
        %v1248 = vunpack.c.0.s8 %v1247
        %v1249 = vlaneseq
        %v1250 = vshrl.u32 %v1249, 7
        %v1251 = vsub.s32 %v1248, %v1250
        %v1252 = vrot.slane %v1244, %v1251
        %v1253 = vcombine.high %v1252, %v1252
        %v1255 = vunpack.c.l.s4 1966171168
        %v1256 = vunpack.c.0.s8 %v1255
        %v1257 = vlaneseq
        %v1258 = vshrl.u32 %v1257, 7
        %v1259 = vsub.s32 %v1256, %v1258
        %v1260 = vrot.slane %v1252, %v1259
        %v1262 = vunpack.c.l.s4 1966171168
        %v1263 = vunpack.c.0.s8 %v1262
        %v1264 = vlaneseq
        %v1265 = vshrl.u32 %v1264, 7
        %v1266 = vsub.s32 %v1263, %v1265
        %v1267 = vrot.slane %v1253, %v1266
        %v1269 = vpack.i.b16 %v1260, %v1260
        %v1271 = vlaneseq
        %v1272 = vshrl.u32 %v1271, 7
        %v1273 = vsub.s32 0, %v1272
        %v1274 = vrot.slane %v1269, %v1273
        %v1276 = vpack.i.b16 %v1267, %v1267
        %v1278 = vlaneseq
        %v1279 = vshrl.u32 %v1278, 7
        %v1280 = vsub.s32 0, %v1279
        %v1281 = vrot.slane %v1276, %v1280
        %v1284 = vunpack.c.l.b16 %v1274
        %v1285 = vunpack.c.l.b16 %v1281
        %v1286 = vpack.c.b16 %v1285, %v1284
        %v1288 = vmul.bf16 %v1242, %v1286
        %1289 = vst [vmem:[#allocation3 + $0x68] sm:$0xff] %v1288
        %v1290 = vld [vmem:[#allocation2 + $0x4] sm:$0xff]
        %v1291 = vld [vmem:[#allocation2 + $0xc] sm:$0xf]
        %s1292 = scalar_lea.vmem %s1, 28
        %v1293 = vld [vmem:[%s1292] sm:$0x3]
        %v1296 = vunpack.c.l.s4 1966171168
        %v1297 = vunpack.c.0.s8 %v1296
        %v1298 = vlaneseq
        %v1299 = vshrl.u32 %v1298, 7
        %v1300 = vsub.s32 %v1297, %v1299
        %v1301 = vrot.slane %v1293, %v1300
        %v1302 = vcombine.high %v1301, %v1301
        %v1304 = vunpack.c.l.s4 1966171168
        %v1305 = vunpack.c.0.s8 %v1304
        %v1306 = vlaneseq
        %v1307 = vshrl.u32 %v1306, 7
        %v1308 = vsub.s32 %v1305, %v1307
        %v1309 = vrot.slane %v1301, %v1308
        %v1311 = vunpack.c.l.s4 1966171168
        %v1312 = vunpack.c.0.s8 %v1311
        %v1313 = vlaneseq
        %v1314 = vshrl.u32 %v1313, 7
        %v1315 = vsub.s32 %v1312, %v1314
        %v1316 = vrot.slane %v1302, %v1315
        %v1318 = vpack.i.b16 %v1309, %v1309
        %v1320 = vlaneseq
        %v1321 = vshrl.u32 %v1320, 7
        %v1322 = vsub.s32 0, %v1321
        %v1323 = vrot.slane %v1318, %v1322
        %v1325 = vpack.i.b16 %v1316, %v1316
        %v1327 = vlaneseq
        %v1328 = vshrl.u32 %v1327, 7
        %v1329 = vsub.s32 0, %v1328
        %v1330 = vrot.slane %v1325, %v1329
        %v1333 = vunpack.c.l.b16 %v1323
        %v1334 = vunpack.c.l.b16 %v1330
        %v1335 = vpack.c.b16 %v1334, %v1333
        %1336 = vrot.lane.b32.xlu0 %v1335, 1
        %v1337 = vpop.permute.xlu0 %1336
        %v1338 = vrot.slane %v1337, 4
        %v1339 = vsel %vm1238, %v1338, %v1337
        %v1342 = vmul.bf16 %v1290, %v1339
        %v1343 = vmul.bf16 %v1291, %v1338
        %1346 = vrot.lane.b32.xlu0 %v1342, 127
        %v1347 = vpop.permute.xlu0 %1346
        %1348 = vrot.lane.b32.xlu0 %v1343, 127
        %v1349 = vpop.permute.xlu0 %1348
        %v1350 = vrot.slane %v1347, 4
        %v1351 = vrot.slane %v1349, 4
        %v1352 = vsel %vm429, %v1350, %v1351
        %v1353 = vsel %vm1223, %v1347, %v1352
        %1355 = vst [vmem:[#allocation3 + $0x70] sm:$0xff] %v1353
        %v1356 = vld [vmem:[#allocation2 + $0x4] sm:$0xff]
        %v1357 = vld [vmem:[#allocation2 + $0xc] sm:$0xf]
        %s1358 = scalar_lea.vmem %s1, 30
        %v1359 = vld [vmem:[%s1358] sm:$0x3]
        %v1362 = vunpack.c.l.s4 1966171168
        %v1363 = vunpack.c.0.s8 %v1362
        %v1364 = vlaneseq
        %v1365 = vshrl.u32 %v1364, 7
        %v1366 = vsub.s32 %v1363, %v1365
        %v1367 = vrot.slane %v1359, %v1366
        %v1368 = vcombine.high %v1367, %v1367
        %v1370 = vunpack.c.l.s4 1966171168
        %v1371 = vunpack.c.0.s8 %v1370
        %v1372 = vlaneseq
        %v1373 = vshrl.u32 %v1372, 7
        %v1374 = vsub.s32 %v1371, %v1373
        %v1375 = vrot.slane %v1367, %v1374
        %v1377 = vunpack.c.l.s4 1966171168
        %v1378 = vunpack.c.0.s8 %v1377
        %v1379 = vlaneseq
        %v1380 = vshrl.u32 %v1379, 7
        %v1381 = vsub.s32 %v1378, %v1380
        %v1382 = vrot.slane %v1368, %v1381
        %v1384 = vpack.i.b16 %v1375, %v1375
        %v1386 = vlaneseq
        %v1387 = vshrl.u32 %v1386, 7
        %v1388 = vsub.s32 0, %v1387
        %v1389 = vrot.slane %v1384, %v1388
        %v1391 = vpack.i.b16 %v1382, %v1382
        %v1393 = vlaneseq
        %v1394 = vshrl.u32 %v1393, 7
        %v1395 = vsub.s32 0, %v1394
        %v1396 = vrot.slane %v1391, %v1395
        %v1399 = vunpack.c.l.b16 %v1389
        %v1400 = vunpack.c.l.b16 %v1396
        %v1401 = vpack.c.b16 %v1400, %v1399
        %1402 = vrot.lane.b32.xlu0 %v1401, 7
        %v1403 = vpop.permute.xlu0 %1402
        %v1404 = vrot.slane %v1403, 4
        %v1405 = vsel %vm1170, %v1404, %v1403
        %v1408 = vmul.bf16 %v1356, %v1405
        %v1409 = vmul.bf16 %v1357, %v1404
        %1412 = vrot.lane.b32.xlu0 %v1408, 121
        %v1413 = vpop.permute.xlu0 %1412
        %1414 = vrot.lane.b32.xlu0 %v1409, 121
        %v1415 = vpop.permute.xlu0 %1414
        %v1416 = vrot.slane %v1413, 4
        %v1417 = vrot.slane %v1415, 4
        %v1418 = vsel %vm429, %v1416, %v1417
        %v1419 = vsel %vm1155, %v1413, %v1418
        %1421 = vst [vmem:[#allocation3 + $0x78] sm:$0xff] %v1419
        %v1422 = vld [vmem:[#allocation2 + $0x4] sm:$0xff]
        %v1423 = vld [vmem:[#allocation2 + $0xc] sm:$0xf]
        %s1424 = scalar_lea.vmem %s1, 32
        %v1425 = vld [vmem:[%s1424] sm:$0x3]
        %v1428 = vunpack.c.l.s4 1966171168
        %v1429 = vunpack.c.0.s8 %v1428
        %v1430 = vlaneseq
        %v1431 = vshrl.u32 %v1430, 7
        %v1432 = vsub.s32 %v1429, %v1431
        %v1433 = vrot.slane %v1425, %v1432
        %v1434 = vcombine.high %v1433, %v1433
        %v1436 = vunpack.c.l.s4 1966171168
        %v1437 = vunpack.c.0.s8 %v1436
        %v1438 = vlaneseq
        %v1439 = vshrl.u32 %v1438, 7
        %v1440 = vsub.s32 %v1437, %v1439
        %v1441 = vrot.slane %v1433, %v1440
        %v1443 = vunpack.c.l.s4 1966171168
        %v1444 = vunpack.c.0.s8 %v1443
        %v1445 = vlaneseq
        %v1446 = vshrl.u32 %v1445, 7
        %v1447 = vsub.s32 %v1444, %v1446
        %v1448 = vrot.slane %v1434, %v1447
        %v1450 = vpack.i.b16 %v1441, %v1441
        %v1452 = vlaneseq
        %v1453 = vshrl.u32 %v1452, 7
        %v1454 = vsub.s32 0, %v1453
        %v1455 = vrot.slane %v1450, %v1454
        %v1457 = vpack.i.b16 %v1448, %v1448
        %v1459 = vlaneseq
        %v1460 = vshrl.u32 %v1459, 7
        %v1461 = vsub.s32 0, %v1460
        %v1462 = vrot.slane %v1457, %v1461
        %v1465 = vunpack.c.l.b16 %v1455
        %v1466 = vunpack.c.l.b16 %v1462
        %v1467 = vpack.c.b16 %v1466, %v1465
        %1468 = vrot.lane.b32.xlu0 %v1467, 8
        %v1469 = vpop.permute.xlu0 %1468
        %v1470 = vrot.slane %v1469, 4
        %v1471 = vsel %vm1102, %v1470, %v1469
        %v1474 = vmul.bf16 %v1422, %v1471
        %v1475 = vmul.bf16 %v1423, %v1470
        %1478 = vrot.lane.b32.xlu0 %v1474, 120
        %v1479 = vpop.permute.xlu0 %1478
        %1480 = vrot.lane.b32.xlu0 %v1475, 120
        %v1481 = vpop.permute.xlu0 %1480
        %v1482 = vrot.slane %v1479, 4
        %v1483 = vrot.slane %v1481, 4
        %v1484 = vsel %vm429, %v1482, %v1483
        %v1485 = vsel %vm1087, %v1479, %v1484
        %1487 = vst [vmem:[#allocation3 + $0x80] sm:$0xff] %v1485
        %v1488 = vld [vmem:[#allocation2 + $0x4] sm:$0xff]
        %v1489 = vld [vmem:[#allocation2 + $0xc] sm:$0xf]
        %s1490 = scalar_lea.vmem %s1, 34
        %v1491 = vld [vmem:[%s1490] sm:$0x3]
        %v1494 = vunpack.c.l.s4 1966171168
        %v1495 = vunpack.c.0.s8 %v1494
        %v1496 = vlaneseq
        %v1497 = vshrl.u32 %v1496, 7
        %v1498 = vsub.s32 %v1495, %v1497
        %v1499 = vrot.slane %v1491, %v1498
        %v1500 = vcombine.high %v1499, %v1499
        %v1502 = vunpack.c.l.s4 1966171168
        %v1503 = vunpack.c.0.s8 %v1502
        %v1504 = vlaneseq
        %v1505 = vshrl.u32 %v1504, 7
        %v1506 = vsub.s32 %v1503, %v1505
        %v1507 = vrot.slane %v1499, %v1506
        %v1509 = vunpack.c.l.s4 1966171168
        %v1510 = vunpack.c.0.s8 %v1509
        %v1511 = vlaneseq
        %v1512 = vshrl.u32 %v1511, 7
        %v1513 = vsub.s32 %v1510, %v1512
        %v1514 = vrot.slane %v1500, %v1513
        %v1516 = vpack.i.b16 %v1507, %v1507
        %v1518 = vlaneseq
        %v1519 = vshrl.u32 %v1518, 7
        %v1520 = vsub.s32 0, %v1519
        %v1521 = vrot.slane %v1516, %v1520
        %v1523 = vpack.i.b16 %v1514, %v1514
        %v1525 = vlaneseq
        %v1526 = vshrl.u32 %v1525, 7
        %v1527 = vsub.s32 0, %v1526
        %v1528 = vrot.slane %v1523, %v1527
        %v1531 = vunpack.c.l.b16 %v1521
        %v1532 = vunpack.c.l.b16 %v1528
        %v1533 = vpack.c.b16 %v1532, %v1531
        %1534 = vrot.lane.b32.xlu0 %v1533, 9
        %v1535 = vpop.permute.xlu0 %1534
        %v1536 = vrot.slane %v1535, 4
        %v1537 = vsel %vm1034, %v1536, %v1535
        %v1540 = vmul.bf16 %v1488, %v1537
        %v1541 = vmul.bf16 %v1489, %v1536
        %1544 = vrot.lane.b32.xlu0 %v1540, 119
        %v1545 = vpop.permute.xlu0 %1544
        %1546 = vrot.lane.b32.xlu0 %v1541, 119
        %v1547 = vpop.permute.xlu0 %1546
        %v1548 = vrot.slane %v1545, 4
        %v1549 = vrot.slane %v1547, 4
        %v1550 = vsel %vm429, %v1548, %v1549
        %v1551 = vsel %vm1019, %v1545, %v1550
        %1553 = vst [vmem:[#allocation3 + $0x88] sm:$0xff] %v1551
        %v1554 = vld [vmem:[#allocation2 + $0x4] sm:$0xff]
        %v1555 = vld [vmem:[#allocation2 + $0xc] sm:$0xf]
        %s1556 = scalar_lea.vmem %s1, 36
        %v1557 = vld [vmem:[%s1556] sm:$0x3]
        %v1560 = vunpack.c.l.s4 1966171168
        %v1561 = vunpack.c.0.s8 %v1560
        %v1562 = vlaneseq
        %v1563 = vshrl.u32 %v1562, 7
        %v1564 = vsub.s32 %v1561, %v1563
        %v1565 = vrot.slane %v1557, %v1564
        %v1566 = vcombine.high %v1565, %v1565
        %v1568 = vunpack.c.l.s4 1966171168
        %v1569 = vunpack.c.0.s8 %v1568
        %v1570 = vlaneseq
        %v1571 = vshrl.u32 %v1570, 7
        %v1572 = vsub.s32 %v1569, %v1571
        %v1573 = vrot.slane %v1565, %v1572
        %v1575 = vunpack.c.l.s4 1966171168
        %v1576 = vunpack.c.0.s8 %v1575
        %v1577 = vlaneseq
        %v1578 = vshrl.u32 %v1577, 7
        %v1579 = vsub.s32 %v1576, %v1578
        %v1580 = vrot.slane %v1566, %v1579
        %v1582 = vpack.i.b16 %v1573, %v1573
        %v1584 = vlaneseq
        %v1585 = vshrl.u32 %v1584, 7
        %v1586 = vsub.s32 0, %v1585
        %v1587 = vrot.slane %v1582, %v1586
        %v1589 = vpack.i.b16 %v1580, %v1580
        %v1591 = vlaneseq
        %v1592 = vshrl.u32 %v1591, 7
        %v1593 = vsub.s32 0, %v1592
        %v1594 = vrot.slane %v1589, %v1593
        %v1597 = vunpack.c.l.b16 %v1587
        %v1598 = vunpack.c.l.b16 %v1594
        %v1599 = vpack.c.b16 %v1598, %v1597
        %1600 = vrot.lane.b32.xlu0 %v1599, 55
        %v1601 = vpop.permute.xlu0 %1600
        %v1602 = vrot.slane %v1601, 4
        %v1603 = vsel %vm415, %v1602, %v1601
        %v1606 = vmul.bf16 %v1554, %v1603
        %v1607 = vmul.bf16 %v1555, %v1602
        %1610 = vrot.lane.b32.xlu0 %v1606, 73
        %v1611 = vpop.permute.xlu0 %1610
        %1612 = vrot.lane.b32.xlu0 %v1607, 73
        %v1613 = vpop.permute.xlu0 %1612
        %v1614 = vrot.slane %v1611, 4
        %v1615 = vrot.slane %v1613, 4
        %v1616 = vsel %vm429, %v1614, %v1615
        %v1617 = vsel %vm431, %v1611, %v1616
        %1619 = vst [vmem:[#allocation3 + $0x90] sm:$0xff] %v1617
        %v1620 = vld [vmem:[#allocation2 + $0x4] sm:$0xff]
        %v1621 = vld [vmem:[#allocation2 + $0xc] sm:$0xf]
        %s1622 = scalar_lea.vmem %s1, 38
        %v1623 = vld [vmem:[%s1622] sm:$0x3]
        %v1626 = vunpack.c.l.s4 1966171168
        %v1627 = vunpack.c.0.s8 %v1626
        %v1628 = vlaneseq
        %v1629 = vshrl.u32 %v1628, 7
        %v1630 = vsub.s32 %v1627, %v1629
        %v1631 = vrot.slane %v1623, %v1630
        %v1632 = vcombine.high %v1631, %v1631
        %v1634 = vunpack.c.l.s4 1966171168
        %v1635 = vunpack.c.0.s8 %v1634
        %v1636 = vlaneseq
        %v1637 = vshrl.u32 %v1636, 7
        %v1638 = vsub.s32 %v1635, %v1637
        %v1639 = vrot.slane %v1631, %v1638
        %v1641 = vunpack.c.l.s4 1966171168
        %v1642 = vunpack.c.0.s8 %v1641
        %v1643 = vlaneseq
        %v1644 = vshrl.u32 %v1643, 7
        %v1645 = vsub.s32 %v1642, %v1644
        %v1646 = vrot.slane %v1632, %v1645
        %v1648 = vpack.i.b16 %v1639, %v1639
        %v1650 = vlaneseq
        %v1651 = vshrl.u32 %v1650, 7
        %v1652 = vsub.s32 0, %v1651
        %v1653 = vrot.slane %v1648, %v1652
        %v1655 = vpack.i.b16 %v1646, %v1646
        %v1657 = vlaneseq
        %v1658 = vshrl.u32 %v1657, 7
        %v1659 = vsub.s32 0, %v1658
        %v1660 = vrot.slane %v1655, %v1659
        %v1663 = vunpack.c.l.b16 %v1653
        %v1664 = vunpack.c.l.b16 %v1660
        %v1665 = vpack.c.b16 %v1664, %v1663
        %1666 = vrot.lane.b32.xlu0 %v1665, 56
        %v1667 = vpop.permute.xlu0 %1666
        %v1668 = vrot.slane %v1667, 4
        %v1669 = vsel %vm484, %v1668, %v1667
        %v1672 = vmul.bf16 %v1620, %v1669
        %v1673 = vmul.bf16 %v1621, %v1668
        %1676 = vrot.lane.b32.xlu0 %v1672, 72
        %v1677 = vpop.permute.xlu0 %1676
        %1678 = vrot.lane.b32.xlu0 %v1673, 72
        %v1679 = vpop.permute.xlu0 %1678
        %v1680 = vrot.slane %v1677, 4
        %v1681 = vrot.slane %v1679, 4
        %v1682 = vsel %vm429, %v1680, %v1681
        %v1683 = vsel %vm499, %v1677, %v1682
        %1685 = vst [vmem:[#allocation3 + $0x98] sm:$0xff] %v1683
        %v1686 = vld [vmem:[#allocation2 + $0x4] sm:$0xff]
        %v1687 = vld [vmem:[#allocation2 + $0xc] sm:$0xf]
        %s1688 = scalar_lea.vmem %s1, 40
        %v1689 = vld [vmem:[%s1688] sm:$0x3]
        %v1692 = vunpack.c.l.s4 1966171168
        %v1693 = vunpack.c.0.s8 %v1692
        %v1694 = vlaneseq
        %v1695 = vshrl.u32 %v1694, 7
        %v1696 = vsub.s32 %v1693, %v1695
        %v1697 = vrot.slane %v1689, %v1696
        %v1698 = vcombine.high %v1697, %v1697
        %v1700 = vunpack.c.l.s4 1966171168
        %v1701 = vunpack.c.0.s8 %v1700
        %v1702 = vlaneseq
        %v1703 = vshrl.u32 %v1702, 7
        %v1704 = vsub.s32 %v1701, %v1703
        %v1705 = vrot.slane %v1697, %v1704
        %v1707 = vunpack.c.l.s4 1966171168
        %v1708 = vunpack.c.0.s8 %v1707
        %v1709 = vlaneseq
        %v1710 = vshrl.u32 %v1709, 7
        %v1711 = vsub.s32 %v1708, %v1710
        %v1712 = vrot.slane %v1698, %v1711
        %v1714 = vpack.i.b16 %v1705, %v1705
        %v1716 = vlaneseq
        %v1717 = vshrl.u32 %v1716, 7
        %v1718 = vsub.s32 0, %v1717
        %v1719 = vrot.slane %v1714, %v1718
        %v1721 = vpack.i.b16 %v1712, %v1712
        %v1723 = vlaneseq
        %v1724 = vshrl.u32 %v1723, 7
        %v1725 = vsub.s32 0, %v1724
        %v1726 = vrot.slane %v1721, %v1725
        %v1729 = vunpack.c.l.b16 %v1719
        %v1730 = vunpack.c.l.b16 %v1726
        %v1731 = vpack.c.b16 %v1730, %v1729
        %1732 = vrot.lane.b32.xlu0 %v1731, 57
        %v1733 = vpop.permute.xlu0 %1732
        %v1734 = vrot.slane %v1733, 4
        %v1735 = vsel %vm552, %v1734, %v1733
        %v1738 = vmul.bf16 %v1686, %v1735
        %v1739 = vmul.bf16 %v1687, %v1734
        %1742 = vrot.lane.b32.xlu0 %v1738, 71
        %v1743 = vpop.permute.xlu0 %1742
        %1744 = vrot.lane.b32.xlu0 %v1739, 71
        %v1745 = vpop.permute.xlu0 %1744
        %v1746 = vrot.slane %v1743, 4
        %v1747 = vrot.slane %v1745, 4
        %v1748 = vsel %vm429, %v1746, %v1747
        %v1749 = vsel %vm567, %v1743, %v1748
        %1751 = vst [vmem:[#allocation3 + $0xa0] sm:$0xff] %v1749
        %v1752 = vld [vmem:[#allocation2 + $0x4] sm:$0xff]
        %v1753 = vld [vmem:[#allocation2 + $0xc] sm:$0xf]
        %s1754 = scalar_lea.vmem %s1, 42
        %v1755 = vld [vmem:[%s1754] sm:$0x3]
        %v1758 = vunpack.c.l.s4 1966171168
        %v1759 = vunpack.c.0.s8 %v1758
        %v1760 = vlaneseq
        %v1761 = vshrl.u32 %v1760, 7
        %v1762 = vsub.s32 %v1759, %v1761
        %v1763 = vrot.slane %v1755, %v1762
        %v1764 = vcombine.high %v1763, %v1763
        %v1766 = vunpack.c.l.s4 1966171168
        %v1767 = vunpack.c.0.s8 %v1766
        %v1768 = vlaneseq
        %v1769 = vshrl.u32 %v1768, 7
        %v1770 = vsub.s32 %v1767, %v1769
        %v1771 = vrot.slane %v1763, %v1770
        %v1773 = vunpack.c.l.s4 1966171168
        %v1774 = vunpack.c.0.s8 %v1773
        %v1775 = vlaneseq
        %v1776 = vshrl.u32 %v1775, 7
        %v1777 = vsub.s32 %v1774, %v1776
        %v1778 = vrot.slane %v1764, %v1777
        %v1780 = vpack.i.b16 %v1771, %v1771
        %v1782 = vlaneseq
        %v1783 = vshrl.u32 %v1782, 7
        %v1784 = vsub.s32 0, %v1783
        %v1785 = vrot.slane %v1780, %v1784
        %v1787 = vpack.i.b16 %v1778, %v1778
        %v1789 = vlaneseq
        %v1790 = vshrl.u32 %v1789, 7
        %v1791 = vsub.s32 0, %v1790
        %v1792 = vrot.slane %v1787, %v1791
        %v1795 = vunpack.c.l.b16 %v1785
        %v1796 = vunpack.c.l.b16 %v1792
        %v1797 = vpack.c.b16 %v1796, %v1795
        %1798 = vrot.lane.b32.xlu0 %v1797, 63
        %v1799 = vpop.permute.xlu0 %1798
        %v1800 = vrot.slane %v1799, 4
        %v1801 = vsel %vm620, %v1800, %v1799
        %v1804 = vmul.bf16 %v1752, %v1801
        %v1805 = vmul.bf16 %v1753, %v1800
        %1808 = vrot.lane.b32.xlu0 %v1804, 65
        %v1809 = vpop.permute.xlu0 %1808
        %1810 = vrot.lane.b32.xlu0 %v1805, 65
        %v1811 = vpop.permute.xlu0 %1810
        %v1812 = vrot.slane %v1809, 4
        %v1813 = vrot.slane %v1811, 4
        %v1814 = vsel %vm429, %v1812, %v1813
        %v1815 = vsel %vm635, %v1809, %v1814
        %1817 = vst [vmem:[#allocation3 + $0xa8] sm:$0xff] %v1815
        %v1818 = vld [vmem:[#allocation2 + $0x4] sm:$0xff]
        %v1819 = vld [vmem:[#allocation2 + $0xc] sm:$0xf]
        %s1820 = scalar_lea.vmem %s1, 44
        %v1821 = vld [vmem:[%s1820] sm:$0x3]
        %v1824 = vunpack.c.l.s4 1966171168
        %v1825 = vunpack.c.0.s8 %v1824
        %v1826 = vlaneseq
        %v1827 = vshrl.u32 %v1826, 7
        %v1828 = vsub.s32 %v1825, %v1827
        %v1829 = vrot.slane %v1821, %v1828
        %v1830 = vcombine.high %v1829, %v1829
        %v1832 = vunpack.c.l.s4 1966171168
        %v1833 = vunpack.c.0.s8 %v1832
        %v1834 = vlaneseq
        %v1835 = vshrl.u32 %v1834, 7
        %v1836 = vsub.s32 %v1833, %v1835
        %v1837 = vrot.slane %v1829, %v1836
        %v1839 = vunpack.c.l.s4 1966171168
        %v1840 = vunpack.c.0.s8 %v1839
        %v1841 = vlaneseq
        %v1842 = vshrl.u32 %v1841, 7
        %v1843 = vsub.s32 %v1840, %v1842
        %v1844 = vrot.slane %v1830, %v1843
        %v1846 = vpack.i.b16 %v1837, %v1837
        %v1848 = vlaneseq
        %v1849 = vshrl.u32 %v1848, 7
        %v1850 = vsub.s32 0, %v1849
        %v1851 = vrot.slane %v1846, %v1850
        %v1853 = vpack.i.b16 %v1844, %v1844
        %v1855 = vlaneseq
        %v1856 = vshrl.u32 %v1855, 7
        %v1857 = vsub.s32 0, %v1856
        %v1858 = vrot.slane %v1853, %v1857
        %v1861 = vunpack.c.l.b16 %v1851
        %v1862 = vunpack.c.l.b16 %v1858
        %v1863 = vpack.c.b16 %v1862, %v1861
        %1864 = vrot.lane.b32.xlu0 %v1863, 64
        %v1865 = vpop.permute.xlu0 %1864
        %v1866 = vrot.slane %v1865, 4
        %v1867 = vsel %vm688, %v1866, %v1865
        %v1870 = vmul.bf16 %v1818, %v1867
        %v1871 = vmul.bf16 %v1819, %v1866
        %1874 = vrot.lane.b32.xlu0 %v1870, 64
        %v1875 = vpop.permute.xlu0 %1874
        %1876 = vrot.lane.b32.xlu0 %v1871, 64
        %v1877 = vpop.permute.xlu0 %1876
        %v1878 = vrot.slane %v1875, 4
        %v1879 = vrot.slane %v1877, 4
        %v1880 = vsel %vm429, %v1878, %v1879
        %v1881 = vsel %vm688, %v1875, %v1880
        %1883 = vst [vmem:[#allocation3 + $0xb0] sm:$0xff] %v1881
        %v1884 = vld [vmem:[#allocation2 + $0x4] sm:$0xff]
        %v1885 = vld [vmem:[#allocation2 + $0xc] sm:$0xf]
        %s1886 = scalar_lea.vmem %s1, 46
        %v1887 = vld [vmem:[%s1886] sm:$0x3]
        %v1890 = vunpack.c.l.s4 1966171168
        %v1891 = vunpack.c.0.s8 %v1890
        %v1892 = vlaneseq
        %v1893 = vshrl.u32 %v1892, 7
        %v1894 = vsub.s32 %v1891, %v1893
        %v1895 = vrot.slane %v1887, %v1894
        %v1896 = vcombine.high %v1895, %v1895
        %v1898 = vunpack.c.l.s4 1966171168
        %v1899 = vunpack.c.0.s8 %v1898
        %v1900 = vlaneseq
        %v1901 = vshrl.u32 %v1900, 7
        %v1902 = vsub.s32 %v1899, %v1901
        %v1903 = vrot.slane %v1895, %v1902
        %v1905 = vunpack.c.l.s4 1966171168
        %v1906 = vunpack.c.0.s8 %v1905
        %v1907 = vlaneseq
        %v1908 = vshrl.u32 %v1907, 7
        %v1909 = vsub.s32 %v1906, %v1908
        %v1910 = vrot.slane %v1896, %v1909
        %v1912 = vpack.i.b16 %v1903, %v1903
        %v1914 = vlaneseq
        %v1915 = vshrl.u32 %v1914, 7
        %v1916 = vsub.s32 0, %v1915
        %v1917 = vrot.slane %v1912, %v1916
        %v1919 = vpack.i.b16 %v1910, %v1910
        %v1921 = vlaneseq
        %v1922 = vshrl.u32 %v1921, 7
        %v1923 = vsub.s32 0, %v1922
        %v1924 = vrot.slane %v1919, %v1923
        %v1927 = vunpack.c.l.b16 %v1917
        %v1928 = vunpack.c.l.b16 %v1924
        %v1929 = vpack.c.b16 %v1928, %v1927
        %1930 = vrot.lane.b32.xlu0 %v1929, 65
        %v1931 = vpop.permute.xlu0 %1930
        %v1932 = vrot.slane %v1931, 4
        %v1933 = vsel %vm635, %v1932, %v1931
        %v1936 = vmul.bf16 %v1884, %v1933
        %v1937 = vmul.bf16 %v1885, %v1932
        %1940 = vrot.lane.b32.xlu0 %v1936, 63
        %v1941 = vpop.permute.xlu0 %1940
        %1942 = vrot.lane.b32.xlu0 %v1937, 63
        %v1943 = vpop.permute.xlu0 %1942
        %v1944 = vrot.slane %v1941, 4
        %v1945 = vrot.slane %v1943, 4
        %v1946 = vsel %vm429, %v1944, %v1945
        %v1947 = vsel %vm620, %v1941, %v1946
        %1949 = vst [vmem:[#allocation3 + $0xb8] sm:$0xff] %v1947
        %v1950 = vld [vmem:[#allocation2 + $0x4] sm:$0xff]
        %v1951 = vld [vmem:[#allocation2 + $0xc] sm:$0xf]
        %s1952 = scalar_lea.vmem %s1, 48
        %v1953 = vld [vmem:[%s1952] sm:$0x3]
        %v1956 = vunpack.c.l.s4 1966171168
        %v1957 = vunpack.c.0.s8 %v1956
        %v1958 = vlaneseq
        %v1959 = vshrl.u32 %v1958, 7
        %v1960 = vsub.s32 %v1957, %v1959
        %v1961 = vrot.slane %v1953, %v1960
        %v1962 = vcombine.high %v1961, %v1961
        %v1964 = vunpack.c.l.s4 1966171168
        %v1965 = vunpack.c.0.s8 %v1964
        %v1966 = vlaneseq
        %v1967 = vshrl.u32 %v1966, 7
        %v1968 = vsub.s32 %v1965, %v1967
        %v1969 = vrot.slane %v1961, %v1968
        %v1971 = vunpack.c.l.s4 1966171168
        %v1972 = vunpack.c.0.s8 %v1971
        %v1973 = vlaneseq
        %v1974 = vshrl.u32 %v1973, 7
        %v1975 = vsub.s32 %v1972, %v1974
        %v1976 = vrot.slane %v1962, %v1975
        %v1978 = vpack.i.b16 %v1969, %v1969
        %v1980 = vlaneseq
        %v1981 = vshrl.u32 %v1980, 7
        %v1982 = vsub.s32 0, %v1981
        %v1983 = vrot.slane %v1978, %v1982
        %v1985 = vpack.i.b16 %v1976, %v1976
        %v1987 = vlaneseq
        %v1988 = vshrl.u32 %v1987, 7
        %v1989 = vsub.s32 0, %v1988
        %v1990 = vrot.slane %v1985, %v1989
        %v1993 = vunpack.c.l.b16 %v1983
        %v1994 = vunpack.c.l.b16 %v1990
        %v1995 = vpack.c.b16 %v1994, %v1993
        %1996 = vrot.lane.b32.xlu0 %v1995, 71
        %v1997 = vpop.permute.xlu0 %1996
        %v1998 = vrot.slane %v1997, 4
        %v1999 = vsel %vm567, %v1998, %v1997
        %v2002 = vmul.bf16 %v1950, %v1999
        %v2003 = vmul.bf16 %v1951, %v1998
        %2006 = vrot.lane.b32.xlu0 %v2002, 57
        %v2007 = vpop.permute.xlu0 %2006
        %2008 = vrot.lane.b32.xlu0 %v2003, 57
        %v2009 = vpop.permute.xlu0 %2008
        %v2010 = vrot.slane %v2007, 4
        %v2011 = vrot.slane %v2009, 4
        %v2012 = vsel %vm429, %v2010, %v2011
        %v2013 = vsel %vm552, %v2007, %v2012
        %2015 = vst [vmem:[#allocation3 + $0xc0] sm:$0xff] %v2013
        %v2016 = vld [vmem:[#allocation2 + $0x4] sm:$0xff]
        %v2017 = vld [vmem:[#allocation2 + $0xc] sm:$0xf]
        %s2018 = scalar_lea.vmem %s1, 50
        %v2019 = vld [vmem:[%s2018] sm:$0x3]
        %v2022 = vunpack.c.l.s4 1966171168
        %v2023 = vunpack.c.0.s8 %v2022
        %v2024 = vlaneseq
        %v2025 = vshrl.u32 %v2024, 7
        %v2026 = vsub.s32 %v2023, %v2025
        %v2027 = vrot.slane %v2019, %v2026
        %v2028 = vcombine.high %v2027, %v2027
        %v2030 = vunpack.c.l.s4 1966171168
        %v2031 = vunpack.c.0.s8 %v2030
        %v2032 = vlaneseq
        %v2033 = vshrl.u32 %v2032, 7
        %v2034 = vsub.s32 %v2031, %v2033
        %v2035 = vrot.slane %v2027, %v2034
        %v2037 = vunpack.c.l.s4 1966171168
        %v2038 = vunpack.c.0.s8 %v2037
        %v2039 = vlaneseq
        %v2040 = vshrl.u32 %v2039, 7
        %v2041 = vsub.s32 %v2038, %v2040
        %v2042 = vrot.slane %v2028, %v2041
        %v2044 = vpack.i.b16 %v2035, %v2035
        %v2046 = vlaneseq
        %v2047 = vshrl.u32 %v2046, 7
        %v2048 = vsub.s32 0, %v2047
        %v2049 = vrot.slane %v2044, %v2048
        %v2051 = vpack.i.b16 %v2042, %v2042
        %v2053 = vlaneseq
        %v2054 = vshrl.u32 %v2053, 7
        %v2055 = vsub.s32 0, %v2054
        %v2056 = vrot.slane %v2051, %v2055
        %v2059 = vunpack.c.l.b16 %v2049
        %v2060 = vunpack.c.l.b16 %v2056
        %v2061 = vpack.c.b16 %v2060, %v2059
        %2062 = vrot.lane.b32.xlu0 %v2061, 72
        %v2063 = vpop.permute.xlu0 %2062
        %v2064 = vrot.slane %v2063, 4
        %v2065 = vsel %vm499, %v2064, %v2063
        %v2068 = vmul.bf16 %v2016, %v2065
        %v2069 = vmul.bf16 %v2017, %v2064
        %2072 = vrot.lane.b32.xlu0 %v2068, 56
        %v2073 = vpop.permute.xlu0 %2072
        %2074 = vrot.lane.b32.xlu0 %v2069, 56
        %v2075 = vpop.permute.xlu0 %2074
        %v2076 = vrot.slane %v2073, 4
        %v2077 = vrot.slane %v2075, 4
        %v2078 = vsel %vm429, %v2076, %v2077
        %v2079 = vsel %vm484, %v2073, %v2078
        %2081 = vst [vmem:[#allocation3 + $0xc8] sm:$0xff] %v2079
        %v2082 = vld [vmem:[#allocation2 + $0x4] sm:$0xff]
        %v2083 = vld [vmem:[#allocation2 + $0xc] sm:$0xf]
        %s2084 = scalar_lea.vmem %s1, 52
        %v2085 = vld [vmem:[%s2084] sm:$0x3]
        %v2088 = vunpack.c.l.s4 1966171168
        %v2089 = vunpack.c.0.s8 %v2088
        %v2090 = vlaneseq
        %v2091 = vshrl.u32 %v2090, 7
        %v2092 = vsub.s32 %v2089, %v2091
        %v2093 = vrot.slane %v2085, %v2092
        %v2094 = vcombine.high %v2093, %v2093
        %v2096 = vunpack.c.l.s4 1966171168
        %v2097 = vunpack.c.0.s8 %v2096
        %v2098 = vlaneseq
        %v2099 = vshrl.u32 %v2098, 7
        %v2100 = vsub.s32 %v2097, %v2099
        %v2101 = vrot.slane %v2093, %v2100
        %v2103 = vunpack.c.l.s4 1966171168
        %v2104 = vunpack.c.0.s8 %v2103
        %v2105 = vlaneseq
        %v2106 = vshrl.u32 %v2105, 7
        %v2107 = vsub.s32 %v2104, %v2106
        %v2108 = vrot.slane %v2094, %v2107
        %v2110 = vpack.i.b16 %v2101, %v2101
        %v2112 = vlaneseq
        %v2113 = vshrl.u32 %v2112, 7
        %v2114 = vsub.s32 0, %v2113
        %v2115 = vrot.slane %v2110, %v2114
        %v2117 = vpack.i.b16 %v2108, %v2108
        %v2119 = vlaneseq
        %v2120 = vshrl.u32 %v2119, 7
        %v2121 = vsub.s32 0, %v2120
        %v2122 = vrot.slane %v2117, %v2121
        %v2125 = vunpack.c.l.b16 %v2115
        %v2126 = vunpack.c.l.b16 %v2122
        %v2127 = vpack.c.b16 %v2126, %v2125
        %2128 = vrot.lane.b32.xlu0 %v2127, 73
        %v2129 = vpop.permute.xlu0 %2128
        %v2130 = vrot.slane %v2129, 4
        %v2131 = vsel %vm431, %v2130, %v2129
        %v2134 = vmul.bf16 %v2082, %v2131
        %v2135 = vmul.bf16 %v2083, %v2130
        %2138 = vrot.lane.b32.xlu0 %v2134, 55
        %v2139 = vpop.permute.xlu0 %2138
        %2140 = vrot.lane.b32.xlu0 %v2135, 55
        %v2141 = vpop.permute.xlu0 %2140
        %v2142 = vrot.slane %v2139, 4
        %v2143 = vrot.slane %v2141, 4
        %v2144 = vsel %vm429, %v2142, %v2143
        %v2145 = vsel %vm415, %v2139, %v2144
        %2147 = vst [vmem:[#allocation3 + $0xd0] sm:$0xff] %v2145
        %v2148 = vld [vmem:[%s2] sm:$0xff]
        %v2149 = vld [vmem:[#allocation3] sm:$0xff]
        %v2150 = vld [vmem:[#allocation3 + $0x8] sm:$0xff]
        %v2151 = vld [vmem:[#allocation3 + $0x10] sm:$0xff]
        %v2152 = vld [vmem:[#allocation3 + $0x18] sm:$0xff]
        %v2153 = vld [vmem:[#allocation3 + $0x20] sm:$0xff]
        %v2154 = vld [vmem:[#allocation3 + $0x28] sm:$0xff]
        %v2155 = vld [vmem:[#allocation3 + $0x30] sm:$0xff]
        %v2156 = vld [vmem:[#allocation3 + $0x38] sm:$0xff]
        %v2157 = vld [vmem:[#allocation3 + $0x40] sm:$0xff]
        %v2158 = vld [vmem:[#allocation3 + $0x48] sm:$0xff]
        %v2159 = vld [vmem:[#allocation3 + $0x50] sm:$0xff]
        %v2160 = vld [vmem:[#allocation3 + $0x58] sm:$0xff]
        %v2161 = vld [vmem:[#allocation3 + $0x60] sm:$0xff]
        %v2162 = vld [vmem:[#allocation3 + $0x68] sm:$0xff]
        %v2163 = vld [vmem:[#allocation3 + $0x70] sm:$0xff]
        %v2164 = vld [vmem:[#allocation3 + $0x78] sm:$0xff]
        %v2165 = vld [vmem:[#allocation3 + $0x80] sm:$0xff]
        %v2166 = vld [vmem:[#allocation3 + $0x88] sm:$0xff]
        %v2167 = vld [vmem:[#allocation3 + $0x90] sm:$0xff]
        %v2168 = vld [vmem:[#allocation3 + $0x98] sm:$0xff]
        %v2169 = vld [vmem:[#allocation3 + $0xa0] sm:$0xff]
        %v2170 = vld [vmem:[#allocation3 + $0xa8] sm:$0xff]
        %v2171 = vld [vmem:[#allocation3 + $0xb0] sm:$0xff]
        %v2172 = vld [vmem:[#allocation3 + $0xb8] sm:$0xff]
        %v2173 = vld [vmem:[#allocation3 + $0xc0] sm:$0xff]
        %v2174 = vld [vmem:[#allocation3 + $0xc8] sm:$0xff]
        %v2175 = vld [vmem:[#allocation3 + $0xd0] sm:$0xff]
        %v2177 = vunpack.c.l.b16 %v2148
        %v2178 = vunpack.c.h.b16 %v2148
        %v2179 = vpack.c.b16 %v2177, %v2177
        %v2180 = vpack.c.b16 %v2178, %v2178
        %v2209 = vunpack.c.l.b16 %v2149
        %v2210 = vunpack.c.h.b16 %v2149
        %v2211 = vunpack.c.l.b16 %v2150
        %v2212 = vunpack.c.h.b16 %v2150
        %v2213 = vunpack.c.l.b16 %v2151
        %v2214 = vunpack.c.h.b16 %v2151
        %v2215 = vunpack.c.l.b16 %v2152
        %v2216 = vunpack.c.h.b16 %v2152
        %v2217 = vunpack.c.l.b16 %v2153
        %v2218 = vunpack.c.h.b16 %v2153
        %v2219 = vunpack.c.l.b16 %v2154
        %v2220 = vunpack.c.h.b16 %v2154
        %v2221 = vunpack.c.l.b16 %v2155
        %v2222 = vunpack.c.h.b16 %v2155
        %v2223 = vunpack.c.l.b16 %v2156
        %v2224 = vunpack.c.h.b16 %v2156
        %v2225 = vunpack.c.l.b16 %v2157
        %v2226 = vunpack.c.h.b16 %v2157
        %v2227 = vunpack.c.l.b16 %v2158
        %v2228 = vunpack.c.h.b16 %v2158
        %v2229 = vunpack.c.l.b16 %v2159
        %v2230 = vunpack.c.h.b16 %v2159
        %v2231 = vunpack.c.l.b16 %v2160
        %v2232 = vunpack.c.h.b16 %v2160
        %v2233 = vunpack.c.l.b16 %v2161
        %v2234 = vunpack.c.h.b16 %v2161
        %v2235 = vunpack.c.l.b16 %v2162
        %v2236 = vunpack.c.h.b16 %v2162
        %v2237 = vunpack.c.l.b16 %v2163
        %v2238 = vunpack.c.h.b16 %v2163
        %v2239 = vunpack.c.l.b16 %v2164
        %v2240 = vunpack.c.h.b16 %v2164
        %v2241 = vunpack.c.l.b16 %v2165
        %v2242 = vunpack.c.h.b16 %v2165
        %v2243 = vunpack.c.l.b16 %v2166
        %v2244 = vunpack.c.h.b16 %v2166
        %v2245 = vunpack.c.l.b16 %v2167
        %v2246 = vunpack.c.h.b16 %v2167
        %v2247 = vunpack.c.l.b16 %v2168
        %v2248 = vunpack.c.h.b16 %v2168
        %v2249 = vunpack.c.l.b16 %v2169
        %v2250 = vunpack.c.h.b16 %v2169
        %v2251 = vunpack.c.l.b16 %v2170
        %v2252 = vunpack.c.h.b16 %v2170
        %v2253 = vunpack.c.l.b16 %v2171
        %v2254 = vunpack.c.h.b16 %v2171
        %v2255 = vunpack.c.l.b16 %v2172
        %v2256 = vunpack.c.h.b16 %v2172
        %v2257 = vunpack.c.l.b16 %v2173
        %v2258 = vunpack.c.h.b16 %v2173
        %v2259 = vunpack.c.l.b16 %v2174
        %v2260 = vunpack.c.h.b16 %v2174
        %v2261 = vunpack.c.l.b16 %v2175
        %v2262 = vunpack.c.h.b16 %v2175
        %v2263 = vpack.c.b16 %v2211, %v2209
        %v2264 = vpack.c.b16 %v2212, %v2210
        %v2265 = vpack.c.b16 %v2215, %v2213
        %v2266 = vpack.c.b16 %v2216, %v2214
        %v2267 = vpack.c.b16 %v2219, %v2217
        %v2268 = vpack.c.b16 %v2220, %v2218
        %v2269 = vpack.c.b16 %v2223, %v2221
        %v2270 = vpack.c.b16 %v2224, %v2222
        %v2271 = vpack.c.b16 %v2227, %v2225
        %v2272 = vpack.c.b16 %v2228, %v2226
        %v2273 = vpack.c.b16 %v2231, %v2229
        %v2274 = vpack.c.b16 %v2232, %v2230
        %v2275 = vpack.c.b16 %v2235, %v2233
        %v2276 = vpack.c.b16 %v2236, %v2234
        %v2277 = vpack.c.b16 %v2239, %v2237
        %v2278 = vpack.c.b16 %v2240, %v2238
        %v2279 = vpack.c.b16 %v2243, %v2241
        %v2280 = vpack.c.b16 %v2244, %v2242
        %v2281 = vpack.c.b16 %v2247, %v2245
        %v2282 = vpack.c.b16 %v2248, %v2246
        %v2283 = vpack.c.b16 %v2251, %v2249
        %v2284 = vpack.c.b16 %v2252, %v2250
        %v2285 = vpack.c.b16 %v2255, %v2253
        %v2286 = vpack.c.b16 %v2256, %v2254
        %v2287 = vpack.c.b16 %v2259, %v2257
        %v2288 = vpack.c.b16 %v2260, %v2258
        %v2289 = vpack.c.b16 %v2261, %v2261
        %v2290 = vpack.c.b16 %v2262, %v2262
        %vm2317 = vcmask 719872
        %v2319 = vsel %vm2317, %v2180, 0
        %vm2321 = vcmask 1043456
        %v2323 = vsel %vm2321, %v2289, 0
        %v2326 = vsel %vm2321, %v2290, 0
        %2328 = vmatprep.subr.bf16.mxu0 %v2264
        %2329 = vmatpush1.bf16.msra.mxu0 %v2263
        %2330 = vmatprep.subr.bf16.mxu0 %v2266
        %2331 = vmatpush1.bf16.msra.mxu0 %v2265
        %2332 = vmatprep.subr.bf16.mxu0 %v2268
        %2333 = vmatpush1.bf16.msra.mxu0 %v2267
        %2334 = vmatprep.subr.bf16.mxu0 %v2270
        %2335 = vmatpush1.bf16.msra.mxu0 %v2269
        %2336 = vmatprep.subr.bf16.mxu0 %v2272
        %2337 = vmatpush1.bf16.msra.mxu0 %v2271
        %2338 = vmatprep.subr.bf16.mxu0 %v2274
        %2339 = vmatpush1.bf16.msra.mxu0 %v2273
        %2340 = vmatprep.subr.bf16.mxu0 %v2276
        %2341 = vmatpush1.bf16.msra.mxu0 %v2275
        %2342 = vmatprep.subr.bf16.mxu0 %v2278
        %2343 = vmatpush1.bf16.msra.mxu0 %v2277
        %2344 = vmatprep.subr.bf16.mxu0 %v2280
        %2345 = vmatpush1.bf16.msra.mxu0 %v2279
        %2346 = vmatprep.subr.bf16.mxu0 %v2282
        %2347 = vmatpush1.bf16.msra.mxu0 %v2281
        %2348 = vmatprep.subr.bf16.mxu0 %v2284
        %2349 = vmatpush1.bf16.msra.mxu0 %v2283
        %2350 = vmatprep.subr.bf16.mxu0 %v2286
        %2351 = vmatpush1.bf16.msra.mxu0 %v2285
        %2352 = vmatprep.subr.bf16.mxu0 %v2288
        %2353 = vmatpush1.bf16.msra.mxu0 %v2287
        %2354 = vmatprep.subr.bf16.mxu0 %v2326
        %2355 = vmatpush1.bf16.msra.mxu0 %v2323
        %2356 = vmatprep.subr.bf16.mxu0 0
        %2357 = vmatpush1.bf16.msra.mxu0 0
        %2358 = vmatprep.subr.bf16.mxu0 0
        %2359 = vmatpush1.bf16.msra.mxu0 0
        %2360 = vmatprep.mubr.bf16.mxu0 %v2319
        %2361 = vmatmul.mubr.bf16.gmra.mrb[0].mxu0 %v2179
        %v2362 = vpop.f32.mrb[0].mxu0
        %v2363 = vadd.f32 0.0, %v2362
        %v2364 = vpop.f32.mrb[0].mxu0
        %v2365 = vadd.f32 0.0, %v2364
        %v2366 = vpop.f32.mrb[0].mxu0
        %v2367 = vpop.f32.mrb[0].mxu0
        %2368 = vdwg.mxu0
        %v2369 = vmax.f32 %v2363, 0.0
        %v2370 = vmax.f32 %v2365, 0.0
        %v2371 = vadd.f32 %v2369, %v2370
        %2372 = vadd.xlane.f32.xlu0 %v2371
        %v2373 = vpop.xlane.xlu0 %2372
        %v2374 = vmul.f32 %v2369, %v2369
        %v2375 = vmul.f32 %v2370, %v2370
        %v2376 = vadd.f32 %v2374, %v2375
        %2377 = vadd.xlane.f32.xlu0 %v2376
        %v2378 = vpop.xlane.xlu0 %2377
        %v2379 = vld [vmem:[%s3] sm:$0xff]
        %vm2380 = vcmask 64512
        %v2382 = vsel %vm2380, %v2379, 0
        %2384 = vmatprep.subr.mxu0 0.0
        %2385 = vmatpush1.msra.mxu0 %v2373
        %2386 = vmatprep.subr.mxu0 0.0
        %2387 = vmatpush1.msra.mxu0 0.0
        %2388 = vmatprep.subr.mxu0 0.0
        %2389 = vmatpush1.msra.mxu0 0.0
        %2390 = vmatprep.subr.mxu0 0.0
        %2391 = vmatpush1.msra.mxu0 0.0
        %2392 = vmatprep.subr.mxu0 0.0
        %2393 = vmatpush1.msra.mxu0 0.0
        %2394 = vmatprep.subr.mxu0 0.0
        %2395 = vmatpush1.msra.mxu0 0.0
        %2396 = vmatprep.subr.mxu0 0.0
        %2397 = vmatpush1.msra.mxu0 0.0
        %2398 = vmatprep.subr.mxu0 0.0
        %2399 = vmatpush1.msra.mxu0 0.0
        %2400 = vmatprep.subr.mxu0 0.0
        %2401 = vmatpush1.msra.mxu0 0.0
        %2402 = vmatprep.subr.mxu0 0.0
        %2403 = vmatpush1.msra.mxu0 0.0
        %2404 = vmatprep.subr.mxu0 0.0
        %2405 = vmatpush1.msra.mxu0 0.0
        %2406 = vmatprep.subr.mxu0 0.0
        %2407 = vmatpush1.msra.mxu0 0.0
        %2408 = vmatprep.subr.mxu0 0.0
        %2409 = vmatpush1.msra.mxu0 0.0
        %2410 = vmatprep.subr.mxu0 0.0
        %2411 = vmatpush1.msra.mxu0 0.0
        %2412 = vmatprep.subr.mxu0 0.0
        %2413 = vmatpush1.msra.mxu0 0.0
        %2414 = vmatprep.subr.mxu0 0.0
        %2415 = vmatpush1.msra.mxu0 0.0
        %2416 = vmatprep.subr.mxu0 0.0
        %2417 = vmatpush1.msra.mxu0 0.0
        %2418 = vmatprep.subr.mxu0 0.0
        %2419 = vmatpush1.msra.mxu0 0.0
        %2420 = vmatprep.subr.mxu0 0.0
        %2421 = vmatpush1.msra.mxu0 0.0
        %2422 = vmatprep.subr.mxu0 0.0
        %2423 = vmatpush1.msra.mxu0 0.0
        %2424 = vmatprep.subr.mxu0 0.0
        %2425 = vmatpush1.msra.mxu0 0.0
        %2426 = vmatprep.subr.mxu0 0.0
        %2427 = vmatpush1.msra.mxu0 0.0
        %2428 = vmatprep.subr.mxu0 0.0
        %2429 = vmatpush1.msra.mxu0 0.0
        %2430 = vmatprep.subr.mxu0 0.0
        %2431 = vmatpush1.msra.mxu0 0.0
        %2432 = vmatprep.subr.mxu0 0.0
        %2433 = vmatpush1.msra.mxu0 0.0
        %2434 = vmatprep.subr.mxu0 0.0
        %2435 = vmatpush1.msra.mxu0 0.0
        %2436 = vmatprep.subr.mxu0 0.0
        %2437 = vmatpush1.msra.mxu0 0.0
        %2438 = vmatprep.subr.mxu0 0.0
        %2439 = vmatpush1.msra.mxu0 0.0
        %2440 = vmatprep.subr.mxu0 0.0
        %2441 = vmatpush1.msra.mxu0 0.0
        %2442 = vmatprep.subr.mxu0 0.0
        %2443 = vmatpush1.msra.mxu0 0.0
        %2444 = vmatprep.subr.mxu0 0.0
        %2445 = vmatpush1.msra.mxu0 0.0
        %2446 = vmatprep.subr.mxu0 0.0
        %2447 = vmatpush1.msra.mxu0 0.0
        %2448 = vmatprep.mubr.f32.mxu0 0.0
        %2449 = vmatmul.mubr.f32.gmra.mrb[0].mxu0 %v2382
        %v2450 = vpop.f32.mrb[0].mxu0
        %v2451 = vadd.f32 0.0, %v2450
        %v2452 = vpop.f32.mrb[0].mxu0
        %2453 = vdwg.mxu0
        %2454 = vmatprep.subr.mxu0 0.0
        %2455 = vmatpush1.msra.mxu0 %v2378
        %2456 = vmatprep.subr.mxu0 0.0
        %2457 = vmatpush1.msra.mxu0 0.0
        %2458 = vmatprep.subr.mxu0 0.0
        %2459 = vmatpush1.msra.mxu0 0.0
        %2460 = vmatprep.subr.mxu0 0.0
        %2461 = vmatpush1.msra.mxu0 0.0
        %2462 = vmatprep.subr.mxu0 0.0
        %2463 = vmatpush1.msra.mxu0 0.0
        %2464 = vmatprep.subr.mxu0 0.0
        %2465 = vmatpush1.msra.mxu0 0.0
        %2466 = vmatprep.subr.mxu0 0.0
        %2467 = vmatpush1.msra.mxu0 0.0
        %2468 = vmatprep.subr.mxu0 0.0
        %2469 = vmatpush1.msra.mxu0 0.0
        %2470 = vmatprep.subr.mxu0 0.0
        %2471 = vmatpush1.msra.mxu0 0.0
        %2472 = vmatprep.subr.mxu0 0.0
        %2473 = vmatpush1.msra.mxu0 0.0
        %2474 = vmatprep.subr.mxu0 0.0
        %2475 = vmatpush1.msra.mxu0 0.0
        %2476 = vmatprep.subr.mxu0 0.0
        %2477 = vmatpush1.msra.mxu0 0.0
        %2478 = vmatprep.subr.mxu0 0.0
        %2479 = vmatpush1.msra.mxu0 0.0
        %2480 = vmatprep.subr.mxu0 0.0
        %2481 = vmatpush1.msra.mxu0 0.0
        %2482 = vmatprep.subr.mxu0 0.0
        %2483 = vmatpush1.msra.mxu0 0.0
        %2484 = vmatprep.subr.mxu0 0.0
        %2485 = vmatpush1.msra.mxu0 0.0
        %2486 = vmatprep.subr.mxu0 0.0
        %2487 = vmatpush1.msra.mxu0 0.0
        %2488 = vmatprep.subr.mxu0 0.0
        %2489 = vmatpush1.msra.mxu0 0.0
        %2490 = vmatprep.subr.mxu0 0.0
        %2491 = vmatpush1.msra.mxu0 0.0
        %2492 = vmatprep.subr.mxu0 0.0
        %2493 = vmatpush1.msra.mxu0 0.0
        %2494 = vmatprep.subr.mxu0 0.0
        %2495 = vmatpush1.msra.mxu0 0.0
        %2496 = vmatprep.subr.mxu0 0.0
        %2497 = vmatpush1.msra.mxu0 0.0
        %2498 = vmatprep.subr.mxu0 0.0
        %2499 = vmatpush1.msra.mxu0 0.0
        %2500 = vmatprep.subr.mxu0 0.0
        %2501 = vmatpush1.msra.mxu0 0.0
        %2502 = vmatprep.subr.mxu0 0.0
        %2503 = vmatpush1.msra.mxu0 0.0
        %2504 = vmatprep.subr.mxu0 0.0
        %2505 = vmatpush1.msra.mxu0 0.0
        %2506 = vmatprep.subr.mxu0 0.0
        %2507 = vmatpush1.msra.mxu0 0.0
        %2508 = vmatprep.subr.mxu0 0.0
        %2509 = vmatpush1.msra.mxu0 0.0
        %2510 = vmatprep.subr.mxu0 0.0
        %2511 = vmatpush1.msra.mxu0 0.0
        %2512 = vmatprep.subr.mxu0 0.0
        %2513 = vmatpush1.msra.mxu0 0.0
        %2514 = vmatprep.subr.mxu0 0.0
        %2515 = vmatpush1.msra.mxu0 0.0
        %2516 = vmatprep.subr.mxu0 0.0
        %2517 = vmatpush1.msra.mxu0 0.0
        %2518 = vmatprep.mubr.f32.mxu0 0.0
        %2519 = vmatmul.mubr.f32.gmra.mrb[0].mxu0 %v2382
        %v2520 = vpop.f32.mrb[0].mxu0
        %v2521 = vadd.f32 0.0, %v2520
        %v2522 = vpop.f32.mrb[0].mxu0
        %2523 = vdwg.mxu0
        %v2524 = vmul.f32 %v2451, %v2451
        %v2525 = vsub.f32 %v2521, %v2524
        %v2526 = vmax.f32 %v2525, 0.0
        %v2527 = vadd.f32 %v2526, 1e-05
        %v2528 = vrsqrt.pop %v2527
        %v2529 = vld [vmem:[%s4] sm:$0xff]
        %v2530 = vmul.f32 %v2528, %v2529
        %v2531 = vld [vmem:[%s5] sm:$0xff]
        %v2532 = vmul.f32 %v2451, %v2530
        %v2533 = vsub.f32 %v2531, %v2532
        %2535 = vset.pattern.permute.xlu0 0
        %2536 = vperm.xlu0 %2535, %v2530
        %v2537 = vpop.permute.xlu0 %2536
        %v2539 = vmul.f32 %v2369, %v2537
        %v2540 = vmul.f32 %v2370, %v2537
        %2542 = vset.pattern.permute.xlu0 0
        %2543 = vperm.xlu0 %2542, %v2533
        %v2544 = vpop.permute.xlu0 %2543
        %v2546 = vadd.f32 %v2539, %v2544
        %v2547 = vadd.f32 %v2540, %v2544
        %v2548 = vpack.c.bf16 %v2546, %v2546
        %v2549 = vpack.c.bf16 %v2547, %v2547
        %v2552 = vunpack.c.l.b16 %v2548
        %v2553 = vunpack.c.l.b16 %v2549
        %v2554 = vpack.c.b16 %v2553, %v2552
        %2556 = vst [vmem:[#allocation2 + $0x4] sm:$0xff] %v2554
        %v2557 = vld [vmem:[#allocation2] sm:$0xff]
        %v2558 = vld [vmem:[#allocation2 + $0x8] sm:$0xf]
        %v2559 = vld [vmem:[%s1] sm:$0x3]
        %v2562 = vunpack.c.l.s4 1966171168
        %v2563 = vunpack.c.0.s8 %v2562
        %v2564 = vlaneseq
        %v2565 = vshrl.u32 %v2564, 7
        %v2566 = vsub.s32 %v2563, %v2565
        %v2567 = vrot.slane %v2559, %v2566
        %v2568 = vcombine.high %v2567, %v2567
        %v2570 = vunpack.c.l.s4 1966171168
        %v2571 = vunpack.c.0.s8 %v2570
        %v2572 = vlaneseq
        %v2573 = vshrl.u32 %v2572, 7
        %v2574 = vsub.s32 %v2571, %v2573
        %v2575 = vrot.slane %v2567, %v2574
        %v2577 = vunpack.c.l.s4 1966171168
        %v2578 = vunpack.c.0.s8 %v2577
        %v2579 = vlaneseq
        %v2580 = vshrl.u32 %v2579, 7
        %v2581 = vsub.s32 %v2578, %v2580
        %v2582 = vrot.slane %v2568, %v2581
        %v2584 = vpack.i.b16 %v2575, %v2575
        %v2586 = vlaneseq
        %v2587 = vshrl.u32 %v2586, 7
        %v2588 = vsub.s32 0, %v2587
        %v2589 = vrot.slane %v2584, %v2588
        %v2591 = vpack.i.b16 %v2582, %v2582
        %v2593 = vlaneseq
        %v2594 = vshrl.u32 %v2593, 7
        %v2595 = vsub.s32 0, %v2594
        %v2596 = vrot.slane %v2591, %v2595
        %v2599 = vunpack.c.l.b16 %v2589
        %v2600 = vunpack.c.l.b16 %v2596
        %v2601 = vpack.c.b16 %v2600, %v2599
        %2602 = vrot.lane.b32.xlu0 %v2601, 55
        %v2603 = vpop.permute.xlu0 %2602
        %v2604 = vrot.slane %v2603, 4
        %v2605 = vsel %vm415, %v2604, %v2603
        %v2608 = vmul.bf16 %v2557, %v2605
        %v2609 = vmul.bf16 %v2558, %v2604
        %2612 = vrot.lane.b32.xlu0 %v2608, 73
        %v2613 = vpop.permute.xlu0 %2612
        %2614 = vrot.lane.b32.xlu0 %v2609, 73
        %v2615 = vpop.permute.xlu0 %2614
        %v2616 = vrot.slane %v2613, 4
        %v2617 = vrot.slane %v2615, 4
        %v2618 = vsel %vm429, %v2616, %v2617
        %v2619 = vsel %vm431, %v2613, %v2618
        %2621 = vst [vmem:[#allocation3] sm:$0xff] %v2619
        %v2622 = vld [vmem:[#allocation2] sm:$0xff]
        %v2623 = vld [vmem:[#allocation2 + $0x8] sm:$0xf]
        %v2624 = vld [vmem:[%s437] sm:$0x3]
        %v2627 = vunpack.c.l.s4 1966171168
        %v2628 = vunpack.c.0.s8 %v2627
        %v2629 = vlaneseq
        %v2630 = vshrl.u32 %v2629, 7
        %v2631 = vsub.s32 %v2628, %v2630
        %v2632 = vrot.slane %v2624, %v2631
        %v2633 = vcombine.high %v2632, %v2632
        %v2635 = vunpack.c.l.s4 1966171168
        %v2636 = vunpack.c.0.s8 %v2635
        %v2637 = vlaneseq
        %v2638 = vshrl.u32 %v2637, 7
        %v2639 = vsub.s32 %v2636, %v2638
        %v2640 = vrot.slane %v2632, %v2639
        %v2642 = vunpack.c.l.s4 1966171168
        %v2643 = vunpack.c.0.s8 %v2642
        %v2644 = vlaneseq
        %v2645 = vshrl.u32 %v2644, 7
        %v2646 = vsub.s32 %v2643, %v2645
        %v2647 = vrot.slane %v2633, %v2646
        %v2649 = vpack.i.b16 %v2640, %v2640
        %v2651 = vlaneseq
        %v2652 = vshrl.u32 %v2651, 7
        %v2653 = vsub.s32 0, %v2652
        %v2654 = vrot.slane %v2649, %v2653
        %v2656 = vpack.i.b16 %v2647, %v2647
        %v2658 = vlaneseq
        %v2659 = vshrl.u32 %v2658, 7
        %v2660 = vsub.s32 0, %v2659
        %v2661 = vrot.slane %v2656, %v2660
        %v2664 = vunpack.c.l.b16 %v2654
        %v2665 = vunpack.c.l.b16 %v2661
        %v2666 = vpack.c.b16 %v2665, %v2664
        %2667 = vrot.lane.b32.xlu0 %v2666, 56
        %v2668 = vpop.permute.xlu0 %2667
        %v2669 = vrot.slane %v2668, 4
        %v2670 = vsel %vm484, %v2669, %v2668
        %v2673 = vmul.bf16 %v2622, %v2670
        %v2674 = vmul.bf16 %v2623, %v2669
        %2677 = vrot.lane.b32.xlu0 %v2673, 72
        %v2678 = vpop.permute.xlu0 %2677
        %2679 = vrot.lane.b32.xlu0 %v2674, 72
        %v2680 = vpop.permute.xlu0 %2679
        %v2681 = vrot.slane %v2678, 4
        %v2682 = vrot.slane %v2680, 4
        %v2683 = vsel %vm429, %v2681, %v2682
        %v2684 = vsel %vm499, %v2678, %v2683
        %2686 = vst [vmem:[#allocation3 + $0x8] sm:$0xff] %v2684
        %v2687 = vld [vmem:[#allocation2] sm:$0xff]
        %v2688 = vld [vmem:[#allocation2 + $0x8] sm:$0xf]
        %v2689 = vld [vmem:[%s505] sm:$0x3]
        %v2692 = vunpack.c.l.s4 1966171168
        %v2693 = vunpack.c.0.s8 %v2692
        %v2694 = vlaneseq
        %v2695 = vshrl.u32 %v2694, 7
        %v2696 = vsub.s32 %v2693, %v2695
        %v2697 = vrot.slane %v2689, %v2696
        %v2698 = vcombine.high %v2697, %v2697
        %v2700 = vunpack.c.l.s4 1966171168
        %v2701 = vunpack.c.0.s8 %v2700
        %v2702 = vlaneseq
        %v2703 = vshrl.u32 %v2702, 7
        %v2704 = vsub.s32 %v2701, %v2703
        %v2705 = vrot.slane %v2697, %v2704
        %v2707 = vunpack.c.l.s4 1966171168
        %v2708 = vunpack.c.0.s8 %v2707
        %v2709 = vlaneseq
        %v2710 = vshrl.u32 %v2709, 7
        %v2711 = vsub.s32 %v2708, %v2710
        %v2712 = vrot.slane %v2698, %v2711
        %v2714 = vpack.i.b16 %v2705, %v2705
        %v2716 = vlaneseq
        %v2717 = vshrl.u32 %v2716, 7
        %v2718 = vsub.s32 0, %v2717
        %v2719 = vrot.slane %v2714, %v2718
        %v2721 = vpack.i.b16 %v2712, %v2712
        %v2723 = vlaneseq
        %v2724 = vshrl.u32 %v2723, 7
        %v2725 = vsub.s32 0, %v2724
        %v2726 = vrot.slane %v2721, %v2725
        %v2729 = vunpack.c.l.b16 %v2719
        %v2730 = vunpack.c.l.b16 %v2726
        %v2731 = vpack.c.b16 %v2730, %v2729
        %2732 = vrot.lane.b32.xlu0 %v2731, 57
        %v2733 = vpop.permute.xlu0 %2732
        %v2734 = vrot.slane %v2733, 4
        %v2735 = vsel %vm552, %v2734, %v2733
        %v2738 = vmul.bf16 %v2687, %v2735
        %v2739 = vmul.bf16 %v2688, %v2734
        %2742 = vrot.lane.b32.xlu0 %v2738, 71
        %v2743 = vpop.permute.xlu0 %2742
        %2744 = vrot.lane.b32.xlu0 %v2739, 71
        %v2745 = vpop.permute.xlu0 %2744
        %v2746 = vrot.slane %v2743, 4
        %v2747 = vrot.slane %v2745, 4
        %v2748 = vsel %vm429, %v2746, %v2747
        %v2749 = vsel %vm567, %v2743, %v2748
        %2751 = vst [vmem:[#allocation3 + $0x10] sm:$0xff] %v2749
        %v2752 = vld [vmem:[#allocation2] sm:$0xff]
        %v2753 = vld [vmem:[#allocation2 + $0x8] sm:$0xf]
        %v2754 = vld [vmem:[%s573] sm:$0x3]
        %v2757 = vunpack.c.l.s4 1966171168
        %v2758 = vunpack.c.0.s8 %v2757
        %v2759 = vlaneseq
        %v2760 = vshrl.u32 %v2759, 7
        %v2761 = vsub.s32 %v2758, %v2760
        %v2762 = vrot.slane %v2754, %v2761
        %v2763 = vcombine.high %v2762, %v2762
        %v2765 = vunpack.c.l.s4 1966171168
        %v2766 = vunpack.c.0.s8 %v2765
        %v2767 = vlaneseq
        %v2768 = vshrl.u32 %v2767, 7
        %v2769 = vsub.s32 %v2766, %v2768
        %v2770 = vrot.slane %v2762, %v2769
        %v2772 = vunpack.c.l.s4 1966171168
        %v2773 = vunpack.c.0.s8 %v2772
        %v2774 = vlaneseq
        %v2775 = vshrl.u32 %v2774, 7
        %v2776 = vsub.s32 %v2773, %v2775
        %v2777 = vrot.slane %v2763, %v2776
        %v2779 = vpack.i.b16 %v2770, %v2770
        %v2781 = vlaneseq
        %v2782 = vshrl.u32 %v2781, 7
        %v2783 = vsub.s32 0, %v2782
        %v2784 = vrot.slane %v2779, %v2783
        %v2786 = vpack.i.b16 %v2777, %v2777
        %v2788 = vlaneseq
        %v2789 = vshrl.u32 %v2788, 7
        %v2790 = vsub.s32 0, %v2789
        %v2791 = vrot.slane %v2786, %v2790
        %v2794 = vunpack.c.l.b16 %v2784
        %v2795 = vunpack.c.l.b16 %v2791
        %v2796 = vpack.c.b16 %v2795, %v2794
        %2797 = vrot.lane.b32.xlu0 %v2796, 63
        %v2798 = vpop.permute.xlu0 %2797
        %v2799 = vrot.slane %v2798, 4
        %v2800 = vsel %vm620, %v2799, %v2798
        %v2803 = vmul.bf16 %v2752, %v2800
        %v2804 = vmul.bf16 %v2753, %v2799
        %2807 = vrot.lane.b32.xlu0 %v2803, 65
        %v2808 = vpop.permute.xlu0 %2807
        %2809 = vrot.lane.b32.xlu0 %v2804, 65
        %v2810 = vpop.permute.xlu0 %2809
        %v2811 = vrot.slane %v2808, 4
        %v2812 = vrot.slane %v2810, 4
        %v2813 = vsel %vm429, %v2811, %v2812
        %v2814 = vsel %vm635, %v2808, %v2813
        %2816 = vst [vmem:[#allocation3 + $0x18] sm:$0xff] %v2814
        %v2817 = vld [vmem:[#allocation2] sm:$0xff]
        %v2818 = vld [vmem:[#allocation2 + $0x8] sm:$0xf]
        %v2819 = vld [vmem:[%s641] sm:$0x3]
        %v2822 = vunpack.c.l.s4 1966171168
        %v2823 = vunpack.c.0.s8 %v2822
        %v2824 = vlaneseq
        %v2825 = vshrl.u32 %v2824, 7
        %v2826 = vsub.s32 %v2823, %v2825
        %v2827 = vrot.slane %v2819, %v2826
        %v2828 = vcombine.high %v2827, %v2827
        %v2830 = vunpack.c.l.s4 1966171168
        %v2831 = vunpack.c.0.s8 %v2830
        %v2832 = vlaneseq
        %v2833 = vshrl.u32 %v2832, 7
        %v2834 = vsub.s32 %v2831, %v2833
        %v2835 = vrot.slane %v2827, %v2834
        %v2837 = vunpack.c.l.s4 1966171168
        %v2838 = vunpack.c.0.s8 %v2837
        %v2839 = vlaneseq
        %v2840 = vshrl.u32 %v2839, 7
        %v2841 = vsub.s32 %v2838, %v2840
        %v2842 = vrot.slane %v2828, %v2841
        %v2844 = vpack.i.b16 %v2835, %v2835
        %v2846 = vlaneseq
        %v2847 = vshrl.u32 %v2846, 7
        %v2848 = vsub.s32 0, %v2847
        %v2849 = vrot.slane %v2844, %v2848
        %v2851 = vpack.i.b16 %v2842, %v2842
        %v2853 = vlaneseq
        %v2854 = vshrl.u32 %v2853, 7
        %v2855 = vsub.s32 0, %v2854
        %v2856 = vrot.slane %v2851, %v2855
        %v2859 = vunpack.c.l.b16 %v2849
        %v2860 = vunpack.c.l.b16 %v2856
        %v2861 = vpack.c.b16 %v2860, %v2859
        %2862 = vrot.lane.b32.xlu0 %v2861, 64
        %v2863 = vpop.permute.xlu0 %2862
        %v2864 = vrot.slane %v2863, 4
        %v2865 = vsel %vm688, %v2864, %v2863
        %v2868 = vmul.bf16 %v2817, %v2865
        %v2869 = vmul.bf16 %v2818, %v2864
        %2872 = vrot.lane.b32.xlu0 %v2868, 64
        %v2873 = vpop.permute.xlu0 %2872
        %2874 = vrot.lane.b32.xlu0 %v2869, 64
        %v2875 = vpop.permute.xlu0 %2874
        %v2876 = vrot.slane %v2873, 4
        %v2877 = vrot.slane %v2875, 4
        %v2878 = vsel %vm429, %v2876, %v2877
        %v2879 = vsel %vm688, %v2873, %v2878
        %2881 = vst [vmem:[#allocation3 + $0x20] sm:$0xff] %v2879
        %v2882 = vld [vmem:[#allocation2] sm:$0xff]
        %v2883 = vld [vmem:[#allocation2 + $0x8] sm:$0xf]
        %v2884 = vld [vmem:[%s708] sm:$0x3]
        %v2887 = vunpack.c.l.s4 1966171168
        %v2888 = vunpack.c.0.s8 %v2887
        %v2889 = vlaneseq
        %v2890 = vshrl.u32 %v2889, 7
        %v2891 = vsub.s32 %v2888, %v2890
        %v2892 = vrot.slane %v2884, %v2891
        %v2893 = vcombine.high %v2892, %v2892
        %v2895 = vunpack.c.l.s4 1966171168
        %v2896 = vunpack.c.0.s8 %v2895
        %v2897 = vlaneseq
        %v2898 = vshrl.u32 %v2897, 7
        %v2899 = vsub.s32 %v2896, %v2898
        %v2900 = vrot.slane %v2892, %v2899
        %v2902 = vunpack.c.l.s4 1966171168
        %v2903 = vunpack.c.0.s8 %v2902
        %v2904 = vlaneseq
        %v2905 = vshrl.u32 %v2904, 7
        %v2906 = vsub.s32 %v2903, %v2905
        %v2907 = vrot.slane %v2893, %v2906
        %v2909 = vpack.i.b16 %v2900, %v2900
        %v2911 = vlaneseq
        %v2912 = vshrl.u32 %v2911, 7
        %v2913 = vsub.s32 0, %v2912
        %v2914 = vrot.slane %v2909, %v2913
        %v2916 = vpack.i.b16 %v2907, %v2907
        %v2918 = vlaneseq
        %v2919 = vshrl.u32 %v2918, 7
        %v2920 = vsub.s32 0, %v2919
        %v2921 = vrot.slane %v2916, %v2920
        %v2924 = vunpack.c.l.b16 %v2914
        %v2925 = vunpack.c.l.b16 %v2921
        %v2926 = vpack.c.b16 %v2925, %v2924
        %2927 = vrot.lane.b32.xlu0 %v2926, 65
        %v2928 = vpop.permute.xlu0 %2927
        %v2929 = vrot.slane %v2928, 4
        %v2930 = vsel %vm635, %v2929, %v2928
        %v2933 = vmul.bf16 %v2882, %v2930
        %v2934 = vmul.bf16 %v2883, %v2929
        %2937 = vrot.lane.b32.xlu0 %v2933, 63
        %v2938 = vpop.permute.xlu0 %2937
        %2939 = vrot.lane.b32.xlu0 %v2934, 63
        %v2940 = vpop.permute.xlu0 %2939
        %v2941 = vrot.slane %v2938, 4
        %v2942 = vrot.slane %v2940, 4
        %v2943 = vsel %vm429, %v2941, %v2942
        %v2944 = vsel %vm620, %v2938, %v2943
        %2946 = vst [vmem:[#allocation3 + $0x28] sm:$0xff] %v2944
        %v2947 = vld [vmem:[#allocation2] sm:$0xff]
        %v2948 = vld [vmem:[#allocation2 + $0x8] sm:$0xf]
        %v2949 = vld [vmem:[%s774] sm:$0x3]
        %v2952 = vunpack.c.l.s4 1966171168
        %v2953 = vunpack.c.0.s8 %v2952
        %v2954 = vlaneseq
        %v2955 = vshrl.u32 %v2954, 7
        %v2956 = vsub.s32 %v2953, %v2955
        %v2957 = vrot.slane %v2949, %v2956
        %v2958 = vcombine.high %v2957, %v2957
        %v2960 = vunpack.c.l.s4 1966171168
        %v2961 = vunpack.c.0.s8 %v2960
        %v2962 = vlaneseq
        %v2963 = vshrl.u32 %v2962, 7
        %v2964 = vsub.s32 %v2961, %v2963
        %v2965 = vrot.slane %v2957, %v2964
        %v2967 = vunpack.c.l.s4 1966171168
        %v2968 = vunpack.c.0.s8 %v2967
        %v2969 = vlaneseq
        %v2970 = vshrl.u32 %v2969, 7
        %v2971 = vsub.s32 %v2968, %v2970
        %v2972 = vrot.slane %v2958, %v2971
        %v2974 = vpack.i.b16 %v2965, %v2965
        %v2976 = vlaneseq
        %v2977 = vshrl.u32 %v2976, 7
        %v2978 = vsub.s32 0, %v2977
        %v2979 = vrot.slane %v2974, %v2978
        %v2981 = vpack.i.b16 %v2972, %v2972
        %v2983 = vlaneseq
        %v2984 = vshrl.u32 %v2983, 7
        %v2985 = vsub.s32 0, %v2984
        %v2986 = vrot.slane %v2981, %v2985
        %v2989 = vunpack.c.l.b16 %v2979
        %v2990 = vunpack.c.l.b16 %v2986
        %v2991 = vpack.c.b16 %v2990, %v2989
        %2992 = vrot.lane.b32.xlu0 %v2991, 71
        %v2993 = vpop.permute.xlu0 %2992
        %v2994 = vrot.slane %v2993, 4
        %v2995 = vsel %vm567, %v2994, %v2993
        %v2998 = vmul.bf16 %v2947, %v2995
        %v2999 = vmul.bf16 %v2948, %v2994
        %3002 = vrot.lane.b32.xlu0 %v2998, 57
        %v3003 = vpop.permute.xlu0 %3002
        %3004 = vrot.lane.b32.xlu0 %v2999, 57
        %v3005 = vpop.permute.xlu0 %3004
        %v3006 = vrot.slane %v3003, 4
        %v3007 = vrot.slane %v3005, 4
        %v3008 = vsel %vm429, %v3006, %v3007
        %v3009 = vsel %vm552, %v3003, %v3008
        %3011 = vst [vmem:[#allocation3 + $0x30] sm:$0xff] %v3009
        %v3012 = vld [vmem:[#allocation2] sm:$0xff]
        %v3013 = vld [vmem:[#allocation2 + $0x8] sm:$0xf]
        %v3014 = vld [vmem:[%s840] sm:$0x3]
        %v3017 = vunpack.c.l.s4 1966171168
        %v3018 = vunpack.c.0.s8 %v3017
        %v3019 = vlaneseq
        %v3020 = vshrl.u32 %v3019, 7
        %v3021 = vsub.s32 %v3018, %v3020
        %v3022 = vrot.slane %v3014, %v3021
        %v3023 = vcombine.high %v3022, %v3022
        %v3025 = vunpack.c.l.s4 1966171168
        %v3026 = vunpack.c.0.s8 %v3025
        %v3027 = vlaneseq
        %v3028 = vshrl.u32 %v3027, 7
        %v3029 = vsub.s32 %v3026, %v3028
        %v3030 = vrot.slane %v3022, %v3029
        %v3032 = vunpack.c.l.s4 1966171168
        %v3033 = vunpack.c.0.s8 %v3032
        %v3034 = vlaneseq
        %v3035 = vshrl.u32 %v3034, 7
        %v3036 = vsub.s32 %v3033, %v3035
        %v3037 = vrot.slane %v3023, %v3036
        %v3039 = vpack.i.b16 %v3030, %v3030
        %v3041 = vlaneseq
        %v3042 = vshrl.u32 %v3041, 7
        %v3043 = vsub.s32 0, %v3042
        %v3044 = vrot.slane %v3039, %v3043
        %v3046 = vpack.i.b16 %v3037, %v3037
        %v3048 = vlaneseq
        %v3049 = vshrl.u32 %v3048, 7
        %v3050 = vsub.s32 0, %v3049
        %v3051 = vrot.slane %v3046, %v3050
        %v3054 = vunpack.c.l.b16 %v3044
        %v3055 = vunpack.c.l.b16 %v3051
        %v3056 = vpack.c.b16 %v3055, %v3054
        %3057 = vrot.lane.b32.xlu0 %v3056, 72
        %v3058 = vpop.permute.xlu0 %3057
        %v3059 = vrot.slane %v3058, 4
        %v3060 = vsel %vm499, %v3059, %v3058
        %v3063 = vmul.bf16 %v3012, %v3060
        %v3064 = vmul.bf16 %v3013, %v3059
        %3067 = vrot.lane.b32.xlu0 %v3063, 56
        %v3068 = vpop.permute.xlu0 %3067
        %3069 = vrot.lane.b32.xlu0 %v3064, 56
        %v3070 = vpop.permute.xlu0 %3069
        %v3071 = vrot.slane %v3068, 4
        %v3072 = vrot.slane %v3070, 4
        %v3073 = vsel %vm429, %v3071, %v3072
        %v3074 = vsel %vm484, %v3068, %v3073
        %3076 = vst [vmem:[#allocation3 + $0x38] sm:$0xff] %v3074
        %v3077 = vld [vmem:[#allocation2] sm:$0xff]
        %v3078 = vld [vmem:[#allocation2 + $0x8] sm:$0xf]
        %v3079 = vld [vmem:[%s906] sm:$0x3]
        %v3082 = vunpack.c.l.s4 1966171168
        %v3083 = vunpack.c.0.s8 %v3082
        %v3084 = vlaneseq
        %v3085 = vshrl.u32 %v3084, 7
        %v3086 = vsub.s32 %v3083, %v3085
        %v3087 = vrot.slane %v3079, %v3086
        %v3088 = vcombine.high %v3087, %v3087
        %v3090 = vunpack.c.l.s4 1966171168
        %v3091 = vunpack.c.0.s8 %v3090
        %v3092 = vlaneseq
        %v3093 = vshrl.u32 %v3092, 7
        %v3094 = vsub.s32 %v3091, %v3093
        %v3095 = vrot.slane %v3087, %v3094
        %v3097 = vunpack.c.l.s4 1966171168
        %v3098 = vunpack.c.0.s8 %v3097
        %v3099 = vlaneseq
        %v3100 = vshrl.u32 %v3099, 7
        %v3101 = vsub.s32 %v3098, %v3100
        %v3102 = vrot.slane %v3088, %v3101
        %v3104 = vpack.i.b16 %v3095, %v3095
        %v3106 = vlaneseq
        %v3107 = vshrl.u32 %v3106, 7
        %v3108 = vsub.s32 0, %v3107
        %v3109 = vrot.slane %v3104, %v3108
        %v3111 = vpack.i.b16 %v3102, %v3102
        %v3113 = vlaneseq
        %v3114 = vshrl.u32 %v3113, 7
        %v3115 = vsub.s32 0, %v3114
        %v3116 = vrot.slane %v3111, %v3115
        %v3119 = vunpack.c.l.b16 %v3109
        %v3120 = vunpack.c.l.b16 %v3116
        %v3121 = vpack.c.b16 %v3120, %v3119
        %3122 = vrot.lane.b32.xlu0 %v3121, 73
        %v3123 = vpop.permute.xlu0 %3122
        %v3124 = vrot.slane %v3123, 4
        %v3125 = vsel %vm431, %v3124, %v3123
        %v3128 = vmul.bf16 %v3077, %v3125
        %v3129 = vmul.bf16 %v3078, %v3124
        %3132 = vrot.lane.b32.xlu0 %v3128, 55
        %v3133 = vpop.permute.xlu0 %3132
        %3134 = vrot.lane.b32.xlu0 %v3129, 55
        %v3135 = vpop.permute.xlu0 %3134
        %v3136 = vrot.slane %v3133, 4
        %v3137 = vrot.slane %v3135, 4
        %v3138 = vsel %vm429, %v3136, %v3137
        %v3139 = vsel %vm415, %v3133, %v3138
        %3141 = vst [vmem:[#allocation3 + $0x40] sm:$0xff] %v3139
        %v3142 = vld [vmem:[#allocation2] sm:$0xff]
        %v3143 = vld [vmem:[#allocation2 + $0x8] sm:$0xf]
        %v3144 = vld [vmem:[%s972] sm:$0x3]
        %v3147 = vunpack.c.l.s4 1966171168
        %v3148 = vunpack.c.0.s8 %v3147
        %v3149 = vlaneseq
        %v3150 = vshrl.u32 %v3149, 7
        %v3151 = vsub.s32 %v3148, %v3150
        %v3152 = vrot.slane %v3144, %v3151
        %v3153 = vcombine.high %v3152, %v3152
        %v3155 = vunpack.c.l.s4 1966171168
        %v3156 = vunpack.c.0.s8 %v3155
        %v3157 = vlaneseq
        %v3158 = vshrl.u32 %v3157, 7
        %v3159 = vsub.s32 %v3156, %v3158
        %v3160 = vrot.slane %v3152, %v3159
        %v3162 = vunpack.c.l.s4 1966171168
        %v3163 = vunpack.c.0.s8 %v3162
        %v3164 = vlaneseq
        %v3165 = vshrl.u32 %v3164, 7
        %v3166 = vsub.s32 %v3163, %v3165
        %v3167 = vrot.slane %v3153, %v3166
        %v3169 = vpack.i.b16 %v3160, %v3160
        %v3171 = vlaneseq
        %v3172 = vshrl.u32 %v3171, 7
        %v3173 = vsub.s32 0, %v3172
        %v3174 = vrot.slane %v3169, %v3173
        %v3176 = vpack.i.b16 %v3167, %v3167
        %v3178 = vlaneseq
        %v3179 = vshrl.u32 %v3178, 7
        %v3180 = vsub.s32 0, %v3179
        %v3181 = vrot.slane %v3176, %v3180
        %v3184 = vunpack.c.l.b16 %v3174
        %v3185 = vunpack.c.l.b16 %v3181
        %v3186 = vpack.c.b16 %v3185, %v3184
        %3187 = vrot.lane.b32.xlu0 %v3186, 119
        %v3188 = vpop.permute.xlu0 %3187
        %v3189 = vrot.slane %v3188, 4
        %v3190 = vsel %vm1019, %v3189, %v3188
        %v3193 = vmul.bf16 %v3142, %v3190
        %v3194 = vmul.bf16 %v3143, %v3189
        %3197 = vrot.lane.b32.xlu0 %v3193, 9
        %v3198 = vpop.permute.xlu0 %3197
        %3199 = vrot.lane.b32.xlu0 %v3194, 9
        %v3200 = vpop.permute.xlu0 %3199
        %v3201 = vrot.slane %v3198, 4
        %v3202 = vrot.slane %v3200, 4
        %v3203 = vsel %vm429, %v3201, %v3202
        %v3204 = vsel %vm1034, %v3198, %v3203
        %3206 = vst [vmem:[#allocation3 + $0x48] sm:$0xff] %v3204
        %v3207 = vld [vmem:[#allocation2] sm:$0xff]
        %v3208 = vld [vmem:[#allocation2 + $0x8] sm:$0xf]
        %v3209 = vld [vmem:[%s1040] sm:$0x3]
        %v3212 = vunpack.c.l.s4 1966171168
        %v3213 = vunpack.c.0.s8 %v3212
        %v3214 = vlaneseq
        %v3215 = vshrl.u32 %v3214, 7
        %v3216 = vsub.s32 %v3213, %v3215
        %v3217 = vrot.slane %v3209, %v3216
        %v3218 = vcombine.high %v3217, %v3217
        %v3220 = vunpack.c.l.s4 1966171168
        %v3221 = vunpack.c.0.s8 %v3220
        %v3222 = vlaneseq
        %v3223 = vshrl.u32 %v3222, 7
        %v3224 = vsub.s32 %v3221, %v3223
        %v3225 = vrot.slane %v3217, %v3224
        %v3227 = vunpack.c.l.s4 1966171168
        %v3228 = vunpack.c.0.s8 %v3227
        %v3229 = vlaneseq
        %v3230 = vshrl.u32 %v3229, 7
        %v3231 = vsub.s32 %v3228, %v3230
        %v3232 = vrot.slane %v3218, %v3231
        %v3234 = vpack.i.b16 %v3225, %v3225
        %v3236 = vlaneseq
        %v3237 = vshrl.u32 %v3236, 7
        %v3238 = vsub.s32 0, %v3237
        %v3239 = vrot.slane %v3234, %v3238
        %v3241 = vpack.i.b16 %v3232, %v3232
        %v3243 = vlaneseq
        %v3244 = vshrl.u32 %v3243, 7
        %v3245 = vsub.s32 0, %v3244
        %v3246 = vrot.slane %v3241, %v3245
        %v3249 = vunpack.c.l.b16 %v3239
        %v3250 = vunpack.c.l.b16 %v3246
        %v3251 = vpack.c.b16 %v3250, %v3249
        %3252 = vrot.lane.b32.xlu0 %v3251, 120
        %v3253 = vpop.permute.xlu0 %3252
        %v3254 = vrot.slane %v3253, 4
        %v3255 = vsel %vm1087, %v3254, %v3253
        %v3258 = vmul.bf16 %v3207, %v3255
        %v3259 = vmul.bf16 %v3208, %v3254
        %3262 = vrot.lane.b32.xlu0 %v3258, 8
        %v3263 = vpop.permute.xlu0 %3262
        %3264 = vrot.lane.b32.xlu0 %v3259, 8
        %v3265 = vpop.permute.xlu0 %3264
        %v3266 = vrot.slane %v3263, 4
        %v3267 = vrot.slane %v3265, 4
        %v3268 = vsel %vm429, %v3266, %v3267
        %v3269 = vsel %vm1102, %v3263, %v3268
        %3271 = vst [vmem:[#allocation3 + $0x50] sm:$0xff] %v3269
        %v3272 = vld [vmem:[#allocation2] sm:$0xff]
        %v3273 = vld [vmem:[#allocation2 + $0x8] sm:$0xf]
        %v3274 = vld [vmem:[%s1108] sm:$0x3]
        %v3277 = vunpack.c.l.s4 1966171168
        %v3278 = vunpack.c.0.s8 %v3277
        %v3279 = vlaneseq
        %v3280 = vshrl.u32 %v3279, 7
        %v3281 = vsub.s32 %v3278, %v3280
        %v3282 = vrot.slane %v3274, %v3281
        %v3283 = vcombine.high %v3282, %v3282
        %v3285 = vunpack.c.l.s4 1966171168
        %v3286 = vunpack.c.0.s8 %v3285
        %v3287 = vlaneseq
        %v3288 = vshrl.u32 %v3287, 7
        %v3289 = vsub.s32 %v3286, %v3288
        %v3290 = vrot.slane %v3282, %v3289
        %v3292 = vunpack.c.l.s4 1966171168
        %v3293 = vunpack.c.0.s8 %v3292
        %v3294 = vlaneseq
        %v3295 = vshrl.u32 %v3294, 7
        %v3296 = vsub.s32 %v3293, %v3295
        %v3297 = vrot.slane %v3283, %v3296
        %v3299 = vpack.i.b16 %v3290, %v3290
        %v3301 = vlaneseq
        %v3302 = vshrl.u32 %v3301, 7
        %v3303 = vsub.s32 0, %v3302
        %v3304 = vrot.slane %v3299, %v3303
        %v3306 = vpack.i.b16 %v3297, %v3297
        %v3308 = vlaneseq
        %v3309 = vshrl.u32 %v3308, 7
        %v3310 = vsub.s32 0, %v3309
        %v3311 = vrot.slane %v3306, %v3310
        %v3314 = vunpack.c.l.b16 %v3304
        %v3315 = vunpack.c.l.b16 %v3311
        %v3316 = vpack.c.b16 %v3315, %v3314
        %3317 = vrot.lane.b32.xlu0 %v3316, 121
        %v3318 = vpop.permute.xlu0 %3317
        %v3319 = vrot.slane %v3318, 4
        %v3320 = vsel %vm1155, %v3319, %v3318
        %v3323 = vmul.bf16 %v3272, %v3320
        %v3324 = vmul.bf16 %v3273, %v3319
        %3327 = vrot.lane.b32.xlu0 %v3323, 7
        %v3328 = vpop.permute.xlu0 %3327
        %3329 = vrot.lane.b32.xlu0 %v3324, 7
        %v3330 = vpop.permute.xlu0 %3329
        %v3331 = vrot.slane %v3328, 4
        %v3332 = vrot.slane %v3330, 4
        %v3333 = vsel %vm429, %v3331, %v3332
        %v3334 = vsel %vm1170, %v3328, %v3333
        %3336 = vst [vmem:[#allocation3 + $0x58] sm:$0xff] %v3334
        %v3337 = vld [vmem:[#allocation2] sm:$0xff]
        %v3338 = vld [vmem:[#allocation2 + $0x8] sm:$0xf]
        %v3339 = vld [vmem:[%s1176] sm:$0x3]
        %v3342 = vunpack.c.l.s4 1966171168
        %v3343 = vunpack.c.0.s8 %v3342
        %v3344 = vlaneseq
        %v3345 = vshrl.u32 %v3344, 7
        %v3346 = vsub.s32 %v3343, %v3345
        %v3347 = vrot.slane %v3339, %v3346
        %v3348 = vcombine.high %v3347, %v3347
        %v3350 = vunpack.c.l.s4 1966171168
        %v3351 = vunpack.c.0.s8 %v3350
        %v3352 = vlaneseq
        %v3353 = vshrl.u32 %v3352, 7
        %v3354 = vsub.s32 %v3351, %v3353
        %v3355 = vrot.slane %v3347, %v3354
        %v3357 = vunpack.c.l.s4 1966171168
        %v3358 = vunpack.c.0.s8 %v3357
        %v3359 = vlaneseq
        %v3360 = vshrl.u32 %v3359, 7
        %v3361 = vsub.s32 %v3358, %v3360
        %v3362 = vrot.slane %v3348, %v3361
        %v3364 = vpack.i.b16 %v3355, %v3355
        %v3366 = vlaneseq
        %v3367 = vshrl.u32 %v3366, 7
        %v3368 = vsub.s32 0, %v3367
        %v3369 = vrot.slane %v3364, %v3368
        %v3371 = vpack.i.b16 %v3362, %v3362
        %v3373 = vlaneseq
        %v3374 = vshrl.u32 %v3373, 7
        %v3375 = vsub.s32 0, %v3374
        %v3376 = vrot.slane %v3371, %v3375
        %v3379 = vunpack.c.l.b16 %v3369
        %v3380 = vunpack.c.l.b16 %v3376
        %v3381 = vpack.c.b16 %v3380, %v3379
        %3382 = vrot.lane.b32.xlu0 %v3381, 127
        %v3383 = vpop.permute.xlu0 %3382
        %v3384 = vrot.slane %v3383, 4
        %v3385 = vsel %vm1223, %v3384, %v3383
        %v3388 = vmul.bf16 %v3337, %v3385
        %v3389 = vmul.bf16 %v3338, %v3384
        %3392 = vrot.lane.b32.xlu0 %v3388, 1
        %v3393 = vpop.permute.xlu0 %3392
        %3394 = vrot.lane.b32.xlu0 %v3389, 1
        %v3395 = vpop.permute.xlu0 %3394
        %v3396 = vrot.slane %v3393, 4
        %v3397 = vrot.slane %v3395, 4
        %v3398 = vsel %vm429, %v3396, %v3397
        %v3399 = vsel %vm1238, %v3393, %v3398
        %3401 = vst [vmem:[#allocation3 + $0x60] sm:$0xff] %v3399
        %v3402 = vld [vmem:[#allocation2 + $0x4] sm:$0xff]
        %v3403 = vld [vmem:[%s1243] sm:$0x3]
        %v3406 = vunpack.c.l.s4 1966171168
        %v3407 = vunpack.c.0.s8 %v3406
        %v3408 = vlaneseq
        %v3409 = vshrl.u32 %v3408, 7
        %v3410 = vsub.s32 %v3407, %v3409
        %v3411 = vrot.slane %v3403, %v3410
        %v3412 = vcombine.high %v3411, %v3411
        %v3414 = vunpack.c.l.s4 1966171168
        %v3415 = vunpack.c.0.s8 %v3414
        %v3416 = vlaneseq
        %v3417 = vshrl.u32 %v3416, 7
        %v3418 = vsub.s32 %v3415, %v3417
        %v3419 = vrot.slane %v3411, %v3418
        %v3421 = vunpack.c.l.s4 1966171168
        %v3422 = vunpack.c.0.s8 %v3421
        %v3423 = vlaneseq
        %v3424 = vshrl.u32 %v3423, 7
        %v3425 = vsub.s32 %v3422, %v3424
        %v3426 = vrot.slane %v3412, %v3425
        %v3428 = vpack.i.b16 %v3419, %v3419
        %v3430 = vlaneseq
        %v3431 = vshrl.u32 %v3430, 7
        %v3432 = vsub.s32 0, %v3431
        %v3433 = vrot.slane %v3428, %v3432
        %v3435 = vpack.i.b16 %v3426, %v3426
        %v3437 = vlaneseq
        %v3438 = vshrl.u32 %v3437, 7
        %v3439 = vsub.s32 0, %v3438
        %v3440 = vrot.slane %v3435, %v3439
        %v3443 = vunpack.c.l.b16 %v3433
        %v3444 = vunpack.c.l.b16 %v3440
        %v3445 = vpack.c.b16 %v3444, %v3443
        %v3447 = vmul.bf16 %v3402, %v3445
        %3448 = vst [vmem:[#allocation3 + $0x68] sm:$0xff] %v3447
        %v3449 = vld [vmem:[#allocation2 + $0x4] sm:$0xff]
        %v3450 = vld [vmem:[#allocation2 + $0xc] sm:$0xf]
        %v3451 = vld [vmem:[%s1292] sm:$0x3]
        %v3454 = vunpack.c.l.s4 1966171168
        %v3455 = vunpack.c.0.s8 %v3454
        %v3456 = vlaneseq
        %v3457 = vshrl.u32 %v3456, 7
        %v3458 = vsub.s32 %v3455, %v3457
        %v3459 = vrot.slane %v3451, %v3458
        %v3460 = vcombine.high %v3459, %v3459
        %v3462 = vunpack.c.l.s4 1966171168
        %v3463 = vunpack.c.0.s8 %v3462
        %v3464 = vlaneseq
        %v3465 = vshrl.u32 %v3464, 7
        %v3466 = vsub.s32 %v3463, %v3465
        %v3467 = vrot.slane %v3459, %v3466
        %v3469 = vunpack.c.l.s4 1966171168
        %v3470 = vunpack.c.0.s8 %v3469
        %v3471 = vlaneseq
        %v3472 = vshrl.u32 %v3471, 7
        %v3473 = vsub.s32 %v3470, %v3472
        %v3474 = vrot.slane %v3460, %v3473
        %v3476 = vpack.i.b16 %v3467, %v3467
        %v3478 = vlaneseq
        %v3479 = vshrl.u32 %v3478, 7
        %v3480 = vsub.s32 0, %v3479
        %v3481 = vrot.slane %v3476, %v3480
        %v3483 = vpack.i.b16 %v3474, %v3474
        %v3485 = vlaneseq
        %v3486 = vshrl.u32 %v3485, 7
        %v3487 = vsub.s32 0, %v3486
        %v3488 = vrot.slane %v3483, %v3487
        %v3491 = vunpack.c.l.b16 %v3481
        %v3492 = vunpack.c.l.b16 %v3488
        %v3493 = vpack.c.b16 %v3492, %v3491
        %3494 = vrot.lane.b32.xlu0 %v3493, 1
        %v3495 = vpop.permute.xlu0 %3494
        %v3496 = vrot.slane %v3495, 4
        %v3497 = vsel %vm1238, %v3496, %v3495
        %v3500 = vmul.bf16 %v3449, %v3497
        %v3501 = vmul.bf16 %v3450, %v3496
        %3504 = vrot.lane.b32.xlu0 %v3500, 127
        %v3505 = vpop.permute.xlu0 %3504
        %3506 = vrot.lane.b32.xlu0 %v3501, 127
        %v3507 = vpop.permute.xlu0 %3506
        %v3508 = vrot.slane %v3505, 4
        %v3509 = vrot.slane %v3507, 4
        %v3510 = vsel %vm429, %v3508, %v3509
        %v3511 = vsel %vm1223, %v3505, %v3510
        %3513 = vst [vmem:[#allocation3 + $0x70] sm:$0xff] %v3511
        %v3514 = vld [vmem:[#allocation2 + $0x4] sm:$0xff]
        %v3515 = vld [vmem:[#allocation2 + $0xc] sm:$0xf]
        %v3516 = vld [vmem:[%s1358] sm:$0x3]
        %v3519 = vunpack.c.l.s4 1966171168
        %v3520 = vunpack.c.0.s8 %v3519
        %v3521 = vlaneseq
        %v3522 = vshrl.u32 %v3521, 7
        %v3523 = vsub.s32 %v3520, %v3522
        %v3524 = vrot.slane %v3516, %v3523
        %v3525 = vcombine.high %v3524, %v3524
        %v3527 = vunpack.c.l.s4 1966171168
        %v3528 = vunpack.c.0.s8 %v3527
        %v3529 = vlaneseq
        %v3530 = vshrl.u32 %v3529, 7
        %v3531 = vsub.s32 %v3528, %v3530
        %v3532 = vrot.slane %v3524, %v3531
        %v3534 = vunpack.c.l.s4 1966171168
        %v3535 = vunpack.c.0.s8 %v3534
        %v3536 = vlaneseq
        %v3537 = vshrl.u32 %v3536, 7
        %v3538 = vsub.s32 %v3535, %v3537
        %v3539 = vrot.slane %v3525, %v3538
        %v3541 = vpack.i.b16 %v3532, %v3532
        %v3543 = vlaneseq
        %v3544 = vshrl.u32 %v3543, 7
        %v3545 = vsub.s32 0, %v3544
        %v3546 = vrot.slane %v3541, %v3545
        %v3548 = vpack.i.b16 %v3539, %v3539
        %v3550 = vlaneseq
        %v3551 = vshrl.u32 %v3550, 7
        %v3552 = vsub.s32 0, %v3551
        %v3553 = vrot.slane %v3548, %v3552
        %v3556 = vunpack.c.l.b16 %v3546
        %v3557 = vunpack.c.l.b16 %v3553
        %v3558 = vpack.c.b16 %v3557, %v3556
        %3559 = vrot.lane.b32.xlu0 %v3558, 7
        %v3560 = vpop.permute.xlu0 %3559
        %v3561 = vrot.slane %v3560, 4
        %v3562 = vsel %vm1170, %v3561, %v3560
        %v3565 = vmul.bf16 %v3514, %v3562
        %v3566 = vmul.bf16 %v3515, %v3561
        %3569 = vrot.lane.b32.xlu0 %v3565, 121
        %v3570 = vpop.permute.xlu0 %3569
        %3571 = vrot.lane.b32.xlu0 %v3566, 121
        %v3572 = vpop.permute.xlu0 %3571
        %v3573 = vrot.slane %v3570, 4
        %v3574 = vrot.slane %v3572, 4
        %v3575 = vsel %vm429, %v3573, %v3574
        %v3576 = vsel %vm1155, %v3570, %v3575
        %3578 = vst [vmem:[#allocation3 + $0x78] sm:$0xff] %v3576
        %v3579 = vld [vmem:[#allocation2 + $0x4] sm:$0xff]
        %v3580 = vld [vmem:[#allocation2 + $0xc] sm:$0xf]
        %v3581 = vld [vmem:[%s1424] sm:$0x3]
        %v3584 = vunpack.c.l.s4 1966171168
        %v3585 = vunpack.c.0.s8 %v3584
        %v3586 = vlaneseq
        %v3587 = vshrl.u32 %v3586, 7
        %v3588 = vsub.s32 %v3585, %v3587
        %v3589 = vrot.slane %v3581, %v3588
        %v3590 = vcombine.high %v3589, %v3589
        %v3592 = vunpack.c.l.s4 1966171168
        %v3593 = vunpack.c.0.s8 %v3592
        %v3594 = vlaneseq
        %v3595 = vshrl.u32 %v3594, 7
        %v3596 = vsub.s32 %v3593, %v3595
        %v3597 = vrot.slane %v3589, %v3596
        %v3599 = vunpack.c.l.s4 1966171168
        %v3600 = vunpack.c.0.s8 %v3599
        %v3601 = vlaneseq
        %v3602 = vshrl.u32 %v3601, 7
        %v3603 = vsub.s32 %v3600, %v3602
        %v3604 = vrot.slane %v3590, %v3603
        %v3606 = vpack.i.b16 %v3597, %v3597
        %v3608 = vlaneseq
        %v3609 = vshrl.u32 %v3608, 7
        %v3610 = vsub.s32 0, %v3609
        %v3611 = vrot.slane %v3606, %v3610
        %v3613 = vpack.i.b16 %v3604, %v3604
        %v3615 = vlaneseq
        %v3616 = vshrl.u32 %v3615, 7
        %v3617 = vsub.s32 0, %v3616
        %v3618 = vrot.slane %v3613, %v3617
        %v3621 = vunpack.c.l.b16 %v3611
        %v3622 = vunpack.c.l.b16 %v3618
        %v3623 = vpack.c.b16 %v3622, %v3621
        %3624 = vrot.lane.b32.xlu0 %v3623, 8
        %v3625 = vpop.permute.xlu0 %3624
        %v3626 = vrot.slane %v3625, 4
        %v3627 = vsel %vm1102, %v3626, %v3625
        %v3630 = vmul.bf16 %v3579, %v3627
        %v3631 = vmul.bf16 %v3580, %v3626
        %3634 = vrot.lane.b32.xlu0 %v3630, 120
        %v3635 = vpop.permute.xlu0 %3634
        %3636 = vrot.lane.b32.xlu0 %v3631, 120
        %v3637 = vpop.permute.xlu0 %3636
        %v3638 = vrot.slane %v3635, 4
        %v3639 = vrot.slane %v3637, 4
        %v3640 = vsel %vm429, %v3638, %v3639
        %v3641 = vsel %vm1087, %v3635, %v3640
        %3643 = vst [vmem:[#allocation3 + $0x80] sm:$0xff] %v3641
        %v3644 = vld [vmem:[#allocation2 + $0x4] sm:$0xff]
        %v3645 = vld [vmem:[#allocation2 + $0xc] sm:$0xf]
        %v3646 = vld [vmem:[%s1490] sm:$0x3]
        %v3649 = vunpack.c.l.s4 1966171168
        %v3650 = vunpack.c.0.s8 %v3649
        %v3651 = vlaneseq
        %v3652 = vshrl.u32 %v3651, 7
        %v3653 = vsub.s32 %v3650, %v3652
        %v3654 = vrot.slane %v3646, %v3653
        %v3655 = vcombine.high %v3654, %v3654
        %v3657 = vunpack.c.l.s4 1966171168
        %v3658 = vunpack.c.0.s8 %v3657
        %v3659 = vlaneseq
        %v3660 = vshrl.u32 %v3659, 7
        %v3661 = vsub.s32 %v3658, %v3660
        %v3662 = vrot.slane %v3654, %v3661
        %v3664 = vunpack.c.l.s4 1966171168
        %v3665 = vunpack.c.0.s8 %v3664
        %v3666 = vlaneseq
        %v3667 = vshrl.u32 %v3666, 7
        %v3668 = vsub.s32 %v3665, %v3667
        %v3669 = vrot.slane %v3655, %v3668
        %v3671 = vpack.i.b16 %v3662, %v3662
        %v3673 = vlaneseq
        %v3674 = vshrl.u32 %v3673, 7
        %v3675 = vsub.s32 0, %v3674
        %v3676 = vrot.slane %v3671, %v3675
        %v3678 = vpack.i.b16 %v3669, %v3669
        %v3680 = vlaneseq
        %v3681 = vshrl.u32 %v3680, 7
        %v3682 = vsub.s32 0, %v3681
        %v3683 = vrot.slane %v3678, %v3682
        %v3686 = vunpack.c.l.b16 %v3676
        %v3687 = vunpack.c.l.b16 %v3683
        %v3688 = vpack.c.b16 %v3687, %v3686
        %3689 = vrot.lane.b32.xlu0 %v3688, 9
        %v3690 = vpop.permute.xlu0 %3689
        %v3691 = vrot.slane %v3690, 4
        %v3692 = vsel %vm1034, %v3691, %v3690
        %v3695 = vmul.bf16 %v3644, %v3692
        %v3696 = vmul.bf16 %v3645, %v3691
        %3699 = vrot.lane.b32.xlu0 %v3695, 119
        %v3700 = vpop.permute.xlu0 %3699
        %3701 = vrot.lane.b32.xlu0 %v3696, 119
        %v3702 = vpop.permute.xlu0 %3701
        %v3703 = vrot.slane %v3700, 4
        %v3704 = vrot.slane %v3702, 4
        %v3705 = vsel %vm429, %v3703, %v3704
        %v3706 = vsel %vm1019, %v3700, %v3705
        %3708 = vst [vmem:[#allocation3 + $0x88] sm:$0xff] %v3706
        %v3709 = vld [vmem:[#allocation2 + $0x4] sm:$0xff]
        %v3710 = vld [vmem:[#allocation2 + $0xc] sm:$0xf]
        %v3711 = vld [vmem:[%s1556] sm:$0x3]
        %v3714 = vunpack.c.l.s4 1966171168
        %v3715 = vunpack.c.0.s8 %v3714
        %v3716 = vlaneseq
        %v3717 = vshrl.u32 %v3716, 7
        %v3718 = vsub.s32 %v3715, %v3717
        %v3719 = vrot.slane %v3711, %v3718
        %v3720 = vcombine.high %v3719, %v3719
        %v3722 = vunpack.c.l.s4 1966171168
        %v3723 = vunpack.c.0.s8 %v3722
        %v3724 = vlaneseq
        %v3725 = vshrl.u32 %v3724, 7
        %v3726 = vsub.s32 %v3723, %v3725
        %v3727 = vrot.slane %v3719, %v3726
        %v3729 = vunpack.c.l.s4 1966171168
        %v3730 = vunpack.c.0.s8 %v3729
        %v3731 = vlaneseq
        %v3732 = vshrl.u32 %v3731, 7
        %v3733 = vsub.s32 %v3730, %v3732
        %v3734 = vrot.slane %v3720, %v3733
        %v3736 = vpack.i.b16 %v3727, %v3727
        %v3738 = vlaneseq
        %v3739 = vshrl.u32 %v3738, 7
        %v3740 = vsub.s32 0, %v3739
        %v3741 = vrot.slane %v3736, %v3740
        %v3743 = vpack.i.b16 %v3734, %v3734
        %v3745 = vlaneseq
        %v3746 = vshrl.u32 %v3745, 7
        %v3747 = vsub.s32 0, %v3746
        %v3748 = vrot.slane %v3743, %v3747
        %v3751 = vunpack.c.l.b16 %v3741
        %v3752 = vunpack.c.l.b16 %v3748
        %v3753 = vpack.c.b16 %v3752, %v3751
        %3754 = vrot.lane.b32.xlu0 %v3753, 55
        %v3755 = vpop.permute.xlu0 %3754
        %v3756 = vrot.slane %v3755, 4
        %v3757 = vsel %vm415, %v3756, %v3755
        %v3760 = vmul.bf16 %v3709, %v3757
        %v3761 = vmul.bf16 %v3710, %v3756
        %3764 = vrot.lane.b32.xlu0 %v3760, 73
        %v3765 = vpop.permute.xlu0 %3764
        %3766 = vrot.lane.b32.xlu0 %v3761, 73
        %v3767 = vpop.permute.xlu0 %3766
        %v3768 = vrot.slane %v3765, 4
        %v3769 = vrot.slane %v3767, 4
        %v3770 = vsel %vm429, %v3768, %v3769
        %v3771 = vsel %vm431, %v3765, %v3770
        %3773 = vst [vmem:[#allocation3 + $0x90] sm:$0xff] %v3771
        %v3774 = vld [vmem:[#allocation2 + $0x4] sm:$0xff]
        %v3775 = vld [vmem:[#allocation2 + $0xc] sm:$0xf]
        %v3776 = vld [vmem:[%s1622] sm:$0x3]
        %v3779 = vunpack.c.l.s4 1966171168
        %v3780 = vunpack.c.0.s8 %v3779
        %v3781 = vlaneseq
        %v3782 = vshrl.u32 %v3781, 7
        %v3783 = vsub.s32 %v3780, %v3782
        %v3784 = vrot.slane %v3776, %v3783
        %v3785 = vcombine.high %v3784, %v3784
        %v3787 = vunpack.c.l.s4 1966171168
        %v3788 = vunpack.c.0.s8 %v3787
        %v3789 = vlaneseq
        %v3790 = vshrl.u32 %v3789, 7
        %v3791 = vsub.s32 %v3788, %v3790
        %v3792 = vrot.slane %v3784, %v3791
        %v3794 = vunpack.c.l.s4 1966171168
        %v3795 = vunpack.c.0.s8 %v3794
        %v3796 = vlaneseq
        %v3797 = vshrl.u32 %v3796, 7
        %v3798 = vsub.s32 %v3795, %v3797
        %v3799 = vrot.slane %v3785, %v3798
        %v3801 = vpack.i.b16 %v3792, %v3792
        %v3803 = vlaneseq
        %v3804 = vshrl.u32 %v3803, 7
        %v3805 = vsub.s32 0, %v3804
        %v3806 = vrot.slane %v3801, %v3805
        %v3808 = vpack.i.b16 %v3799, %v3799
        %v3810 = vlaneseq
        %v3811 = vshrl.u32 %v3810, 7
        %v3812 = vsub.s32 0, %v3811
        %v3813 = vrot.slane %v3808, %v3812
        %v3816 = vunpack.c.l.b16 %v3806
        %v3817 = vunpack.c.l.b16 %v3813
        %v3818 = vpack.c.b16 %v3817, %v3816
        %3819 = vrot.lane.b32.xlu0 %v3818, 56
        %v3820 = vpop.permute.xlu0 %3819
        %v3821 = vrot.slane %v3820, 4
        %v3822 = vsel %vm484, %v3821, %v3820
        %v3825 = vmul.bf16 %v3774, %v3822
        %v3826 = vmul.bf16 %v3775, %v3821
        %3829 = vrot.lane.b32.xlu0 %v3825, 72
        %v3830 = vpop.permute.xlu0 %3829
        %3831 = vrot.lane.b32.xlu0 %v3826, 72
        %v3832 = vpop.permute.xlu0 %3831
        %v3833 = vrot.slane %v3830, 4
        %v3834 = vrot.slane %v3832, 4
        %v3835 = vsel %vm429, %v3833, %v3834
        %v3836 = vsel %vm499, %v3830, %v3835
        %3838 = vst [vmem:[#allocation3 + $0x98] sm:$0xff] %v3836
        %v3839 = vld [vmem:[#allocation2 + $0x4] sm:$0xff]
        %v3840 = vld [vmem:[#allocation2 + $0xc] sm:$0xf]
        %v3841 = vld [vmem:[%s1688] sm:$0x3]
        %v3844 = vunpack.c.l.s4 1966171168
        %v3845 = vunpack.c.0.s8 %v3844
        %v3846 = vlaneseq
        %v3847 = vshrl.u32 %v3846, 7
        %v3848 = vsub.s32 %v3845, %v3847
        %v3849 = vrot.slane %v3841, %v3848
        %v3850 = vcombine.high %v3849, %v3849
        %v3852 = vunpack.c.l.s4 1966171168
        %v3853 = vunpack.c.0.s8 %v3852
        %v3854 = vlaneseq
        %v3855 = vshrl.u32 %v3854, 7
        %v3856 = vsub.s32 %v3853, %v3855
        %v3857 = vrot.slane %v3849, %v3856
        %v3859 = vunpack.c.l.s4 1966171168
        %v3860 = vunpack.c.0.s8 %v3859
        %v3861 = vlaneseq
        %v3862 = vshrl.u32 %v3861, 7
        %v3863 = vsub.s32 %v3860, %v3862
        %v3864 = vrot.slane %v3850, %v3863
        %v3866 = vpack.i.b16 %v3857, %v3857
        %v3868 = vlaneseq
        %v3869 = vshrl.u32 %v3868, 7
        %v3870 = vsub.s32 0, %v3869
        %v3871 = vrot.slane %v3866, %v3870
        %v3873 = vpack.i.b16 %v3864, %v3864
        %v3875 = vlaneseq
        %v3876 = vshrl.u32 %v3875, 7
        %v3877 = vsub.s32 0, %v3876
        %v3878 = vrot.slane %v3873, %v3877
        %v3881 = vunpack.c.l.b16 %v3871
        %v3882 = vunpack.c.l.b16 %v3878
        %v3883 = vpack.c.b16 %v3882, %v3881
        %3884 = vrot.lane.b32.xlu0 %v3883, 57
        %v3885 = vpop.permute.xlu0 %3884
        %v3886 = vrot.slane %v3885, 4
        %v3887 = vsel %vm552, %v3886, %v3885
        %v3890 = vmul.bf16 %v3839, %v3887
        %v3891 = vmul.bf16 %v3840, %v3886
        %3894 = vrot.lane.b32.xlu0 %v3890, 71
        %v3895 = vpop.permute.xlu0 %3894
        %3896 = vrot.lane.b32.xlu0 %v3891, 71
        %v3897 = vpop.permute.xlu0 %3896
        %v3898 = vrot.slane %v3895, 4
        %v3899 = vrot.slane %v3897, 4
        %v3900 = vsel %vm429, %v3898, %v3899
        %v3901 = vsel %vm567, %v3895, %v3900
        %3903 = vst [vmem:[#allocation3 + $0xa0] sm:$0xff] %v3901
        %v3904 = vld [vmem:[#allocation2 + $0x4] sm:$0xff]
        %v3905 = vld [vmem:[#allocation2 + $0xc] sm:$0xf]
        %v3906 = vld [vmem:[%s1754] sm:$0x3]
        %v3909 = vunpack.c.l.s4 1966171168
        %v3910 = vunpack.c.0.s8 %v3909
        %v3911 = vlaneseq
        %v3912 = vshrl.u32 %v3911, 7
        %v3913 = vsub.s32 %v3910, %v3912
        %v3914 = vrot.slane %v3906, %v3913
        %v3915 = vcombine.high %v3914, %v3914
        %v3917 = vunpack.c.l.s4 1966171168
        %v3918 = vunpack.c.0.s8 %v3917
        %v3919 = vlaneseq
        %v3920 = vshrl.u32 %v3919, 7
        %v3921 = vsub.s32 %v3918, %v3920
        %v3922 = vrot.slane %v3914, %v3921
        %v3924 = vunpack.c.l.s4 1966171168
        %v3925 = vunpack.c.0.s8 %v3924
        %v3926 = vlaneseq
        %v3927 = vshrl.u32 %v3926, 7
        %v3928 = vsub.s32 %v3925, %v3927
        %v3929 = vrot.slane %v3915, %v3928
        %v3931 = vpack.i.b16 %v3922, %v3922
        %v3933 = vlaneseq
        %v3934 = vshrl.u32 %v3933, 7
        %v3935 = vsub.s32 0, %v3934
        %v3936 = vrot.slane %v3931, %v3935
        %v3938 = vpack.i.b16 %v3929, %v3929
        %v3940 = vlaneseq
        %v3941 = vshrl.u32 %v3940, 7
        %v3942 = vsub.s32 0, %v3941
        %v3943 = vrot.slane %v3938, %v3942
        %v3946 = vunpack.c.l.b16 %v3936
        %v3947 = vunpack.c.l.b16 %v3943
        %v3948 = vpack.c.b16 %v3947, %v3946
        %3949 = vrot.lane.b32.xlu0 %v3948, 63
        %v3950 = vpop.permute.xlu0 %3949
        %v3951 = vrot.slane %v3950, 4
        %v3952 = vsel %vm620, %v3951, %v3950
        %v3955 = vmul.bf16 %v3904, %v3952
        %v3956 = vmul.bf16 %v3905, %v3951
        %3959 = vrot.lane.b32.xlu0 %v3955, 65
        %v3960 = vpop.permute.xlu0 %3959
        %3961 = vrot.lane.b32.xlu0 %v3956, 65
        %v3962 = vpop.permute.xlu0 %3961
        %v3963 = vrot.slane %v3960, 4
        %v3964 = vrot.slane %v3962, 4
        %v3965 = vsel %vm429, %v3963, %v3964
        %v3966 = vsel %vm635, %v3960, %v3965
        %3968 = vst [vmem:[#allocation3 + $0xa8] sm:$0xff] %v3966
        %v3969 = vld [vmem:[#allocation2 + $0x4] sm:$0xff]
        %v3970 = vld [vmem:[#allocation2 + $0xc] sm:$0xf]
        %v3971 = vld [vmem:[%s1820] sm:$0x3]
        %v3974 = vunpack.c.l.s4 1966171168
        %v3975 = vunpack.c.0.s8 %v3974
        %v3976 = vlaneseq
        %v3977 = vshrl.u32 %v3976, 7
        %v3978 = vsub.s32 %v3975, %v3977
        %v3979 = vrot.slane %v3971, %v3978
        %v3980 = vcombine.high %v3979, %v3979
        %v3982 = vunpack.c.l.s4 1966171168
        %v3983 = vunpack.c.0.s8 %v3982
        %v3984 = vlaneseq
        %v3985 = vshrl.u32 %v3984, 7
        %v3986 = vsub.s32 %v3983, %v3985
        %v3987 = vrot.slane %v3979, %v3986
        %v3989 = vunpack.c.l.s4 1966171168
        %v3990 = vunpack.c.0.s8 %v3989
        %v3991 = vlaneseq
        %v3992 = vshrl.u32 %v3991, 7
        %v3993 = vsub.s32 %v3990, %v3992
        %v3994 = vrot.slane %v3980, %v3993
        %v3996 = vpack.i.b16 %v3987, %v3987
        %v3998 = vlaneseq
        %v3999 = vshrl.u32 %v3998, 7
        %v4000 = vsub.s32 0, %v3999
        %v4001 = vrot.slane %v3996, %v4000
        %v4003 = vpack.i.b16 %v3994, %v3994
        %v4005 = vlaneseq
        %v4006 = vshrl.u32 %v4005, 7
        %v4007 = vsub.s32 0, %v4006
        %v4008 = vrot.slane %v4003, %v4007
        %v4011 = vunpack.c.l.b16 %v4001
        %v4012 = vunpack.c.l.b16 %v4008
        %v4013 = vpack.c.b16 %v4012, %v4011
        %4014 = vrot.lane.b32.xlu0 %v4013, 64
        %v4015 = vpop.permute.xlu0 %4014
        %v4016 = vrot.slane %v4015, 4
        %v4017 = vsel %vm688, %v4016, %v4015
        %v4020 = vmul.bf16 %v3969, %v4017
        %v4021 = vmul.bf16 %v3970, %v4016
        %4024 = vrot.lane.b32.xlu0 %v4020, 64
        %v4025 = vpop.permute.xlu0 %4024
        %4026 = vrot.lane.b32.xlu0 %v4021, 64
        %v4027 = vpop.permute.xlu0 %4026
        %v4028 = vrot.slane %v4025, 4
        %v4029 = vrot.slane %v4027, 4
        %v4030 = vsel %vm429, %v4028, %v4029
        %v4031 = vsel %vm688, %v4025, %v4030
        %4033 = vst [vmem:[#allocation3 + $0xb0] sm:$0xff] %v4031
        %v4034 = vld [vmem:[#allocation2 + $0x4] sm:$0xff]
        %v4035 = vld [vmem:[#allocation2 + $0xc] sm:$0xf]
        %v4036 = vld [vmem:[%s1886] sm:$0x3]
        %v4039 = vunpack.c.l.s4 1966171168
        %v4040 = vunpack.c.0.s8 %v4039
        %v4041 = vlaneseq
        %v4042 = vshrl.u32 %v4041, 7
        %v4043 = vsub.s32 %v4040, %v4042
        %v4044 = vrot.slane %v4036, %v4043
        %v4045 = vcombine.high %v4044, %v4044
        %v4047 = vunpack.c.l.s4 1966171168
        %v4048 = vunpack.c.0.s8 %v4047
        %v4049 = vlaneseq
        %v4050 = vshrl.u32 %v4049, 7
        %v4051 = vsub.s32 %v4048, %v4050
        %v4052 = vrot.slane %v4044, %v4051
        %v4054 = vunpack.c.l.s4 1966171168
        %v4055 = vunpack.c.0.s8 %v4054
        %v4056 = vlaneseq
        %v4057 = vshrl.u32 %v4056, 7
        %v4058 = vsub.s32 %v4055, %v4057
        %v4059 = vrot.slane %v4045, %v4058
        %v4061 = vpack.i.b16 %v4052, %v4052
        %v4063 = vlaneseq
        %v4064 = vshrl.u32 %v4063, 7
        %v4065 = vsub.s32 0, %v4064
        %v4066 = vrot.slane %v4061, %v4065
        %v4068 = vpack.i.b16 %v4059, %v4059
        %v4070 = vlaneseq
        %v4071 = vshrl.u32 %v4070, 7
        %v4072 = vsub.s32 0, %v4071
        %v4073 = vrot.slane %v4068, %v4072
        %v4076 = vunpack.c.l.b16 %v4066
        %v4077 = vunpack.c.l.b16 %v4073
        %v4078 = vpack.c.b16 %v4077, %v4076
        %4079 = vrot.lane.b32.xlu0 %v4078, 65
        %v4080 = vpop.permute.xlu0 %4079
        %v4081 = vrot.slane %v4080, 4
        %v4082 = vsel %vm635, %v4081, %v4080
        %v4085 = vmul.bf16 %v4034, %v4082
        %v4086 = vmul.bf16 %v4035, %v4081
        %4089 = vrot.lane.b32.xlu0 %v4085, 63
        %v4090 = vpop.permute.xlu0 %4089
        %4091 = vrot.lane.b32.xlu0 %v4086, 63
        %v4092 = vpop.permute.xlu0 %4091
        %v4093 = vrot.slane %v4090, 4
        %v4094 = vrot.slane %v4092, 4
        %v4095 = vsel %vm429, %v4093, %v4094
        %v4096 = vsel %vm620, %v4090, %v4095
        %4098 = vst [vmem:[#allocation3 + $0xb8] sm:$0xff] %v4096
        %v4099 = vld [vmem:[#allocation2 + $0x4] sm:$0xff]
        %v4100 = vld [vmem:[#allocation2 + $0xc] sm:$0xf]
        %v4101 = vld [vmem:[%s1952] sm:$0x3]
        %v4104 = vunpack.c.l.s4 1966171168
        %v4105 = vunpack.c.0.s8 %v4104
        %v4106 = vlaneseq
        %v4107 = vshrl.u32 %v4106, 7
        %v4108 = vsub.s32 %v4105, %v4107
        %v4109 = vrot.slane %v4101, %v4108
        %v4110 = vcombine.high %v4109, %v4109
        %v4112 = vunpack.c.l.s4 1966171168
        %v4113 = vunpack.c.0.s8 %v4112
        %v4114 = vlaneseq
        %v4115 = vshrl.u32 %v4114, 7
        %v4116 = vsub.s32 %v4113, %v4115
        %v4117 = vrot.slane %v4109, %v4116
        %v4119 = vunpack.c.l.s4 1966171168
        %v4120 = vunpack.c.0.s8 %v4119
        %v4121 = vlaneseq
        %v4122 = vshrl.u32 %v4121, 7
        %v4123 = vsub.s32 %v4120, %v4122
        %v4124 = vrot.slane %v4110, %v4123
        %v4126 = vpack.i.b16 %v4117, %v4117
        %v4128 = vlaneseq
        %v4129 = vshrl.u32 %v4128, 7
        %v4130 = vsub.s32 0, %v4129
        %v4131 = vrot.slane %v4126, %v4130
        %v4133 = vpack.i.b16 %v4124, %v4124
        %v4135 = vlaneseq
        %v4136 = vshrl.u32 %v4135, 7
        %v4137 = vsub.s32 0, %v4136
        %v4138 = vrot.slane %v4133, %v4137
        %v4141 = vunpack.c.l.b16 %v4131
        %v4142 = vunpack.c.l.b16 %v4138
        %v4143 = vpack.c.b16 %v4142, %v4141
        %4144 = vrot.lane.b32.xlu0 %v4143, 71
        %v4145 = vpop.permute.xlu0 %4144
        %v4146 = vrot.slane %v4145, 4
        %v4147 = vsel %vm567, %v4146, %v4145
        %v4150 = vmul.bf16 %v4099, %v4147
        %v4151 = vmul.bf16 %v4100, %v4146
        %4154 = vrot.lane.b32.xlu0 %v4150, 57
        %v4155 = vpop.permute.xlu0 %4154
        %4156 = vrot.lane.b32.xlu0 %v4151, 57
        %v4157 = vpop.permute.xlu0 %4156
        %v4158 = vrot.slane %v4155, 4
        %v4159 = vrot.slane %v4157, 4
        %v4160 = vsel %vm429, %v4158, %v4159
        %v4161 = vsel %vm552, %v4155, %v4160
        %4163 = vst [vmem:[#allocation3 + $0xc0] sm:$0xff] %v4161
        %v4164 = vld [vmem:[#allocation2 + $0x4] sm:$0xff]
        %v4165 = vld [vmem:[#allocation2 + $0xc] sm:$0xf]
        %v4166 = vld [vmem:[%s2018] sm:$0x3]
        %v4169 = vunpack.c.l.s4 1966171168
        %v4170 = vunpack.c.0.s8 %v4169
        %v4171 = vlaneseq
        %v4172 = vshrl.u32 %v4171, 7
        %v4173 = vsub.s32 %v4170, %v4172
        %v4174 = vrot.slane %v4166, %v4173
        %v4175 = vcombine.high %v4174, %v4174
        %v4177 = vunpack.c.l.s4 1966171168
        %v4178 = vunpack.c.0.s8 %v4177
        %v4179 = vlaneseq
        %v4180 = vshrl.u32 %v4179, 7
        %v4181 = vsub.s32 %v4178, %v4180
        %v4182 = vrot.slane %v4174, %v4181
        %v4184 = vunpack.c.l.s4 1966171168
        %v4185 = vunpack.c.0.s8 %v4184
        %v4186 = vlaneseq
        %v4187 = vshrl.u32 %v4186, 7
        %v4188 = vsub.s32 %v4185, %v4187
        %v4189 = vrot.slane %v4175, %v4188
        %v4191 = vpack.i.b16 %v4182, %v4182
        %v4193 = vlaneseq
        %v4194 = vshrl.u32 %v4193, 7
        %v4195 = vsub.s32 0, %v4194
        %v4196 = vrot.slane %v4191, %v4195
        %v4198 = vpack.i.b16 %v4189, %v4189
        %v4200 = vlaneseq
        %v4201 = vshrl.u32 %v4200, 7
        %v4202 = vsub.s32 0, %v4201
        %v4203 = vrot.slane %v4198, %v4202
        %v4206 = vunpack.c.l.b16 %v4196
        %v4207 = vunpack.c.l.b16 %v4203
        %v4208 = vpack.c.b16 %v4207, %v4206
        %4209 = vrot.lane.b32.xlu0 %v4208, 72
        %v4210 = vpop.permute.xlu0 %4209
        %v4211 = vrot.slane %v4210, 4
        %v4212 = vsel %vm499, %v4211, %v4210
        %v4215 = vmul.bf16 %v4164, %v4212
        %v4216 = vmul.bf16 %v4165, %v4211
        %4219 = vrot.lane.b32.xlu0 %v4215, 56
        %v4220 = vpop.permute.xlu0 %4219
        %4221 = vrot.lane.b32.xlu0 %v4216, 56
        %v4222 = vpop.permute.xlu0 %4221
        %v4223 = vrot.slane %v4220, 4
        %v4224 = vrot.slane %v4222, 4
        %v4225 = vsel %vm429, %v4223, %v4224
        %v4226 = vsel %vm484, %v4220, %v4225
        %4228 = vst [vmem:[#allocation3 + $0xc8] sm:$0xff] %v4226
        %v4229 = vld [vmem:[#allocation2 + $0x4] sm:$0xff]
        %v4230 = vld [vmem:[#allocation2 + $0xc] sm:$0xf]
        %v4231 = vld [vmem:[%s2084] sm:$0x3]
        %v4234 = vunpack.c.l.s4 1966171168
        %v4235 = vunpack.c.0.s8 %v4234
        %v4236 = vlaneseq
        %v4237 = vshrl.u32 %v4236, 7
        %v4238 = vsub.s32 %v4235, %v4237
        %v4239 = vrot.slane %v4231, %v4238
        %v4240 = vcombine.high %v4239, %v4239
        %v4242 = vunpack.c.l.s4 1966171168
        %v4243 = vunpack.c.0.s8 %v4242
        %v4244 = vlaneseq
        %v4245 = vshrl.u32 %v4244, 7
        %v4246 = vsub.s32 %v4243, %v4245
        %v4247 = vrot.slane %v4239, %v4246
        %v4249 = vunpack.c.l.s4 1966171168
        %v4250 = vunpack.c.0.s8 %v4249
        %v4251 = vlaneseq
        %v4252 = vshrl.u32 %v4251, 7
        %v4253 = vsub.s32 %v4250, %v4252
        %v4254 = vrot.slane %v4240, %v4253
        %v4256 = vpack.i.b16 %v4247, %v4247
        %v4258 = vlaneseq
        %v4259 = vshrl.u32 %v4258, 7
        %v4260 = vsub.s32 0, %v4259
        %v4261 = vrot.slane %v4256, %v4260
        %v4263 = vpack.i.b16 %v4254, %v4254
        %v4265 = vlaneseq
        %v4266 = vshrl.u32 %v4265, 7
        %v4267 = vsub.s32 0, %v4266
        %v4268 = vrot.slane %v4263, %v4267
        %v4271 = vunpack.c.l.b16 %v4261
        %v4272 = vunpack.c.l.b16 %v4268
        %v4273 = vpack.c.b16 %v4272, %v4271
        %4274 = vrot.lane.b32.xlu0 %v4273, 73
        %v4275 = vpop.permute.xlu0 %4274
        %v4276 = vrot.slane %v4275, 4
        %v4277 = vsel %vm431, %v4276, %v4275
        %v4280 = vmul.bf16 %v4229, %v4277
        %v4281 = vmul.bf16 %v4230, %v4276
        %4284 = vrot.lane.b32.xlu0 %v4280, 55
        %v4285 = vpop.permute.xlu0 %4284
        %4286 = vrot.lane.b32.xlu0 %v4281, 55
        %v4287 = vpop.permute.xlu0 %4286
        %v4288 = vrot.slane %v4285, 4
        %v4289 = vrot.slane %v4287, 4
        %v4290 = vsel %vm429, %v4288, %v4289
        %v4291 = vsel %vm415, %v4285, %v4290
        %4293 = vst [vmem:[#allocation3 + $0xd0] sm:$0xff] %v4291
        %v4294 = vld [vmem:[%s6] sm:$0xff]
        %v4295 = vld [vmem:[%s6 + $0x8] sm:$0xff]
        %v4296 = vld [vmem:[#allocation3] sm:$0xff]
        %v4297 = vld [vmem:[#allocation3 + $0x8] sm:$0xff]
        %v4298 = vld [vmem:[#allocation3 + $0x10] sm:$0xff]
        %v4299 = vld [vmem:[#allocation3 + $0x18] sm:$0xff]
        %v4300 = vld [vmem:[#allocation3 + $0x20] sm:$0xff]
        %v4301 = vld [vmem:[#allocation3 + $0x28] sm:$0xff]
        %v4302 = vld [vmem:[#allocation3 + $0x30] sm:$0xff]
        %v4303 = vld [vmem:[#allocation3 + $0x38] sm:$0xff]
        %v4304 = vld [vmem:[#allocation3 + $0x40] sm:$0xff]
        %v4305 = vld [vmem:[#allocation3 + $0x48] sm:$0xff]
        %v4306 = vld [vmem:[#allocation3 + $0x50] sm:$0xff]
        %v4307 = vld [vmem:[#allocation3 + $0x58] sm:$0xff]
        %v4308 = vld [vmem:[#allocation3 + $0x60] sm:$0xff]
        %v4309 = vld [vmem:[#allocation3 + $0x68] sm:$0xff]
        %v4310 = vld [vmem:[#allocation3 + $0x70] sm:$0xff]
        %v4311 = vld [vmem:[#allocation3 + $0x78] sm:$0xff]
        %v4312 = vld [vmem:[#allocation3 + $0x80] sm:$0xff]
        %v4313 = vld [vmem:[#allocation3 + $0x88] sm:$0xff]
        %v4314 = vld [vmem:[#allocation3 + $0x90] sm:$0xff]
        %v4315 = vld [vmem:[#allocation3 + $0x98] sm:$0xff]
        %v4316 = vld [vmem:[#allocation3 + $0xa0] sm:$0xff]
        %v4317 = vld [vmem:[#allocation3 + $0xa8] sm:$0xff]
        %v4318 = vld [vmem:[#allocation3 + $0xb0] sm:$0xff]
        %v4319 = vld [vmem:[#allocation3 + $0xb8] sm:$0xff]
        %v4320 = vld [vmem:[#allocation3 + $0xc0] sm:$0xff]
        %v4321 = vld [vmem:[#allocation3 + $0xc8] sm:$0xff]
        %v4322 = vld [vmem:[#allocation3 + $0xd0] sm:$0xff]
        %v4325 = vunpack.c.l.b16 %v4294
        %v4326 = vunpack.c.h.b16 %v4294
        %v4327 = vunpack.c.l.b16 %v4295
        %v4328 = vunpack.c.h.b16 %v4295
        %v4329 = vpack.c.b16 %v4327, %v4325
        %v4330 = vpack.c.b16 %v4328, %v4326
        %v4359 = vunpack.c.l.b16 %v4296
        %v4360 = vunpack.c.h.b16 %v4296
        %v4361 = vunpack.c.l.b16 %v4297
        %v4362 = vunpack.c.h.b16 %v4297
        %v4363 = vunpack.c.l.b16 %v4298
        %v4364 = vunpack.c.h.b16 %v4298
        %v4365 = vunpack.c.l.b16 %v4299
        %v4366 = vunpack.c.h.b16 %v4299
        %v4367 = vunpack.c.l.b16 %v4300
        %v4368 = vunpack.c.h.b16 %v4300
        %v4369 = vunpack.c.l.b16 %v4301
        %v4370 = vunpack.c.h.b16 %v4301
        %v4371 = vunpack.c.l.b16 %v4302
        %v4372 = vunpack.c.h.b16 %v4302
        %v4373 = vunpack.c.l.b16 %v4303
        %v4374 = vunpack.c.h.b16 %v4303
        %v4375 = vunpack.c.l.b16 %v4304
        %v4376 = vunpack.c.h.b16 %v4304
        %v4377 = vunpack.c.l.b16 %v4305
        %v4378 = vunpack.c.h.b16 %v4305
        %v4379 = vunpack.c.l.b16 %v4306
        %v4380 = vunpack.c.h.b16 %v4306
        %v4381 = vunpack.c.l.b16 %v4307
        %v4382 = vunpack.c.h.b16 %v4307
        %v4383 = vunpack.c.l.b16 %v4308
        %v4384 = vunpack.c.h.b16 %v4308
        %v4385 = vunpack.c.l.b16 %v4309
        %v4386 = vunpack.c.h.b16 %v4309
        %v4387 = vunpack.c.l.b16 %v4310
        %v4388 = vunpack.c.h.b16 %v4310
        %v4389 = vunpack.c.l.b16 %v4311
        %v4390 = vunpack.c.h.b16 %v4311
        %v4391 = vunpack.c.l.b16 %v4312
        %v4392 = vunpack.c.h.b16 %v4312
        %v4393 = vunpack.c.l.b16 %v4313
        %v4394 = vunpack.c.h.b16 %v4313
        %v4395 = vunpack.c.l.b16 %v4314
        %v4396 = vunpack.c.h.b16 %v4314
        %v4397 = vunpack.c.l.b16 %v4315
        %v4398 = vunpack.c.h.b16 %v4315
        %v4399 = vunpack.c.l.b16 %v4316
        %v4400 = vunpack.c.h.b16 %v4316
        %v4401 = vunpack.c.l.b16 %v4317
        %v4402 = vunpack.c.h.b16 %v4317
        %v4403 = vunpack.c.l.b16 %v4318
        %v4404 = vunpack.c.h.b16 %v4318
        %v4405 = vunpack.c.l.b16 %v4319
        %v4406 = vunpack.c.h.b16 %v4319
        %v4407 = vunpack.c.l.b16 %v4320
        %v4408 = vunpack.c.h.b16 %v4320
        %v4409 = vunpack.c.l.b16 %v4321
        %v4410 = vunpack.c.h.b16 %v4321
        %v4411 = vunpack.c.l.b16 %v4322
        %v4412 = vunpack.c.h.b16 %v4322
        %v4413 = vpack.c.b16 %v4361, %v4359
        %v4414 = vpack.c.b16 %v4362, %v4360
        %v4415 = vpack.c.b16 %v4365, %v4363
        %v4416 = vpack.c.b16 %v4366, %v4364
        %v4417 = vpack.c.b16 %v4369, %v4367
        %v4418 = vpack.c.b16 %v4370, %v4368
        %v4419 = vpack.c.b16 %v4373, %v4371
        %v4420 = vpack.c.b16 %v4374, %v4372
        %v4421 = vpack.c.b16 %v4377, %v4375
        %v4422 = vpack.c.b16 %v4378, %v4376
        %v4423 = vpack.c.b16 %v4381, %v4379
        %v4424 = vpack.c.b16 %v4382, %v4380
        %v4425 = vpack.c.b16 %v4385, %v4383
        %v4426 = vpack.c.b16 %v4386, %v4384
        %v4427 = vpack.c.b16 %v4389, %v4387
        %v4428 = vpack.c.b16 %v4390, %v4388
        %v4429 = vpack.c.b16 %v4393, %v4391
        %v4430 = vpack.c.b16 %v4394, %v4392
        %v4431 = vpack.c.b16 %v4397, %v4395
        %v4432 = vpack.c.b16 %v4398, %v4396
        %v4433 = vpack.c.b16 %v4401, %v4399
        %v4434 = vpack.c.b16 %v4402, %v4400
        %v4435 = vpack.c.b16 %v4405, %v4403
        %v4436 = vpack.c.b16 %v4406, %v4404
        %v4437 = vpack.c.b16 %v4409, %v4407
        %v4438 = vpack.c.b16 %v4410, %v4408
        %v4439 = vpack.c.b16 %v4411, %v4411
        %v4440 = vpack.c.b16 %v4412, %v4412
        %v4468 = vsel %vm2317, %v4330, 0
        %v4471 = vsel %vm2321, %v4439, 0
        %v4474 = vsel %vm2321, %v4440, 0
        %4476 = vmatprep.subr.bf16.mxu0 %v4414
        %4477 = vmatpush1.bf16.msra.mxu0 %v4413
        %4478 = vmatprep.subr.bf16.mxu0 %v4416
        %4479 = vmatpush1.bf16.msra.mxu0 %v4415
        %4480 = vmatprep.subr.bf16.mxu0 %v4418
        %4481 = vmatpush1.bf16.msra.mxu0 %v4417
        %4482 = vmatprep.subr.bf16.mxu0 %v4420
        %4483 = vmatpush1.bf16.msra.mxu0 %v4419
        %4484 = vmatprep.subr.bf16.mxu0 %v4422
        %4485 = vmatpush1.bf16.msra.mxu0 %v4421
        %4486 = vmatprep.subr.bf16.mxu0 %v4424
        %4487 = vmatpush1.bf16.msra.mxu0 %v4423
        %4488 = vmatprep.subr.bf16.mxu0 %v4426
        %4489 = vmatpush1.bf16.msra.mxu0 %v4425
        %4490 = vmatprep.subr.bf16.mxu0 %v4428
        %4491 = vmatpush1.bf16.msra.mxu0 %v4427
        %4492 = vmatprep.subr.bf16.mxu0 %v4430
        %4493 = vmatpush1.bf16.msra.mxu0 %v4429
        %4494 = vmatprep.subr.bf16.mxu0 %v4432
        %4495 = vmatpush1.bf16.msra.mxu0 %v4431
        %4496 = vmatprep.subr.bf16.mxu0 %v4434
        %4497 = vmatpush1.bf16.msra.mxu0 %v4433
        %4498 = vmatprep.subr.bf16.mxu0 %v4436
        %4499 = vmatpush1.bf16.msra.mxu0 %v4435
        %4500 = vmatprep.subr.bf16.mxu0 %v4438
        %4501 = vmatpush1.bf16.msra.mxu0 %v4437
        %4502 = vmatprep.subr.bf16.mxu0 %v4474
        %4503 = vmatpush1.bf16.msra.mxu0 %v4471
        %4504 = vmatprep.subr.bf16.mxu0 0
        %4505 = vmatpush1.bf16.msra.mxu0 0
        %4506 = vmatprep.subr.bf16.mxu0 0
        %4507 = vmatpush1.bf16.msra.mxu0 0
        %4508 = vmatprep.mubr.bf16.mxu0 %v4468
        %4509 = vmatmul.mubr.bf16.gmra.mrb[0].mxu0 %v4329
        %v4510 = vpop.f32.mrb[0].mxu0
        %v4511 = vadd.f32 0.0, %v4510
        %v4512 = vpop.f32.mrb[0].mxu0
        %v4513 = vadd.f32 0.0, %v4512
        %v4514 = vpop.f32.mrb[0].mxu0
        %v4515 = vadd.f32 0.0, %v4514
        %v4516 = vpop.f32.mrb[0].mxu0
        %v4517 = vadd.f32 0.0, %v4516
        %4518 = vdwg.mxu0
        %v4519 = vmax.f32 %v4511, 0.0
        %v4520 = vmax.f32 %v4513, 0.0
        %v4521 = vmax.f32 %v4515, 0.0
        %v4522 = vmax.f32 %v4517, 0.0
        %v4523 = vadd.f32 %v4519, %v4520
        %4524 = vadd.xlane.f32.xlu0 %v4523
        %v4525 = vpop.xlane.xlu0 %4524
        %v4526 = vadd.f32 %v4521, %v4522
        %4527 = vadd.xlane.f32.xlu0 %v4526
        %v4528 = vpop.xlane.xlu0 %4527
        %v4529 = vmul.f32 %v4519, %v4519
        %v4530 = vmul.f32 %v4520, %v4520
        %v4531 = vmul.f32 %v4521, %v4521
        %v4532 = vmul.f32 %v4522, %v4522
        %v4533 = vadd.f32 %v4529, %v4530
        %4534 = vadd.xlane.f32.xlu0 %v4533
        %v4535 = vpop.xlane.xlu0 %4534
        %v4536 = vadd.f32 %v4531, %v4532
        %4537 = vadd.xlane.f32.xlu0 %v4536
        %v4538 = vpop.xlane.xlu0 %4537
        %v4539 = vld [vmem:[%s7] sm:$0xff]
        %v4540 = vld [vmem:[%s7 + $0x8] sm:$0xff]
        %vm4541 = vcmask 130048
        %v4543 = vsel %vm4541, %v4539, 0
        %v4546 = vsel %vm4541, %v4540, 0
        %4548 = vmatprep.subr.mxu0 0.0
        %4549 = vmatpush1.msra.mxu0 %v4525
        %4550 = vmatprep.subr.mxu0 0.0
        %4551 = vmatpush1.msra.mxu0 %v4528
        %4552 = vmatprep.subr.mxu0 0.0
        %4553 = vmatpush1.msra.mxu0 0.0
        %4554 = vmatprep.subr.mxu0 0.0
        %4555 = vmatpush1.msra.mxu0 0.0
        %4556 = vmatprep.subr.mxu0 0.0
        %4557 = vmatpush1.msra.mxu0 0.0
        %4558 = vmatprep.subr.mxu0 0.0
        %4559 = vmatpush1.msra.mxu0 0.0
        %4560 = vmatprep.subr.mxu0 0.0
        %4561 = vmatpush1.msra.mxu0 0.0
        %4562 = vmatprep.subr.mxu0 0.0
        %4563 = vmatpush1.msra.mxu0 0.0
        %4564 = vmatprep.subr.mxu0 0.0
        %4565 = vmatpush1.msra.mxu0 0.0
        %4566 = vmatprep.subr.mxu0 0.0
        %4567 = vmatpush1.msra.mxu0 0.0
        %4568 = vmatprep.subr.mxu0 0.0
        %4569 = vmatpush1.msra.mxu0 0.0
        %4570 = vmatprep.subr.mxu0 0.0
        %4571 = vmatpush1.msra.mxu0 0.0
        %4572 = vmatprep.subr.mxu0 0.0
        %4573 = vmatpush1.msra.mxu0 0.0
        %4574 = vmatprep.subr.mxu0 0.0
        %4575 = vmatpush1.msra.mxu0 0.0
        %4576 = vmatprep.subr.mxu0 0.0
        %4577 = vmatpush1.msra.mxu0 0.0
        %4578 = vmatprep.subr.mxu0 0.0
        %4579 = vmatpush1.msra.mxu0 0.0
        %4580 = vmatprep.subr.mxu0 0.0
        %4581 = vmatpush1.msra.mxu0 0.0
        %4582 = vmatprep.subr.mxu0 0.0
        %4583 = vmatpush1.msra.mxu0 0.0
        %4584 = vmatprep.subr.mxu0 0.0
        %4585 = vmatpush1.msra.mxu0 0.0
        %4586 = vmatprep.subr.mxu0 0.0
        %4587 = vmatpush1.msra.mxu0 0.0
        %4588 = vmatprep.subr.mxu0 0.0
        %4589 = vmatpush1.msra.mxu0 0.0
        %4590 = vmatprep.subr.mxu0 0.0
        %4591 = vmatpush1.msra.mxu0 0.0
        %4592 = vmatprep.subr.mxu0 0.0
        %4593 = vmatpush1.msra.mxu0 0.0
        %4594 = vmatprep.subr.mxu0 0.0
        %4595 = vmatpush1.msra.mxu0 0.0
        %4596 = vmatprep.subr.mxu0 0.0
        %4597 = vmatpush1.msra.mxu0 0.0
        %4598 = vmatprep.subr.mxu0 0.0
        %4599 = vmatpush1.msra.mxu0 0.0
        %4600 = vmatprep.subr.mxu0 0.0
        %4601 = vmatpush1.msra.mxu0 0.0
        %4602 = vmatprep.subr.mxu0 0.0
        %4603 = vmatpush1.msra.mxu0 0.0
        %4604 = vmatprep.subr.mxu0 0.0
        %4605 = vmatpush1.msra.mxu0 0.0
        %4606 = vmatprep.subr.mxu0 0.0
        %4607 = vmatpush1.msra.mxu0 0.0
        %4608 = vmatprep.subr.mxu0 0.0
        %4609 = vmatpush1.msra.mxu0 0.0
        %4610 = vmatprep.subr.mxu0 0.0
        %4611 = vmatpush1.msra.mxu0 0.0
        %4612 = vmatprep.mubr.f32.mxu0 0.0
        %4613 = vmatmul.mubr.f32.gmra.mrb[0].mxu0 %v4543
        %v4614 = vpop.f32.mrb[0].mxu0
        %v4615 = vadd.f32 0.0, %v4614
        %v4616 = vpop.f32.mrb[0].mxu0
        %4617 = vmatprep.mubr.f32.mxu0 0.0
        %4618 = vmatmul.mubr.f32.gmra.mrb[0].mxu0 %v4546
        %v4619 = vpop.f32.mrb[0].mxu0
        %v4620 = vadd.f32 0.0, %v4619
        %v4621 = vpop.f32.mrb[0].mxu0
        %4622 = vdwg.mxu0
        %4623 = vmatprep.subr.mxu0 0.0
        %4624 = vmatpush1.msra.mxu0 %v4535
        %4625 = vmatprep.subr.mxu0 0.0
        %4626 = vmatpush1.msra.mxu0 %v4538
        %4627 = vmatprep.subr.mxu0 0.0
        %4628 = vmatpush1.msra.mxu0 0.0
        %4629 = vmatprep.subr.mxu0 0.0
        %4630 = vmatpush1.msra.mxu0 0.0
        %4631 = vmatprep.subr.mxu0 0.0
        %4632 = vmatpush1.msra.mxu0 0.0
        %4633 = vmatprep.subr.mxu0 0.0
        %4634 = vmatpush1.msra.mxu0 0.0
        %4635 = vmatprep.subr.mxu0 0.0
        %4636 = vmatpush1.msra.mxu0 0.0
        %4637 = vmatprep.subr.mxu0 0.0
        %4638 = vmatpush1.msra.mxu0 0.0
        %4639 = vmatprep.subr.mxu0 0.0
        %4640 = vmatpush1.msra.mxu0 0.0
        %4641 = vmatprep.subr.mxu0 0.0
        %4642 = vmatpush1.msra.mxu0 0.0
        %4643 = vmatprep.subr.mxu0 0.0
        %4644 = vmatpush1.msra.mxu0 0.0
        %4645 = vmatprep.subr.mxu0 0.0
        %4646 = vmatpush1.msra.mxu0 0.0
        %4647 = vmatprep.subr.mxu0 0.0
        %4648 = vmatpush1.msra.mxu0 0.0
        %4649 = vmatprep.subr.mxu0 0.0
        %4650 = vmatpush1.msra.mxu0 0.0
        %4651 = vmatprep.subr.mxu0 0.0
        %4652 = vmatpush1.msra.mxu0 0.0
        %4653 = vmatprep.subr.mxu0 0.0
        %4654 = vmatpush1.msra.mxu0 0.0
        %4655 = vmatprep.subr.mxu0 0.0
        %4656 = vmatpush1.msra.mxu0 0.0
        %4657 = vmatprep.subr.mxu0 0.0
        %4658 = vmatpush1.msra.mxu0 0.0
        %4659 = vmatprep.subr.mxu0 0.0
        %4660 = vmatpush1.msra.mxu0 0.0
        %4661 = vmatprep.subr.mxu0 0.0
        %4662 = vmatpush1.msra.mxu0 0.0
        %4663 = vmatprep.subr.mxu0 0.0
        %4664 = vmatpush1.msra.mxu0 0.0
        %4665 = vmatprep.subr.mxu0 0.0
        %4666 = vmatpush1.msra.mxu0 0.0
        %4667 = vmatprep.subr.mxu0 0.0
        %4668 = vmatpush1.msra.mxu0 0.0
        %4669 = vmatprep.subr.mxu0 0.0
        %4670 = vmatpush1.msra.mxu0 0.0
        %4671 = vmatprep.subr.mxu0 0.0
        %4672 = vmatpush1.msra.mxu0 0.0
        %4673 = vmatprep.subr.mxu0 0.0
        %4674 = vmatpush1.msra.mxu0 0.0
        %4675 = vmatprep.subr.mxu0 0.0
        %4676 = vmatpush1.msra.mxu0 0.0
        %4677 = vmatprep.subr.mxu0 0.0
        %4678 = vmatpush1.msra.mxu0 0.0
        %4679 = vmatprep.subr.mxu0 0.0
        %4680 = vmatpush1.msra.mxu0 0.0
        %4681 = vmatprep.subr.mxu0 0.0
        %4682 = vmatpush1.msra.mxu0 0.0
        %4683 = vmatprep.subr.mxu0 0.0
        %4684 = vmatpush1.msra.mxu0 0.0
        %4685 = vmatprep.subr.mxu0 0.0
        %4686 = vmatpush1.msra.mxu0 0.0
        %4687 = vmatprep.mubr.f32.mxu0 0.0
        %4688 = vmatmul.mubr.f32.gmra.mrb[0].mxu0 %v4543
        %v4689 = vpop.f32.mrb[0].mxu0
        %v4690 = vadd.f32 0.0, %v4689
        %v4691 = vpop.f32.mrb[0].mxu0
        %4692 = vmatprep.mubr.f32.mxu0 0.0
        %4693 = vmatmul.mubr.f32.gmra.mrb[0].mxu0 %v4546
        %v4694 = vpop.f32.mrb[0].mxu0
        %v4695 = vadd.f32 0.0, %v4694
        %v4696 = vpop.f32.mrb[0].mxu0
        %4697 = vdwg.mxu0
        %v4698 = vmul.f32 %v4615, %v4615
        %v4699 = vmul.f32 %v4620, %v4620
        %v4700 = vsub.f32 %v4690, %v4698
        %v4701 = vsub.f32 %v4695, %v4699
        %v4702 = vmax.f32 %v4700, 0.0
        %v4703 = vmax.f32 %v4701, 0.0
        %v4704 = vadd.f32 %v4702, 1e-05
        %v4705 = vadd.f32 %v4703, 1e-05
        %v4706 = vrsqrt.pop %v4704
        %v4707 = vrsqrt.pop %v4705
        %v4708 = vld [vmem:[%s8] sm:$0xff]
        %v4709 = vld [vmem:[%s8 + $0x8] sm:$0xff]
        %v4710 = vmul.f32 %v4706, %v4708
        %v4711 = vmul.f32 %v4707, %v4709
        %v4712 = vld [vmem:[%s9] sm:$0xff]
        %v4713 = vld [vmem:[%s9 + $0x8] sm:$0xff]
        %v4714 = vmul.f32 %v4615, %v4710
        %v4715 = vmul.f32 %v4620, %v4711
        %v4716 = vsub.f32 %v4712, %v4714
        %v4717 = vsub.f32 %v4713, %v4715
        %4719 = vset.pattern.permute.xlu0 0
        %4720 = vperm.xlu0 %4719, %v4710
        %v4721 = vpop.permute.xlu0 %4720
        %4724 = vset.pattern.permute.xlu0 0
        %4725 = vperm.xlu0 %4724, %v4711
        %v4726 = vpop.permute.xlu0 %4725
        %v4728 = vmul.f32 %v4519, %v4721
        %v4729 = vmul.f32 %v4520, %v4721
        %v4730 = vmul.f32 %v4521, %v4726
        %v4731 = vmul.f32 %v4522, %v4726
        %4733 = vset.pattern.permute.xlu0 0
        %4734 = vperm.xlu0 %4733, %v4716
        %v4735 = vpop.permute.xlu0 %4734
        %4738 = vset.pattern.permute.xlu0 0
        %4739 = vperm.xlu0 %4738, %v4717
        %v4740 = vpop.permute.xlu0 %4739
        %v4742 = vadd.f32 %v4728, %v4735
        %v4743 = vadd.f32 %v4729, %v4735
        %v4744 = vadd.f32 %v4730, %v4740
        %v4745 = vadd.f32 %v4731, %v4740
        %4746 = vst [vmem:[%s352] sm:$0xff] %v4742
        %4747 = vst [vmem:[%s352 + $0x8] sm:$0xff] %v4743
        %4748 = vst [vmem:[%s352 + $0x10] sm:$0xff] %v4744
        %4749 = vst [vmem:[%s352 + $0x18] sm:$0xff] %v4745
        %s4750 = sand.u32 %s247, 1
        %s4751 = scalar_lea.sflag [#allocation5], %s4750
        %s4752 = sand.u32 %s247, 1
        %s4753 = smul.addr %s4752, 32
        %s4754 = scalar_lea.vmem [#allocation4], %s4753
        // Predicated region
        $region65: #{tpu_custom_call.1} parent=59 // pred_check
          %p4755 = pneg %p257
        $region66: #{tpu_custom_call.1} parent=59 // pred_check_branch
          %4757 = sbr.rel (%p4755) target = $region68
        $region67: #{tpu_custom_call.1} parent=59 // pred_region
          %s4759 = ssub.s32 512, 512
          %4760 = vsyncadd %s4751, %s4759
          %s4761 = smul.addr %s24, 4
          %s4762 = smul.addr %s4761, 128
          %s4763 = scalar_lea.hbm %s10, %s4762
          %s4764 = sshll.u32 %s4754, 4
          %s4765 = int_to_ptr.vmem [resolvable:$true] %s4764
          %4770 = dma.vmem_to_hbm [thread:$0]  %s4765, 512, %s4763, %s4751, 256, 256, 16
        $region68: #{tpu_custom_call.1} parent=59 // pred_fallthru
          _
      $region60: #{tpu_custom_call.1} parent=5 // pred_fallthru
        _
      %p4771 = scmp.le.s32.totalorder 2, %s19
      // Predicated region
      $region69: #{tpu_custom_call.1} parent=5 // pred_check
        %p4772 = pneg %p4771
      $region70: #{tpu_custom_call.1} parent=5 // pred_check_branch
        %4774 = sbr.rel (%p4772) target = $region72
      $region71: #{tpu_custom_call.1} parent=5 // pred_region
        %s4775 = ssub.s32 %s19, 2
        // Predicated region
        $region73: #{tpu_custom_call.1} parent=71 // pred_check
          %p4776 = pneg %p263
        $region74: #{tpu_custom_call.1} parent=71 // pred_check_branch
          %4778 = sbr.rel (%p4776) target = $region76
        $region75: #{tpu_custom_call.1} parent=71 // pred_region
          %s4779 = sand.u32 %s248, 1
          %s4780 = scalar_lea.sflag [#allocation5], %s4779
          %s4781 = sand.u32 %s248, 1
          %s4782 = smul.addr %s4781, 32
          %s4783 = scalar_lea.vmem [#allocation4], %s4782
          %4784 = dma.done %s4780, 512
        $region76: #{tpu_custom_call.1} parent=71 // pred_fallthru
          _
      $region72: #{tpu_custom_call.1} parent=5 // pred_fallthru
        _
    $region6: #{tpu_custom_call.1} parent=1 // loop_footer
      %s23 = sadd.s32 1, %s19
    $region7: #{tpu_custom_call.1} parent=1 // loop_footer_branch
      %18 = sbr.rel target = $region3
    $region8: #{tpu_custom_call.1} parent=1 // loop_exit
      _
    %4785 = vsyncpa [#allocation5], 1
    %s4786 = scalar_lea.sflag [#allocation5], 1
    %4787 = vsyncpa %s4786, 1

</llo_original>
